<compile_context>
chip_gen: v7x
topology: tpu7x:2x2x1
jax: 0.10.0
libtpu: 0.0.40
codegen_flags: <defaults>
</compile_context>

<pallas_src>
import functools

import jax
import jax.numpy as jnp
from jax.experimental import pallas as pl
from jax.experimental.pallas import tpu as pltpu


# ----------------------------------------------------------------------------------------
# In-kernel math helpers
# ----------------------------------------------------------------------------------------

_SQRT_HALF = 0.7071067811865476


def _erf_approx(x):
    # TODO(synk): lax.erf has no guaranteed Mosaic lowering, so exact-erf GELU uses the
    # Abramowitz & Stegun 7.1.26 rational approximation (|err| <= 1.5e-7, i.e. f32-exact
    # for practical purposes) built from VPU/EUP-supported ops (abs, mul, div, exp, where).
    a1 = 0.254829592
    a2 = -0.284496736
    a3 = 1.421413741
    a4 = -1.453152027
    a5 = 1.061405429
    p = 0.3275911
    sgn = jnp.where(x < 0.0, -1.0, 1.0)
    ax = jnp.abs(x)
    t = 1.0 / (1.0 + p * ax)
    poly = ((((a5 * t + a4) * t + a3) * t + a2) * t + a1) * t
    return sgn * (1.0 - poly * jnp.exp(-ax * ax))


def _gelu_exact(x):
    # Matches torch.nn.GELU() default (erf form), not the tanh approximation.
    return 0.5 * x * (1.0 + _erf_approx(x * _SQRT_HALF))


# ----------------------------------------------------------------------------------------
# Fused MLP kernel:  y = fc2( gelu( fc1(x) ) )    (dropout = identity in eval)
# ----------------------------------------------------------------------------------------

def _mlp_kernel(x_ref, w1_ref, b1_ref, w2_ref, b2_ref, o_ref):
    x = x_ref[...]
    w1 = w1_ref[...]
    w2 = w2_ref[...]
    mm_dtype = w1.dtype
    # Full-f32 MXU path by default; if operands were pre-cast to bf16 in the wrapper we keep
    # bf16 operands with f32 accumulation (preferred_element_type).
    prec = jax.lax.Precision.HIGHEST if mm_dtype == jnp.float32 else None

    h = jnp.dot(x.astype(mm_dtype), w1,
                preferred_element_type=jnp.float32, precision=prec)
    h = h + b1_ref[...].astype(jnp.float32)
    h = _gelu_exact(h)                      # f32 elementwise (v5e-safe), stays in VMEM/vregs

    y = jnp.dot(h.astype(mm_dtype), w2,
                preferred_element_type=jnp.float32, precision=prec)
    y = y + b2_ref[...].astype(jnp.float32)
    o_ref[...] = y.astype(o_ref.dtype)


def mlp_forward(x, w1, b1, w2, b2, *, block_m=64, matmul_dtype=None):
    """Fused Mlp forward.

    x : (..., C_in)        activations (any number of leading dims)
    w1: (C_in, H), b1: (H,)
    w2: (H, C_out), b2: (C_out,)
    matmul_dtype: None (f32 MXU path) or jnp.bfloat16 (cast MXU operands only; f32 accum).
    """
    orig_shape = x.shape
    c_in = orig_shape[-1]
    hidden = w1.shape[1]
    c_out = w2.shape[1]
    out_dtype = x.dtype

    x2 = x.reshape(-1, c_in)
    m = x2.shape[0]

    # Row-tile size: multiple of 8 (sublane), capped at the (padded) row count.
    bm = min(block_m, pl.cdiv(m, 8) * 8)
    bm = pl.cdiv(bm, 8) * 8
    m_pad = pl.cdiv(m, bm) * bm
    if m_pad != m:
        x2 = jnp.pad(x2, ((0, m_pad - m), (0, 0)))

    if matmul_dtype is not None:
        x2 = x2.astype(matmul_dtype)
        w1 = w1.astype(matmul_dtype)
        w2 = w2.astype(matmul_dtype)

    b1r = b1.reshape(1, -1).astype(jnp.float32)
    b2r = b2.reshape(1, -1).astype(jnp.float32)

    grid = (m_pad // bm,)
    # TODO(synk): at real DINOv2 scale (C=768, H=3072, large M) the full-weight BlockSpecs
    # below should become K/N-tiled with an accumulator scratch (matmul pattern P1+P3).
    out = pl.pallas_call(
        _mlp_kernel,
        out_shape=jax.ShapeDtypeStruct((m_pad, c_out), out_dtype),
        grid=grid,
        in_specs=[
            pl.BlockSpec((bm, c_in), lambda i: (i, 0)),     # row tile of activations
            pl.BlockSpec((c_in, hidden), lambda i: (0, 0)),  # fc1 weight, resident
            pl.BlockSpec((1, hidden), lambda i: (0, 0)),     # fc1 bias
            pl.BlockSpec((hidden, c_out), lambda i: (0, 0)),  # fc2 weight, resident
            pl.BlockSpec((1, c_out), lambda i: (0, 0)),      # fc2 bias
        ],
        out_specs=pl.BlockSpec((bm, c_out), lambda i: (i, 0)),
        compiler_params=pltpu.CompilerParams(
            dimension_semantics=("parallel",)),              # feeds both v7x TensorCores
    )(x2, w1, b1r, w2, b2r)

    out = out[:m]
    return out.reshape(*orig_shape[:-1], c_out)


# ----------------------------------------------------------------------------------------

if __name__ == "__main__":
    key = jax.random.PRNGKey(0)
    kx, k1, k2, k3, k4 = jax.random.split(key, 5)

    # Small transformer-ish shapes, lane-dense (multiples of 128) per the perf review.
    B, N = 2, 64                 # batch, tokens  -> M = 128 rows, grid = 2 parallel tiles
    C_IN, HID, C_OUT = 128, 512, 128

    x = jax.random.normal(kx, (B, N, C_IN), jnp.float32)
    w1 = (jax.random.normal(k1, (C_IN, HID)) * 0.02).astype(jnp.float32)
    b1 = (jax.random.normal(k2, (HID,)) * 0.02).astype(jnp.float32)
    w2 = (jax.random.normal(k3, (HID, C_OUT)) * 0.02).astype(jnp.float32)
    b2 = (jax.random.normal(k4, (C_OUT,)) * 0.02).astype(jnp.float32)

    out = mlp_forward(x, w1, b1, w2, b2, block_m=64)
    out = jax.block_until_ready(out)
    assert out.shape == (B, N, C_OUT), out.shape

    # Reference: fc1 -> exact-erf GELU -> fc2  (Dropout is identity in eval / p=0).
    hp = jax.lax.Precision.HIGHEST
    ref = jnp.dot(x.reshape(-1, C_IN), w1, precision=hp) + b1
    ref = jax.nn.gelu(ref, approximate=False)
    ref = (jnp.dot(ref, w2, precision=hp) + b2).reshape(B, N, C_OUT)

    assert bool(jnp.all(jnp.isfinite(out)))
    max_err = float(jnp.max(jnp.abs(out - ref)))
    assert jnp.allclose(out, ref, rtol=1e-4, atol=1e-4), max_err

    print("KERNEL_OK")
</pallas_src>

<mosaic_0001>
module attributes {stable_mosaic.version = 11 : i64} {
  func.func @_mlp_kernel(%arg0: i32, %arg1: memref<64x128xf32, #tpu.memory_space<vmem>>, %arg2: memref<128x512xf32, #tpu.memory_space<vmem>>, %arg3: memref<1x512xf32, #tpu.memory_space<vmem>>, %arg4: memref<512x128xf32, #tpu.memory_space<vmem>>, %arg5: memref<1x128xf32, #tpu.memory_space<vmem>>, %arg6: memref<64x128xf32, #tpu.memory_space<vmem>>) attributes {dimension_semantics = [#tpu.dimension_semantics<parallel>], iteration_bounds = array<i64: 2>, scalar_prefetch = 0 : i64, scratch_operands = 0 : i64, tpu.core_type = #tpu.core_type<tc>, window_params = [{transform_indices = @transform_0, window_bounds = array<i64: 64, 128>}, {pipeline_mode = #tpu.pipeline_mode<synchronous>, transform_indices = @transform_1, window_bounds = array<i64: 128, 512>}, {pipeline_mode = #tpu.pipeline_mode<synchronous>, transform_indices = @transform_2, window_bounds = array<i64: 1, 512>}, {pipeline_mode = #tpu.pipeline_mode<synchronous>, transform_indices = @transform_3, window_bounds = array<i64: 512, 128>}, {pipeline_mode = #tpu.pipeline_mode<synchronous>, transform_indices = @transform_4, window_bounds = array<i64: 1, 128>}, {transform_indices = @transform_5, window_bounds = array<i64: 64, 128>}]} {
    %c0 = arith.constant 0 : index
    %c0_0 = arith.constant 0 : index
    %0 = vector.load %arg1[%c0, %c0_0] : memref<64x128xf32, #tpu.memory_space<vmem>>, vector<64x128xf32>
    %c0_1 = arith.constant 0 : index
    %c0_2 = arith.constant 0 : index
    %1 = vector.load %arg2[%c0_1, %c0_2] : memref<128x512xf32, #tpu.memory_space<vmem>>, vector<128x512xf32>
    %c0_3 = arith.constant 0 : index
    %c0_4 = arith.constant 0 : index
    %2 = vector.load %arg4[%c0_3, %c0_4] : memref<512x128xf32, #tpu.memory_space<vmem>>, vector<512x128xf32>
    %cst = arith.constant dense<0.000000e+00> : vector<64x512xf32>
    %3 = tpu.matmul %0, %1, %cst {dimension_numbers = #tpu.dot_dimension_numbers<[1], [0], [0], [1], [0, 0, 1, 1], [], []>, precision = #tpu.contract_precision<fp32>} : vector<64x128xf32>, vector<128x512xf32>, vector<64x512xf32> -> vector<64x512xf32>
    %c0_5 = arith.constant 0 : index
    %c0_6 = arith.constant 0 : index
    %4 = vector.load %arg3[%c0_5, %c0_6] : memref<1x512xf32, #tpu.memory_space<vmem>>, vector<1x512xf32>
    %5 = vector.broadcast %4 : vector<1x512xf32> to vector<64x512xf32>
    %6 = arith.addf %3, %5 : vector<64x512xf32>
    %cst_7 = arith.constant 5.000000e-01 : f32
    %7 = vector.broadcast %cst_7 : f32 to vector<64x512xf32>
    %8 = arith.mulf %7, %6 : vector<64x512xf32>
    %cst_8 = arith.constant 0.707106769 : f32
    %9 = vector.broadcast %cst_8 : f32 to vector<64x512xf32>
    %10 = arith.mulf %6, %9 : vector<64x512xf32>
    %cst_9 = arith.constant 0.000000e+00 : f32
    %11 = vector.broadcast %cst_9 : f32 to vector<64x512xf32>
    %12 = arith.cmpf olt, %10, %11 : vector<64x512xf32>
    %cst_10 = arith.constant -1.000000e+00 : f32
    %cst_11 = arith.constant 1.000000e+00 : f32
    %13 = vector.broadcast %cst_10 : f32 to vector<64x512xf32>
    %14 = vector.broadcast %cst_11 : f32 to vector<64x512xf32>
    %15 = arith.select %12, %13, %14 : vector<64x512xi1>, vector<64x512xf32>
    %16 = math.absf %10 : vector<64x512xf32>
    %cst_12 = arith.constant 0.327591091 : f32
    %17 = vector.broadcast %cst_12 : f32 to vector<64x512xf32>
    %18 = arith.mulf %17, %16 : vector<64x512xf32>
    %cst_13 = arith.constant 1.000000e+00 : f32
    %19 = vector.broadcast %cst_13 : f32 to vector<64x512xf32>
    %20 = arith.addf %19, %18 : vector<64x512xf32>
    %cst_14 = arith.constant 1.000000e+00 : f32
    %21 = vector.broadcast %cst_14 : f32 to vector<64x512xf32>
    %22 = arith.divf %21, %20 : vector<64x512xf32>
    %cst_15 = arith.constant 1.06140542 : f32
    %23 = vector.broadcast %cst_15 : f32 to vector<64x512xf32>
    %24 = arith.mulf %23, %22 : vector<64x512xf32>
    %cst_16 = arith.constant -1.45315206 : f32
    %25 = vector.broadcast %cst_16 : f32 to vector<64x512xf32>
    %26 = arith.addf %24, %25 : vector<64x512xf32>
    %27 = arith.mulf %26, %22 : vector<64x512xf32>
    %cst_17 = arith.constant 1.42141378 : f32
    %28 = vector.broadcast %cst_17 : f32 to vector<64x512xf32>
    %29 = arith.addf %27, %28 : vector<64x512xf32>
    %30 = arith.mulf %29, %22 : vector<64x512xf32>
    %cst_18 = arith.constant -0.284496725 : f32
    %31 = vector.broadcast %cst_18 : f32 to vector<64x512xf32>
    %32 = arith.addf %30, %31 : vector<64x512xf32>
    %33 = arith.mulf %32, %22 : vector<64x512xf32>
    %cst_19 = arith.constant 0.254829586 : f32
    %34 = vector.broadcast %cst_19 : f32 to vector<64x512xf32>
    %35 = arith.addf %33, %34 : vector<64x512xf32>
    %36 = arith.mulf %35, %22 : vector<64x512xf32>
    %cst_20 = arith.constant 0.000000e+00 : f32
    %37 = vector.broadcast %cst_20 : f32 to vector<64x512xf32>
    %38 = arith.subf %37, %16 : vector<64x512xf32>
    %39 = arith.mulf %38, %16 : vector<64x512xf32>
    %40 = math.exp %39 : vector<64x512xf32>
    %41 = arith.mulf %36, %40 : vector<64x512xf32>
    %cst_21 = arith.constant 1.000000e+00 : f32
    %42 = vector.broadcast %cst_21 : f32 to vector<64x512xf32>
    %43 = arith.subf %42, %41 : vector<64x512xf32>
    %44 = arith.mulf %15, %43 : vector<64x512xf32>
    %cst_22 = arith.constant 1.000000e+00 : f32
    %45 = vector.broadcast %cst_22 : f32 to vector<64x512xf32>
    %46 = arith.addf %45, %44 : vector<64x512xf32>
    %47 = arith.mulf %8, %46 : vector<64x512xf32>
    %cst_23 = arith.constant dense<0.000000e+00> : vector<64x128xf32>
    %48 = tpu.matmul %47, %2, %cst_23 {dimension_numbers = #tpu.dot_dimension_numbers<[1], [0], [0], [1], [0, 0, 1, 1], [], []>, precision = #tpu.contract_precision<fp32>} : vector<64x512xf32>, vector<512x128xf32>, vector<64x128xf32> -> vector<64x128xf32>
    %c0_24 = arith.constant 0 : index
    %c0_25 = arith.constant 0 : index
    %49 = vector.load %arg5[%c0_24, %c0_25] : memref<1x128xf32, #tpu.memory_space<vmem>>, vector<1x128xf32>
    %50 = vector.broadcast %49 : vector<1x128xf32> to vector<64x128xf32>
    %51 = arith.addf %48, %50 : vector<64x128xf32>
    %c0_26 = arith.constant 0 : index
    %c0_27 = arith.constant 0 : index
    %52 = vector.load %arg6[%c0_26, %c0_27] : memref<64x128xf32, #tpu.memory_space<vmem>>, vector<64x128xf32>
    tpu.vector_store %arg6[%c0_26, %c0_27], %51 {strides = array<i32>} : memref<64x128xf32, #tpu.memory_space<vmem>>, vector<64x128xf32>,
    return
  }
  func.func @transform_0(%arg0: i32) -> (i32, i32) {
    %c0_i32 = arith.constant 0 : i32
    %c0_i32_0 = arith.constant 0 : i32
    return %arg0, %c0_i32 : i32, i32
  }
  func.func @transform_1(%arg0: i32) -> (i32, i32) {
    %c0_i32 = arith.constant 0 : i32
    %c0_i32_0 = arith.constant 0 : i32
    %c0_i32_1 = arith.constant 0 : i32
    return %c0_i32, %c0_i32_0 : i32, i32
  }
  func.func @transform_2(%arg0: i32) -> (i32, i32) {
    %c0_i32 = arith.constant 0 : i32
    %c0_i32_0 = arith.constant 0 : i32
    %c0_i32_1 = arith.constant 0 : i32
    return %c0_i32, %c0_i32_0 : i32, i32
  }
  func.func @transform_3(%arg0: i32) -> (i32, i32) {
    %c0_i32 = arith.constant 0 : i32
    %c0_i32_0 = arith.constant 0 : i32
    %c0_i32_1 = arith.constant 0 : i32
    return %c0_i32, %c0_i32_0 : i32, i32
  }
  func.func @transform_4(%arg0: i32) -> (i32, i32) {
    %c0_i32 = arith.constant 0 : i32
    %c0_i32_0 = arith.constant 0 : i32
    %c0_i32_1 = arith.constant 0 : i32
    return %c0_i32, %c0_i32_0 : i32, i32
  }
  func.func @transform_5(%arg0: i32) -> (i32, i32) {
    %c0_i32 = arith.constant 0 : i32
    %c0_i32_0 = arith.constant 0 : i32
    return %arg0, %c0_i32 : i32, i32
  }
}

</mosaic_0001>

<llo_original>
// kernel: tpu_custom_call.1
$region0: #{tpu_custom_call.1}
  #allocation0 [shape = 'u32[]', space=smem, size = 0x4, offset = 0x4, fixed_abs, tag = 'smem constant byte address 0x4 - core index']
  #allocation1 [shape = 'u32[144,128]{1,0:T(1,128)}', space=vmem, size = 0x12000, scoped, tag = 'internal scratch']
  %s0 = inlined_call_operand.hbm [shape: f32[128,128], index: 0, kind: input, shape index: {}]
  %s1 = inlined_call_operand.hbm [shape: f32[128,512], index: 1, kind: input, shape index: {}]
  %s2 = inlined_call_operand.vmem [shape: f32[1,512], index: 2, kind: input, shape index: {}]
  %s3 = inlined_call_operand.hbm [shape: f32[512,128], index: 3, kind: input, shape index: {}]
  %s4 = inlined_call_operand.vmem [shape: f32[1,128], index: 4, kind: input, shape index: {}]
  %s5 = inlined_call_operand.hbm [shape: f32[128,128], index: 5, kind: output, shape index: {}]
  %s6 = sld [smem:[#allocation0]]
  $region65: #{tpu_custom_call.1} parent=0
    _
  %s8 = ssub.s32 1, %s6
  %s9 = scalar_select 0, %s8, %s6
  $region1: #{tpu_custom_call.1} parent=0
    #allocation2 [shape = 'u8[65536]{0}', space=vmem, size = 0x10000, scoped, tag = 'input window, operand 0']
    #allocation3 [shape = 's32[2]{0}', space=sflag, size = 0x8, scoped, tag = 'scoped memory for tpu_custom_call.1']
    #allocation4 [shape = 's32[2]{0}', space=sflag, size = 0x8, scoped, tag = 'scoped memory for tpu_custom_call.1']
    #allocation5 [shape = 'u8[262144]{0}', space=vmem, size = 0x40000, scoped, tag = 'input window, operand 1, single buffered']
    #allocation6 [shape = 's32[1]{0}', space=sflag, size = 0x4, scoped, tag = 'scoped memory for tpu_custom_call.1']
    #allocation7 [shape = 'u8[262144]{0}', space=vmem, size = 0x40000, scoped, tag = 'input window, operand 3, single buffered']
    #allocation8 [shape = 'u8[65536]{0}', space=vmem, size = 0x10000, scoped, tag = 'output window, operand 0']
    %10 = vsyncpa [#allocation3], 0
    %s11 = scalar_lea.sflag [#allocation3], 1
    %12 = vsyncpa %s11, 0
    %13 = vsyncpa [#allocation6], 0
    %14 = vsyncpa [#allocation4], 0
    %s15 = scalar_lea.sflag [#allocation4], 1
    %16 = vsyncpa %s15, 0
    loop: start=0, step=1, limit=4
    $region2: #{tpu_custom_call.1} parent=1 // loop_pre_header
      _
    $region3: #{tpu_custom_call.1} parent=1 // loop_header
      %s18 = sphi 0, %s22
      %p19 = scmp.ge.s32.totalorder %s18, 4
      %s28 = sphi 0, %s30
      %s31 = sphi 0, %s28
      %s32 = sphi 0, %s31
      %s48 = sphi 0, %s32
      %s52 = sphi 0, %s52
      %s54 = sphi 0, %s52
      %s55 = sphi 0, %s54
      %s69 = sphi 0, %s55
      %s73 = sphi 0, %s73
      %s75 = sphi 0, %s73
      %s76 = sphi 0, %s75
      %s90 = sphi 0, %s76
      %s94 = sphi 0, %s94
      %s96 = sphi 0, %s94
      %s97 = sphi 0, %s96
      %s111 = sphi 0, %s97
      %s115 = sphi 0, %s115
      %s117 = sphi 0, %s115
      %s118 = sphi 0, %s117
      %s132 = sphi 0, %s118
      %s138 = sphi 0, %s140
      %s141 = sphi 0, %s138
      %s142 = sphi 0, %s141
      %s158 = sphi 0, %s142
    $region4: #{tpu_custom_call.1} parent=1 // loop_header_branch
      %21 = sbr.rel (%p19) target = $region8
    $region5: #{tpu_custom_call.1} parent=1 // loop_body
      %s23 = ssub.s32 %s18, 1
      %s24 = ssub.s32 %s18, 2
      %s25 = sadd.s32 %s18, 1
      %s26 = ssub.s32 %s18, %s25
      %p27 = scmp.eq.s32.totalorder %s26, 0
      %s29 = sadd.s32 %s28, 1
      %s30 = scalar_select %p27, %s28, %s29
      %p33 = pneg %p27
      %p34 = scmp.eq.s32.totalorder %s18, 1
      %p35 = por %p33, %p34
      %p36 = scmp.ne.s32.totalorder %s28, %s31
      %p37 = scmp.eq.s32.totalorder %s18, 0
      %p38 = por %p36, %p37
      %p39 = scmp.ne.s32.totalorder %s28, %s31
      %p40 = scmp.eq.s32.totalorder %s23, 1
      %p41 = por %p39, %p40
      %p42 = scmp.ne.s32.totalorder %s31, %s32
      %p43 = scmp.eq.s32.totalorder %s23, 0
      %p44 = por %p42, %p43
      %p45 = scmp.ne.s32.totalorder %s31, %s32
      %p46 = scmp.eq.s32.totalorder %s24, 1
      %p47 = por %p45, %p46
      %p49 = scmp.ne.s32.totalorder %s32, %s48
      %p50 = scmp.eq.s32.totalorder %s24, 0
      %p51 = por %p49, %p50
      %s53 = sadd.s32 %s52, 1
      %p56 = scmp.eq.s32.totalorder %s18, 1
      %p57 = scmp.ne.s32.totalorder %s52, %s54
      %p58 = scmp.eq.s32.totalorder %s18, 0
      %p59 = por %p57, %p58
      %p60 = scmp.ne.s32.totalorder %s52, %s54
      %p61 = scmp.eq.s32.totalorder %s23, 1
      %p62 = por %p60, %p61
      %p63 = scmp.ne.s32.totalorder %s54, %s55
      %p64 = scmp.eq.s32.totalorder %s23, 0
      %p65 = por %p63, %p64
      %p66 = scmp.ne.s32.totalorder %s54, %s55
      %p67 = scmp.eq.s32.totalorder %s24, 1
      %p68 = por %p66, %p67
      %p70 = scmp.ne.s32.totalorder %s55, %s69
      %p71 = scmp.eq.s32.totalorder %s24, 0
      %p72 = por %p70, %p71
      %s74 = sadd.s32 %s73, 1
      %p77 = scmp.eq.s32.totalorder %s18, 1
      %p78 = scmp.ne.s32.totalorder %s73, %s75
      %p79 = scmp.eq.s32.totalorder %s18, 0
      %p80 = por %p78, %p79
      %p81 = scmp.ne.s32.totalorder %s73, %s75
      %p82 = scmp.eq.s32.totalorder %s23, 1
      %p83 = por %p81, %p82
      %p84 = scmp.ne.s32.totalorder %s75, %s76
      %p85 = scmp.eq.s32.totalorder %s23, 0
      %p86 = por %p84, %p85
      %p87 = scmp.ne.s32.totalorder %s75, %s76
      %p88 = scmp.eq.s32.totalorder %s24, 1
      %p89 = por %p87, %p88
      %p91 = scmp.ne.s32.totalorder %s76, %s90
      %p92 = scmp.eq.s32.totalorder %s24, 0
      %p93 = por %p91, %p92
      %s95 = sadd.s32 %s94, 1
      %p98 = scmp.eq.s32.totalorder %s18, 1
      %p99 = scmp.ne.s32.totalorder %s94, %s96
      %p100 = scmp.eq.s32.totalorder %s18, 0
      %p101 = por %p99, %p100
      %p102 = scmp.ne.s32.totalorder %s94, %s96
      %p103 = scmp.eq.s32.totalorder %s23, 1
      %p104 = por %p102, %p103
      %p105 = scmp.ne.s32.totalorder %s96, %s97
      %p106 = scmp.eq.s32.totalorder %s23, 0
      %p107 = por %p105, %p106
      %p108 = scmp.ne.s32.totalorder %s96, %s97
      %p109 = scmp.eq.s32.totalorder %s24, 1
      %p110 = por %p108, %p109
      %p112 = scmp.ne.s32.totalorder %s97, %s111
      %p113 = scmp.eq.s32.totalorder %s24, 0
      %p114 = por %p112, %p113
      %s116 = sadd.s32 %s115, 1
      %p119 = scmp.eq.s32.totalorder %s18, 1
      %p120 = scmp.ne.s32.totalorder %s115, %s117
      %p121 = scmp.eq.s32.totalorder %s18, 0
      %p122 = por %p120, %p121
      %p123 = scmp.ne.s32.totalorder %s115, %s117
      %p124 = scmp.eq.s32.totalorder %s23, 1
      %p125 = por %p123, %p124
      %p126 = scmp.ne.s32.totalorder %s117, %s118
      %p127 = scmp.eq.s32.totalorder %s23, 0
      %p128 = por %p126, %p127
      %p129 = scmp.ne.s32.totalorder %s117, %s118
      %p130 = scmp.eq.s32.totalorder %s24, 1
      %p131 = por %p129, %p130
      %p133 = scmp.ne.s32.totalorder %s118, %s132
      %p134 = scmp.eq.s32.totalorder %s24, 0
      %p135 = por %p133, %p134
      %s136 = ssub.s32 %s18, %s25
      %p137 = scmp.eq.s32.totalorder %s136, 0
      %s139 = sadd.s32 %s138, 1
      %s140 = scalar_select %p137, %s138, %s139
      %p143 = pneg %p137
      %p144 = scmp.eq.s32.totalorder %s18, 1
      %p145 = por %p143, %p144
      %p146 = scmp.ne.s32.totalorder %s138, %s141
      %p147 = scmp.eq.s32.totalorder %s18, 0
      %p148 = por %p146, %p147
      %p149 = scmp.ne.s32.totalorder %s138, %s141
      %p150 = scmp.eq.s32.totalorder %s23, 1
      %p151 = por %p149, %p150
      %p152 = scmp.ne.s32.totalorder %s141, %s142
      %p153 = scmp.eq.s32.totalorder %s23, 0
      %p154 = por %p152, %p153
      %p155 = scmp.ne.s32.totalorder %s141, %s142
      %p156 = scmp.eq.s32.totalorder %s24, 1
      %p157 = por %p155, %p156
      %p159 = scmp.ne.s32.totalorder %s142, %s158
      %p160 = scmp.eq.s32.totalorder %s24, 0
      %p161 = por %p159, %p160
      %p162 = scmp.le.s32.totalorder 1, %s18
      %p163 = scmp.lt.s32.totalorder %s18, 3
      %p164 = pnand %p162, %p163
      %p165 = pneg %p164
      // Predicated region
      $region9: #{tpu_custom_call.1} parent=5 // pred_check
        _
      $region10: #{tpu_custom_call.1} parent=5 // pred_check_branch
        %167 = sbr.rel (%p164) target = $region12
      $region11: #{tpu_custom_call.1} parent=5 // pred_region
        %s168 = ssub.s32 %s18, 1
        // Predicated region
        $region13: #{tpu_custom_call.1} parent=11 // pred_check
          %p169 = pneg %p65
        $region14: #{tpu_custom_call.1} parent=11 // pred_check_branch
          %171 = sbr.rel (%p169) target = $region16
        $region15: #{tpu_custom_call.1} parent=11 // pred_region
          %s173 = ssub.s32 8192, 8192
          %174 = vsyncadd [#allocation6], %s173
          %s175 = sshll.u32 [#allocation5], 4
          %s176 = int_to_ptr.vmem [resolvable:$true] %s175
          %181 = dma.hbm_to_vmem [thread:$0]  %s1, 8192, %s176, [#allocation6], 512, 512, 32
        $region16: #{tpu_custom_call.1} parent=11 // pred_fallthru
          _
        // Predicated region
        $region17: #{tpu_custom_call.1} parent=11 // pred_check
          %p182 = pneg %p86
        $region18: #{tpu_custom_call.1} parent=11 // pred_check_branch
          %184 = sbr.rel (%p182) target = $region20
        $region19: #{tpu_custom_call.1} parent=11 // pred_region
          _
        $region20: #{tpu_custom_call.1} parent=11 // pred_fallthru
          _
        // Predicated region
        $region21: #{tpu_custom_call.1} parent=11 // pred_check
          %p185 = pneg %p107
        $region22: #{tpu_custom_call.1} parent=11 // pred_check_branch
          %187 = sbr.rel (%p185) target = $region24
        $region23: #{tpu_custom_call.1} parent=11 // pred_region
          %s189 = ssub.s32 8192, 8192
          %190 = vsyncadd [#allocation6], %s189
          %s191 = sshll.u32 [#allocation7], 4
          %s192 = int_to_ptr.vmem [resolvable:$true] %s191
          %197 = dma.hbm_to_vmem [thread:$0]  %s3, 8192, %s192, [#allocation6], 128, 128, 8
        $region24: #{tpu_custom_call.1} parent=11 // pred_fallthru
          _
        // Predicated region
        $region25: #{tpu_custom_call.1} parent=11 // pred_check
          %p198 = pneg %p128
        $region26: #{tpu_custom_call.1} parent=11 // pred_check_branch
          %200 = sbr.rel (%p198) target = $region28
        $region27: #{tpu_custom_call.1} parent=11 // pred_region
          _
        $region28: #{tpu_custom_call.1} parent=11 // pred_fallthru
          _
      $region12: #{tpu_custom_call.1} parent=5 // pred_fallthru
        _
      %p201 = scmp.lt.s32.totalorder %s18, 2
      // Predicated region
      $region29: #{tpu_custom_call.1} parent=5 // pred_check
        %p202 = pneg %p201
      $region30: #{tpu_custom_call.1} parent=5 // pred_check_branch
        %204 = sbr.rel (%p202) target = $region32
      $region31: #{tpu_custom_call.1} parent=5 // pred_region
        // Predicated region
        $region33: #{tpu_custom_call.1} parent=31 // pred_check
          %p205 = pneg %p38
        $region34: #{tpu_custom_call.1} parent=31 // pred_check_branch
          %207 = sbr.rel (%p205) target = $region36
        $region35: #{tpu_custom_call.1} parent=31 // pred_region
          %s208 = sand.u32 %s28, 1
          %s209 = scalar_lea.sflag [#allocation3], %s208
          %s210 = sand.u32 %s28, 1
          %s211 = smul.addr %s210, 64
          %s212 = scalar_lea.vmem [#allocation2], %s211
          %s213 = smul.u32 8, %s18
          %s215 = ssub.s32 1024, 1024
          %216 = vsyncadd %s209, %s215
          %s217 = smul.addr %s213, 128
          %s218 = scalar_lea.hbm %s0, %s217
          %s219 = sshll.u32 %s212, 4
          %s220 = int_to_ptr.vmem [resolvable:$true] %s219
          %225 = dma.hbm_to_vmem [thread:$0]  %s218, 1024, %s220, %s209, 128, 128, 8
        $region36: #{tpu_custom_call.1} parent=31 // pred_fallthru
          _
      $region32: #{tpu_custom_call.1} parent=5 // pred_fallthru
        _
      %p226 = scmp.le.s32.totalorder 1, %s18
      %p227 = scmp.lt.s32.totalorder %s18, 3
      %p228 = pnand %p226, %p227
      %p229 = pneg %p228
      // Predicated region
      $region37: #{tpu_custom_call.1} parent=5 // pred_check
        _
      $region38: #{tpu_custom_call.1} parent=5 // pred_check_branch
        %231 = sbr.rel (%p228) target = $region40
      $region39: #{tpu_custom_call.1} parent=5 // pred_region
        %s232 = ssub.s32 %s18, 1
        %s233 = sand.u32 %s31, 1
        %s234 = scalar_lea.sflag [#allocation3], %s233
        %s235 = sand.u32 %s31, 1
        %s236 = smul.addr %s235, 64
        %s237 = scalar_lea.vmem [#allocation2], %s236
        // Predicated region
        $region41: #{tpu_custom_call.1} parent=39 // pred_check
          %p238 = pneg %p44
        $region42: #{tpu_custom_call.1} parent=39 // pred_check_branch
          %240 = sbr.rel (%p238) target = $region44
        $region43: #{tpu_custom_call.1} parent=39 // pred_region
          %241 = dma.done %s234, 1024
        $region44: #{tpu_custom_call.1} parent=39 // pred_fallthru
          _
        // Predicated region
        $region45: #{tpu_custom_call.1} parent=39 // pred_check
          %p242 = pneg %p65
        $region46: #{tpu_custom_call.1} parent=39 // pred_check_branch
          %244 = sbr.rel (%p242) target = $region48
        $region47: #{tpu_custom_call.1} parent=39 // pred_region
          %245 = dma.done [#allocation6], 8192
        $region48: #{tpu_custom_call.1} parent=39 // pred_fallthru
          _
        // Predicated region
        $region49: #{tpu_custom_call.1} parent=39 // pred_check
          %p246 = pneg %p107
        $region50: #{tpu_custom_call.1} parent=39 // pred_check_branch
          %248 = sbr.rel (%p246) target = $region52
        $region51: #{tpu_custom_call.1} parent=39 // pred_region
          %249 = dma.done [#allocation6], 8192
        $region52: #{tpu_custom_call.1} parent=39 // pred_fallthru
          _
        %s250 = sand.u32 %s31, 1
        %s251 = scalar_lea.sflag [#allocation3], %s250
        %s252 = sand.u32 %s31, 1
        %s253 = smul.addr %s252, 64
        %s254 = scalar_lea.vmem [#allocation2], %s253
        %p255 = pneg %p44
        %p256 = pneg %p41
        %p257 = pneg %p65
        %p258 = pneg %p62
        %p259 = pneg %p86
        %p260 = pneg %p83
        %p261 = pneg %p107
        %p262 = pneg %p104
        %p263 = pneg %p128
        %p264 = pneg %p125
        %p265 = pneg %p154
        %p266 = pneg %p151
        %s267 = sand.u32 %s141, 1
        %s268 = scalar_lea.sflag [#allocation4], %s267
        %s269 = sand.u32 %s141, 1
        %s270 = smul.addr %s269, 64
        %s271 = scalar_lea.vmem [#allocation8], %s270
        %s272 = smul.u32 8, %s23
        %s273 = smul.u32 8, %s23
        %v274 = vld [vmem:[%s237] sm:$0xff]
        %v275 = vld [vmem:[%s237 + $0x8] sm:$0xff]
        %v276 = vld [vmem:[%s237 + $0x10] sm:$0xff]
        %v277 = vld [vmem:[%s237 + $0x18] sm:$0xff]
        %v278 = vld [vmem:[%s237 + $0x20] sm:$0xff]
        %v279 = vld [vmem:[%s237 + $0x28] sm:$0xff]
        %v280 = vld [vmem:[%s237 + $0x30] sm:$0xff]
        %v281 = vld [vmem:[%s237 + $0x38] sm:$0xff]
        %v282 = vld [vmem:[#allocation5] sm:$0xff]
        %v283 = vld [vmem:[#allocation5 + $0x8] sm:$0xff]
        %v284 = vld [vmem:[#allocation5 + $0x10] sm:$0xff]
        %v285 = vld [vmem:[#allocation5 + $0x18] sm:$0xff]
        %v286 = vld [vmem:[#allocation5 + $0x20] sm:$0xff]
        %v287 = vld [vmem:[#allocation5 + $0x28] sm:$0xff]
        %v288 = vld [vmem:[#allocation5 + $0x30] sm:$0xff]
        %v289 = vld [vmem:[#allocation5 + $0x38] sm:$0xff]
        %v290 = vld [vmem:[#allocation5 + $0x40] sm:$0xff]
        %v291 = vld [vmem:[#allocation5 + $0x48] sm:$0xff]
        %v292 = vld [vmem:[#allocation5 + $0x50] sm:$0xff]
        %v293 = vld [vmem:[#allocation5 + $0x58] sm:$0xff]
        %v294 = vld [vmem:[#allocation5 + $0x60] sm:$0xff]
        %v295 = vld [vmem:[#allocation5 + $0x68] sm:$0xff]
        %v296 = vld [vmem:[#allocation5 + $0x70] sm:$0xff]
        %v297 = vld [vmem:[#allocation5 + $0x78] sm:$0xff]
        %v298 = vld [vmem:[#allocation5 + $0x80] sm:$0xff]
        %v299 = vld [vmem:[#allocation5 + $0x88] sm:$0xff]
        %v300 = vld [vmem:[#allocation5 + $0x90] sm:$0xff]
        %v301 = vld [vmem:[#allocation5 + $0x98] sm:$0xff]
        %v302 = vld [vmem:[#allocation5 + $0xa0] sm:$0xff]
        %v303 = vld [vmem:[#allocation5 + $0xa8] sm:$0xff]
        %v304 = vld [vmem:[#allocation5 + $0xb0] sm:$0xff]
        %v305 = vld [vmem:[#allocation5 + $0xb8] sm:$0xff]
        %v306 = vld [vmem:[#allocation5 + $0xc0] sm:$0xff]
        %v307 = vld [vmem:[#allocation5 + $0xc8] sm:$0xff]
        %v308 = vld [vmem:[#allocation5 + $0xd0] sm:$0xff]
        %v309 = vld [vmem:[#allocation5 + $0xd8] sm:$0xff]
        %v310 = vld [vmem:[#allocation5 + $0xe0] sm:$0xff]
        %v311 = vld [vmem:[#allocation5 + $0xe8] sm:$0xff]
        %v312 = vld [vmem:[#allocation5 + $0xf0] sm:$0xff]
        %v313 = vld [vmem:[#allocation5 + $0xf8] sm:$0xff]
        %v314 = vld [vmem:[#allocation5 + $0x100] sm:$0xff]
        %v315 = vld [vmem:[#allocation5 + $0x108] sm:$0xff]
        %v316 = vld [vmem:[#allocation5 + $0x110] sm:$0xff]
        %v317 = vld [vmem:[#allocation5 + $0x118] sm:$0xff]
        %v318 = vld [vmem:[#allocation5 + $0x120] sm:$0xff]
        %v319 = vld [vmem:[#allocation5 + $0x128] sm:$0xff]
        %v320 = vld [vmem:[#allocation5 + $0x130] sm:$0xff]
        %v321 = vld [vmem:[#allocation5 + $0x138] sm:$0xff]
        %v322 = vld [vmem:[#allocation5 + $0x140] sm:$0xff]
        %v323 = vld [vmem:[#allocation5 + $0x148] sm:$0xff]
        %v324 = vld [vmem:[#allocation5 + $0x150] sm:$0xff]
        %v325 = vld [vmem:[#allocation5 + $0x158] sm:$0xff]
        %v326 = vld [vmem:[#allocation5 + $0x160] sm:$0xff]
        %v327 = vld [vmem:[#allocation5 + $0x168] sm:$0xff]
        %v328 = vld [vmem:[#allocation5 + $0x170] sm:$0xff]
        %v329 = vld [vmem:[#allocation5 + $0x178] sm:$0xff]
        %v330 = vld [vmem:[#allocation5 + $0x180] sm:$0xff]
        %v331 = vld [vmem:[#allocation5 + $0x188] sm:$0xff]
        %v332 = vld [vmem:[#allocation5 + $0x190] sm:$0xff]
        %v333 = vld [vmem:[#allocation5 + $0x198] sm:$0xff]
        %v334 = vld [vmem:[#allocation5 + $0x1a0] sm:$0xff]
        %v335 = vld [vmem:[#allocation5 + $0x1a8] sm:$0xff]
        %v336 = vld [vmem:[#allocation5 + $0x1b0] sm:$0xff]
        %v337 = vld [vmem:[#allocation5 + $0x1b8] sm:$0xff]
        %v338 = vld [vmem:[#allocation5 + $0x1c0] sm:$0xff]
        %v339 = vld [vmem:[#allocation5 + $0x1c8] sm:$0xff]
        %v340 = vld [vmem:[#allocation5 + $0x1d0] sm:$0xff]
        %v341 = vld [vmem:[#allocation5 + $0x1d8] sm:$0xff]
        %v342 = vld [vmem:[#allocation5 + $0x1e0] sm:$0xff]
        %v343 = vld [vmem:[#allocation5 + $0x1e8] sm:$0xff]
        %v344 = vld [vmem:[#allocation5 + $0x1f0] sm:$0xff]
        %v345 = vld [vmem:[#allocation5 + $0x1f8] sm:$0xff]
        %v346 = vld [vmem:[#allocation7] sm:$0xff]
        %v347 = vld [vmem:[#allocation7 + $0x8] sm:$0xff]
        %v348 = vld [vmem:[#allocation7 + $0x10] sm:$0xff]
        %v349 = vld [vmem:[#allocation7 + $0x18] sm:$0xff]
        %v350 = vld [vmem:[#allocation7 + $0x20] sm:$0xff]
        %v351 = vld [vmem:[#allocation7 + $0x28] sm:$0xff]
        %v352 = vld [vmem:[#allocation7 + $0x30] sm:$0xff]
        %v353 = vld [vmem:[#allocation7 + $0x38] sm:$0xff]
        %v354 = vld [vmem:[#allocation7 + $0x40] sm:$0xff]
        %v355 = vld [vmem:[#allocation7 + $0x48] sm:$0xff]
        %v356 = vld [vmem:[#allocation7 + $0x50] sm:$0xff]
        %v357 = vld [vmem:[#allocation7 + $0x58] sm:$0xff]
        %v358 = vld [vmem:[#allocation7 + $0x60] sm:$0xff]
        %v359 = vld [vmem:[#allocation7 + $0x68] sm:$0xff]
        %v360 = vld [vmem:[#allocation7 + $0x70] sm:$0xff]
        %v361 = vld [vmem:[#allocation7 + $0x78] sm:$0xff]
        %v362 = vld [vmem:[#allocation7 + $0x80] sm:$0xff]
        %v363 = vld [vmem:[#allocation7 + $0x88] sm:$0xff]
        %v364 = vld [vmem:[#allocation7 + $0x90] sm:$0xff]
        %v365 = vld [vmem:[#allocation7 + $0x98] sm:$0xff]
        %v366 = vld [vmem:[#allocation7 + $0xa0] sm:$0xff]
        %v367 = vld [vmem:[#allocation7 + $0xa8] sm:$0xff]
        %v368 = vld [vmem:[#allocation7 + $0xb0] sm:$0xff]
        %v369 = vld [vmem:[#allocation7 + $0xb8] sm:$0xff]
        %v370 = vld [vmem:[#allocation7 + $0xc0] sm:$0xff]
        %v371 = vld [vmem:[#allocation7 + $0xc8] sm:$0xff]
        %v372 = vld [vmem:[#allocation7 + $0xd0] sm:$0xff]
        %v373 = vld [vmem:[#allocation7 + $0xd8] sm:$0xff]
        %v374 = vld [vmem:[#allocation7 + $0xe0] sm:$0xff]
        %v375 = vld [vmem:[#allocation7 + $0xe8] sm:$0xff]
        %v376 = vld [vmem:[#allocation7 + $0xf0] sm:$0xff]
        %v377 = vld [vmem:[#allocation7 + $0xf8] sm:$0xff]
        %v378 = vld [vmem:[#allocation7 + $0x100] sm:$0xff]
        %v379 = vld [vmem:[#allocation7 + $0x108] sm:$0xff]
        %v380 = vld [vmem:[#allocation7 + $0x110] sm:$0xff]
        %v381 = vld [vmem:[#allocation7 + $0x118] sm:$0xff]
        %v382 = vld [vmem:[#allocation7 + $0x120] sm:$0xff]
        %v383 = vld [vmem:[#allocation7 + $0x128] sm:$0xff]
        %v384 = vld [vmem:[#allocation7 + $0x130] sm:$0xff]
        %v385 = vld [vmem:[#allocation7 + $0x138] sm:$0xff]
        %v386 = vld [vmem:[#allocation7 + $0x140] sm:$0xff]
        %v387 = vld [vmem:[#allocation7 + $0x148] sm:$0xff]
        %v388 = vld [vmem:[#allocation7 + $0x150] sm:$0xff]
        %v389 = vld [vmem:[#allocation7 + $0x158] sm:$0xff]
        %v390 = vld [vmem:[#allocation7 + $0x160] sm:$0xff]
        %v391 = vld [vmem:[#allocation7 + $0x168] sm:$0xff]
        %v392 = vld [vmem:[#allocation7 + $0x170] sm:$0xff]
        %v393 = vld [vmem:[#allocation7 + $0x178] sm:$0xff]
        %v394 = vld [vmem:[#allocation7 + $0x180] sm:$0xff]
        %v395 = vld [vmem:[#allocation7 + $0x188] sm:$0xff]
        %v396 = vld [vmem:[#allocation7 + $0x190] sm:$0xff]
        %v397 = vld [vmem:[#allocation7 + $0x198] sm:$0xff]
        %v398 = vld [vmem:[#allocation7 + $0x1a0] sm:$0xff]
        %v399 = vld [vmem:[#allocation7 + $0x1a8] sm:$0xff]
        %v400 = vld [vmem:[#allocation7 + $0x1b0] sm:$0xff]
        %v401 = vld [vmem:[#allocation7 + $0x1b8] sm:$0xff]
        %v402 = vld [vmem:[#allocation7 + $0x1c0] sm:$0xff]
        %v403 = vld [vmem:[#allocation7 + $0x1c8] sm:$0xff]
        %v404 = vld [vmem:[#allocation7 + $0x1d0] sm:$0xff]
        %v405 = vld [vmem:[#allocation7 + $0x1d8] sm:$0xff]
        %v406 = vld [vmem:[#allocation7 + $0x1e0] sm:$0xff]
        %v407 = vld [vmem:[#allocation7 + $0x1e8] sm:$0xff]
        %v408 = vld [vmem:[#allocation7 + $0x1f0] sm:$0xff]
        %v409 = vld [vmem:[#allocation7 + $0x1f8] sm:$0xff]
        %v410 = vld [vmem:[%s2] sm:$0xf]
        %v412 = vlaneseq
        %v413 = vshrl.u32 %v412, 7
        %v414 = vsub.s32 0, %v413
        %v415 = vrot.slane %v410, %v414
        %v416 = vlaneseq
        %v417 = vshrl.u32 %v416, 7
        %v418 = vsub.s32 1, %v417
        %v419 = vrot.slane %v410, %v418
        %v420 = vlaneseq
        %v421 = vshrl.u32 %v420, 7
        %v422 = vsub.s32 2, %v421
        %v423 = vrot.slane %v410, %v422
        %v424 = vlaneseq
        %v425 = vshrl.u32 %v424, 7
        %v426 = vsub.s32 3, %v425
        %v427 = vrot.slane %v410, %v426
        %v432 = vand.u32 %v283, 4294901760
        %433 = vmatprep.subr.mxu0 %v432
        %v434 = vand.u32 %v282, 4294901760
        %435 = vmatpush1.msra.mxu0 %v434
        %v436 = vand.u32 %v287, 4294901760
        %437 = vmatprep.subr.mxu0 %v436
        %v438 = vand.u32 %v286, 4294901760
        %439 = vmatpush1.msra.mxu0 %v438
        %v440 = vand.u32 %v291, 4294901760
        %441 = vmatprep.subr.mxu0 %v440
        %v442 = vand.u32 %v290, 4294901760
        %443 = vmatpush1.msra.mxu0 %v442
        %v444 = vand.u32 %v295, 4294901760
        %445 = vmatprep.subr.mxu0 %v444
        %v446 = vand.u32 %v294, 4294901760
        %447 = vmatpush1.msra.mxu0 %v446
        %v448 = vand.u32 %v299, 4294901760
        %449 = vmatprep.subr.mxu0 %v448
        %v450 = vand.u32 %v298, 4294901760
        %451 = vmatpush1.msra.mxu0 %v450
        %v452 = vand.u32 %v303, 4294901760
        %453 = vmatprep.subr.mxu0 %v452
        %v454 = vand.u32 %v302, 4294901760
        %455 = vmatpush1.msra.mxu0 %v454
        %v456 = vand.u32 %v307, 4294901760
        %457 = vmatprep.subr.mxu0 %v456
        %v458 = vand.u32 %v306, 4294901760
        %459 = vmatpush1.msra.mxu0 %v458
        %v460 = vand.u32 %v311, 4294901760
        %461 = vmatprep.subr.mxu0 %v460
        %v462 = vand.u32 %v310, 4294901760
        %463 = vmatpush1.msra.mxu0 %v462
        %v464 = vand.u32 %v315, 4294901760
        %465 = vmatprep.subr.mxu0 %v464
        %v466 = vand.u32 %v314, 4294901760
        %467 = vmatpush1.msra.mxu0 %v466
        %v468 = vand.u32 %v319, 4294901760
        %469 = vmatprep.subr.mxu0 %v468
        %v470 = vand.u32 %v318, 4294901760
        %471 = vmatpush1.msra.mxu0 %v470
        %v472 = vand.u32 %v323, 4294901760
        %473 = vmatprep.subr.mxu0 %v472
        %v474 = vand.u32 %v322, 4294901760
        %475 = vmatpush1.msra.mxu0 %v474
        %v476 = vand.u32 %v327, 4294901760
        %477 = vmatprep.subr.mxu0 %v476
        %v478 = vand.u32 %v326, 4294901760
        %479 = vmatpush1.msra.mxu0 %v478
        %v480 = vand.u32 %v331, 4294901760
        %481 = vmatprep.subr.mxu0 %v480
        %v482 = vand.u32 %v330, 4294901760
        %483 = vmatpush1.msra.mxu0 %v482
        %v484 = vand.u32 %v335, 4294901760
        %485 = vmatprep.subr.mxu0 %v484
        %v486 = vand.u32 %v334, 4294901760
        %487 = vmatpush1.msra.mxu0 %v486
        %v488 = vand.u32 %v339, 4294901760
        %489 = vmatprep.subr.mxu0 %v488
        %v490 = vand.u32 %v338, 4294901760
        %491 = vmatpush1.msra.mxu0 %v490
        %v492 = vand.u32 %v343, 4294901760
        %493 = vmatprep.subr.mxu0 %v492
        %v494 = vand.u32 %v342, 4294901760
        %495 = vmatpush1.msra.mxu0 %v494
        %496 = vmatprep.subr.mxu0 0.0
        %497 = vmatpush1.msra.mxu0 0.0
        %498 = vmatprep.subr.mxu0 0.0
        %499 = vmatpush1.msra.mxu0 0.0
        %500 = vmatprep.subr.mxu0 0.0
        %501 = vmatpush1.msra.mxu0 0.0
        %502 = vmatprep.subr.mxu0 0.0
        %503 = vmatpush1.msra.mxu0 0.0
        %504 = vmatprep.subr.mxu0 0.0
        %505 = vmatpush1.msra.mxu0 0.0
        %506 = vmatprep.subr.mxu0 0.0
        %507 = vmatpush1.msra.mxu0 0.0
        %508 = vmatprep.subr.mxu0 0.0
        %509 = vmatpush1.msra.mxu0 0.0
        %510 = vmatprep.subr.mxu0 0.0
        %511 = vmatpush1.msra.mxu0 0.0
        %512 = vmatprep.subr.mxu0 0.0
        %513 = vmatpush1.msra.mxu0 0.0
        %514 = vmatprep.subr.mxu0 0.0
        %515 = vmatpush1.msra.mxu0 0.0
        %516 = vmatprep.subr.mxu0 0.0
        %517 = vmatpush1.msra.mxu0 0.0
        %518 = vmatprep.subr.mxu0 0.0
        %519 = vmatpush1.msra.mxu0 0.0
        %520 = vmatprep.subr.mxu0 0.0
        %521 = vmatpush1.msra.mxu0 0.0
        %522 = vmatprep.subr.mxu0 0.0
        %523 = vmatpush1.msra.mxu0 0.0
        %524 = vmatprep.subr.mxu0 0.0
        %525 = vmatpush1.msra.mxu0 0.0
        %526 = vmatprep.subr.mxu0 0.0
        %527 = vmatpush1.msra.mxu0 0.0
        %528 = vmatprep.mubr.f32.mxu0 0.0
        %v529 = vand.u32 %v274, 4294901760
        %v530 = vsub.f32 %v274, %v529
        %v531 = vand.u32 %v530, 4294901760
        %v532 = vsub.f32 %v530, %v531
        %v533 = vand.u32 %v532, 4294901760
        %534 = vmatmul.mubr.f32.gmra.mrb[0].mxu0 %v533
        %v535 = vpop.f32.mrb[0].mxu0
        %v536 = vadd.f32 %v415, %v535
        %v537 = vpop.f32.mrb[0].mxu0
        %v538 = vadd.f32 %v419, %v537
        %539 = vmatprep.mubr.f32.mxu0 0.0
        %v540 = vand.u32 %v275, 4294901760
        %v541 = vsub.f32 %v275, %v540
        %v542 = vand.u32 %v541, 4294901760
        %v543 = vsub.f32 %v541, %v542
        %v544 = vand.u32 %v543, 4294901760
        %545 = vmatmul.mubr.f32.gmra.mrb[0].mxu0 %v544
        %v546 = vpop.f32.mrb[0].mxu0
        %v547 = vadd.f32 %v415, %v546
        %v548 = vpop.f32.mrb[0].mxu0
        %v549 = vadd.f32 %v419, %v548
        %550 = vmatprep.mubr.f32.mxu0 0.0
        %v551 = vand.u32 %v276, 4294901760
        %v552 = vsub.f32 %v276, %v551
        %v553 = vand.u32 %v552, 4294901760
        %v554 = vsub.f32 %v552, %v553
        %v555 = vand.u32 %v554, 4294901760
        %556 = vmatmul.mubr.f32.gmra.mrb[0].mxu0 %v555
        %v557 = vpop.f32.mrb[0].mxu0
        %v558 = vadd.f32 %v415, %v557
        %v559 = vpop.f32.mrb[0].mxu0
        %v560 = vadd.f32 %v419, %v559
        %561 = vmatprep.mubr.f32.mxu0 0.0
        %v562 = vand.u32 %v277, 4294901760
        %v563 = vsub.f32 %v277, %v562
        %v564 = vand.u32 %v563, 4294901760
        %v565 = vsub.f32 %v563, %v564
        %v566 = vand.u32 %v565, 4294901760
        %567 = vmatmul.mubr.f32.gmra.mrb[0].mxu0 %v566
        %v568 = vpop.f32.mrb[0].mxu0
        %v569 = vadd.f32 %v415, %v568
        %v570 = vpop.f32.mrb[0].mxu0
        %v571 = vadd.f32 %v419, %v570
        %572 = vmatprep.mubr.f32.mxu0 0.0
        %v573 = vand.u32 %v278, 4294901760
        %v574 = vsub.f32 %v278, %v573
        %v575 = vand.u32 %v574, 4294901760
        %v576 = vsub.f32 %v574, %v575
        %v577 = vand.u32 %v576, 4294901760
        %578 = vmatmul.mubr.f32.gmra.mrb[0].mxu0 %v577
        %v579 = vpop.f32.mrb[0].mxu0
        %v580 = vadd.f32 %v415, %v579
        %v581 = vpop.f32.mrb[0].mxu0
        %v582 = vadd.f32 %v419, %v581
        %583 = vmatprep.mubr.f32.mxu0 0.0
        %v584 = vand.u32 %v279, 4294901760
        %v585 = vsub.f32 %v279, %v584
        %v586 = vand.u32 %v585, 4294901760
        %v587 = vsub.f32 %v585, %v586
        %v588 = vand.u32 %v587, 4294901760
        %589 = vmatmul.mubr.f32.gmra.mrb[0].mxu0 %v588
        %v590 = vpop.f32.mrb[0].mxu0
        %v591 = vadd.f32 %v415, %v590
        %v592 = vpop.f32.mrb[0].mxu0
        %v593 = vadd.f32 %v419, %v592
        %594 = vmatprep.mubr.f32.mxu0 0.0
        %v595 = vand.u32 %v280, 4294901760
        %v596 = vsub.f32 %v280, %v595
        %v597 = vand.u32 %v596, 4294901760
        %v598 = vsub.f32 %v596, %v597
        %v599 = vand.u32 %v598, 4294901760
        %600 = vmatmul.mubr.f32.gmra.mrb[0].mxu0 %v599
        %v601 = vpop.f32.mrb[0].mxu0
        %v602 = vadd.f32 %v415, %v601
        %v603 = vpop.f32.mrb[0].mxu0
        %v604 = vadd.f32 %v419, %v603
        %605 = vmatprep.mubr.f32.mxu0 0.0
        %v606 = vand.u32 %v281, 4294901760
        %v607 = vsub.f32 %v281, %v606
        %v608 = vand.u32 %v607, 4294901760
        %v609 = vsub.f32 %v607, %v608
        %v610 = vand.u32 %v609, 4294901760
        %611 = vmatmul.mubr.f32.gmra.mrb[0].mxu0 %v610
        %v612 = vpop.f32.mrb[0].mxu0
        %v613 = vadd.f32 %v415, %v612
        %v614 = vpop.f32.mrb[0].mxu0
        %v615 = vadd.f32 %v419, %v614
        %616 = vdwg.mxu0
        %v617 = vand.u32 %v283, 4294901760
        %v618 = vsub.f32 %v283, %v617
        %v619 = vand.u32 %v618, 4294901760
        %v620 = vsub.f32 %v618, %v619
        %v621 = vand.u32 %v620, 4294901760
        %622 = vmatprep.subr.mxu0 %v621
        %v623 = vand.u32 %v282, 4294901760
        %v624 = vsub.f32 %v282, %v623
        %v625 = vand.u32 %v624, 4294901760
        %v626 = vsub.f32 %v624, %v625
        %v627 = vand.u32 %v626, 4294901760
        %628 = vmatpush1.msra.mxu0 %v627
        %v629 = vand.u32 %v287, 4294901760
        %v630 = vsub.f32 %v287, %v629
        %v631 = vand.u32 %v630, 4294901760
        %v632 = vsub.f32 %v630, %v631
        %v633 = vand.u32 %v632, 4294901760
        %634 = vmatprep.subr.mxu0 %v633
        %v635 = vand.u32 %v286, 4294901760
        %v636 = vsub.f32 %v286, %v635
        %v637 = vand.u32 %v636, 4294901760
        %v638 = vsub.f32 %v636, %v637
        %v639 = vand.u32 %v638, 4294901760
        %640 = vmatpush1.msra.mxu0 %v639
        %v641 = vand.u32 %v291, 4294901760
        %v642 = vsub.f32 %v291, %v641
        %v643 = vand.u32 %v642, 4294901760
        %v644 = vsub.f32 %v642, %v643
        %v645 = vand.u32 %v644, 4294901760
        %646 = vmatprep.subr.mxu0 %v645
        %v647 = vand.u32 %v290, 4294901760
        %v648 = vsub.f32 %v290, %v647
        %v649 = vand.u32 %v648, 4294901760
        %v650 = vsub.f32 %v648, %v649
        %v651 = vand.u32 %v650, 4294901760
        %652 = vmatpush1.msra.mxu0 %v651
        %v653 = vand.u32 %v295, 4294901760
        %v654 = vsub.f32 %v295, %v653
        %v655 = vand.u32 %v654, 4294901760
        %v656 = vsub.f32 %v654, %v655
        %v657 = vand.u32 %v656, 4294901760
        %658 = vmatprep.subr.mxu0 %v657
        %v659 = vand.u32 %v294, 4294901760
        %v660 = vsub.f32 %v294, %v659
        %v661 = vand.u32 %v660, 4294901760
        %v662 = vsub.f32 %v660, %v661
        %v663 = vand.u32 %v662, 4294901760
        %664 = vmatpush1.msra.mxu0 %v663
        %v665 = vand.u32 %v299, 4294901760
        %v666 = vsub.f32 %v299, %v665
        %v667 = vand.u32 %v666, 4294901760
        %v668 = vsub.f32 %v666, %v667
        %v669 = vand.u32 %v668, 4294901760
        %670 = vmatprep.subr.mxu0 %v669
        %v671 = vand.u32 %v298, 4294901760
        %v672 = vsub.f32 %v298, %v671
        %v673 = vand.u32 %v672, 4294901760
        %v674 = vsub.f32 %v672, %v673
        %v675 = vand.u32 %v674, 4294901760
        %676 = vmatpush1.msra.mxu0 %v675
        %v677 = vand.u32 %v303, 4294901760
        %v678 = vsub.f32 %v303, %v677
        %v679 = vand.u32 %v678, 4294901760
        %v680 = vsub.f32 %v678, %v679
        %v681 = vand.u32 %v680, 4294901760
        %682 = vmatprep.subr.mxu0 %v681
        %v683 = vand.u32 %v302, 4294901760
        %v684 = vsub.f32 %v302, %v683
        %v685 = vand.u32 %v684, 4294901760
        %v686 = vsub.f32 %v684, %v685
        %v687 = vand.u32 %v686, 4294901760
        %688 = vmatpush1.msra.mxu0 %v687
        %v689 = vand.u32 %v307, 4294901760
        %v690 = vsub.f32 %v307, %v689
        %v691 = vand.u32 %v690, 4294901760
        %v692 = vsub.f32 %v690, %v691
        %v693 = vand.u32 %v692, 4294901760
        %694 = vmatprep.subr.mxu0 %v693
        %v695 = vand.u32 %v306, 4294901760
        %v696 = vsub.f32 %v306, %v695
        %v697 = vand.u32 %v696, 4294901760
        %v698 = vsub.f32 %v696, %v697
        %v699 = vand.u32 %v698, 4294901760
        %700 = vmatpush1.msra.mxu0 %v699
        %v701 = vand.u32 %v311, 4294901760
        %v702 = vsub.f32 %v311, %v701
        %v703 = vand.u32 %v702, 4294901760
        %v704 = vsub.f32 %v702, %v703
        %v705 = vand.u32 %v704, 4294901760
        %706 = vmatprep.subr.mxu0 %v705
        %v707 = vand.u32 %v310, 4294901760
        %v708 = vsub.f32 %v310, %v707
        %v709 = vand.u32 %v708, 4294901760
        %v710 = vsub.f32 %v708, %v709
        %v711 = vand.u32 %v710, 4294901760
        %712 = vmatpush1.msra.mxu0 %v711
        %v713 = vand.u32 %v315, 4294901760
        %v714 = vsub.f32 %v315, %v713
        %v715 = vand.u32 %v714, 4294901760
        %v716 = vsub.f32 %v714, %v715
        %v717 = vand.u32 %v716, 4294901760
        %718 = vmatprep.subr.mxu0 %v717
        %v719 = vand.u32 %v314, 4294901760
        %v720 = vsub.f32 %v314, %v719
        %v721 = vand.u32 %v720, 4294901760
        %v722 = vsub.f32 %v720, %v721
        %v723 = vand.u32 %v722, 4294901760
        %724 = vmatpush1.msra.mxu0 %v723
        %v725 = vand.u32 %v319, 4294901760
        %v726 = vsub.f32 %v319, %v725
        %v727 = vand.u32 %v726, 4294901760
        %v728 = vsub.f32 %v726, %v727
        %v729 = vand.u32 %v728, 4294901760
        %730 = vmatprep.subr.mxu0 %v729
        %v731 = vand.u32 %v318, 4294901760
        %v732 = vsub.f32 %v318, %v731
        %v733 = vand.u32 %v732, 4294901760
        %v734 = vsub.f32 %v732, %v733
        %v735 = vand.u32 %v734, 4294901760
        %736 = vmatpush1.msra.mxu0 %v735
        %v737 = vand.u32 %v323, 4294901760
        %v738 = vsub.f32 %v323, %v737
        %v739 = vand.u32 %v738, 4294901760
        %v740 = vsub.f32 %v738, %v739
        %v741 = vand.u32 %v740, 4294901760
        %742 = vmatprep.subr.mxu0 %v741
        %v743 = vand.u32 %v322, 4294901760
        %v744 = vsub.f32 %v322, %v743
        %v745 = vand.u32 %v744, 4294901760
        %v746 = vsub.f32 %v744, %v745
        %v747 = vand.u32 %v746, 4294901760
        %748 = vmatpush1.msra.mxu0 %v747
        %v749 = vand.u32 %v327, 4294901760
        %v750 = vsub.f32 %v327, %v749
        %v751 = vand.u32 %v750, 4294901760
        %v752 = vsub.f32 %v750, %v751
        %v753 = vand.u32 %v752, 4294901760
        %754 = vmatprep.subr.mxu0 %v753
        %v755 = vand.u32 %v326, 4294901760
        %v756 = vsub.f32 %v326, %v755
        %v757 = vand.u32 %v756, 4294901760
        %v758 = vsub.f32 %v756, %v757
        %v759 = vand.u32 %v758, 4294901760
        %760 = vmatpush1.msra.mxu0 %v759
        %v761 = vand.u32 %v331, 4294901760
        %v762 = vsub.f32 %v331, %v761
        %v763 = vand.u32 %v762, 4294901760
        %v764 = vsub.f32 %v762, %v763
        %v765 = vand.u32 %v764, 4294901760
        %766 = vmatprep.subr.mxu0 %v765
        %v767 = vand.u32 %v330, 4294901760
        %v768 = vsub.f32 %v330, %v767
        %v769 = vand.u32 %v768, 4294901760
        %v770 = vsub.f32 %v768, %v769
        %v771 = vand.u32 %v770, 4294901760
        %772 = vmatpush1.msra.mxu0 %v771
        %v773 = vand.u32 %v335, 4294901760
        %v774 = vsub.f32 %v335, %v773
        %v775 = vand.u32 %v774, 4294901760
        %v776 = vsub.f32 %v774, %v775
        %v777 = vand.u32 %v776, 4294901760
        %778 = vmatprep.subr.mxu0 %v777
        %v779 = vand.u32 %v334, 4294901760
        %v780 = vsub.f32 %v334, %v779
        %v781 = vand.u32 %v780, 4294901760
        %v782 = vsub.f32 %v780, %v781
        %v783 = vand.u32 %v782, 4294901760
        %784 = vmatpush1.msra.mxu0 %v783
        %v785 = vand.u32 %v339, 4294901760
        %v786 = vsub.f32 %v339, %v785
        %v787 = vand.u32 %v786, 4294901760
        %v788 = vsub.f32 %v786, %v787
        %v789 = vand.u32 %v788, 4294901760
        %790 = vmatprep.subr.mxu0 %v789
        %v791 = vand.u32 %v338, 4294901760
        %v792 = vsub.f32 %v338, %v791
        %v793 = vand.u32 %v792, 4294901760
        %v794 = vsub.f32 %v792, %v793
        %v795 = vand.u32 %v794, 4294901760
        %796 = vmatpush1.msra.mxu0 %v795
        %v797 = vand.u32 %v343, 4294901760
        %v798 = vsub.f32 %v343, %v797
        %v799 = vand.u32 %v798, 4294901760
        %v800 = vsub.f32 %v798, %v799
        %v801 = vand.u32 %v800, 4294901760
        %802 = vmatprep.subr.mxu0 %v801
        %v803 = vand.u32 %v342, 4294901760
        %v804 = vsub.f32 %v342, %v803
        %v805 = vand.u32 %v804, 4294901760
        %v806 = vsub.f32 %v804, %v805
        %v807 = vand.u32 %v806, 4294901760
        %808 = vmatpush1.msra.mxu0 %v807
        %809 = vmatprep.subr.mxu0 0.0
        %810 = vmatpush1.msra.mxu0 0.0
        %811 = vmatprep.subr.mxu0 0.0
        %812 = vmatpush1.msra.mxu0 0.0
        %813 = vmatprep.subr.mxu0 0.0
        %814 = vmatpush1.msra.mxu0 0.0
        %815 = vmatprep.subr.mxu0 0.0
        %816 = vmatpush1.msra.mxu0 0.0
        %817 = vmatprep.subr.mxu0 0.0
        %818 = vmatpush1.msra.mxu0 0.0
        %819 = vmatprep.subr.mxu0 0.0
        %820 = vmatpush1.msra.mxu0 0.0
        %821 = vmatprep.subr.mxu0 0.0
        %822 = vmatpush1.msra.mxu0 0.0
        %823 = vmatprep.subr.mxu0 0.0
        %824 = vmatpush1.msra.mxu0 0.0
        %825 = vmatprep.subr.mxu0 0.0
        %826 = vmatpush1.msra.mxu0 0.0
        %827 = vmatprep.subr.mxu0 0.0
        %828 = vmatpush1.msra.mxu0 0.0
        %829 = vmatprep.subr.mxu0 0.0
        %830 = vmatpush1.msra.mxu0 0.0
        %831 = vmatprep.subr.mxu0 0.0
        %832 = vmatpush1.msra.mxu0 0.0
        %833 = vmatprep.subr.mxu0 0.0
        %834 = vmatpush1.msra.mxu0 0.0
        %835 = vmatprep.subr.mxu0 0.0
        %836 = vmatpush1.msra.mxu0 0.0
        %837 = vmatprep.subr.mxu0 0.0
        %838 = vmatpush1.msra.mxu0 0.0
        %839 = vmatprep.subr.mxu0 0.0
        %840 = vmatpush1.msra.mxu0 0.0
        %841 = vmatprep.mubr.f32.mxu0 0.0
        %v842 = vand.u32 %v274, 4294901760
        %843 = vmatmul.mubr.f32.gmra.mrb[0].mxu0 %v842
        %v844 = vpop.f32.mrb[0].mxu0
        %v845 = vadd.f32 %v536, %v844
        %v846 = vpop.f32.mrb[0].mxu0
        %v847 = vadd.f32 %v538, %v846
        %848 = vmatprep.mubr.f32.mxu0 0.0
        %v849 = vand.u32 %v275, 4294901760
        %850 = vmatmul.mubr.f32.gmra.mrb[0].mxu0 %v849
        %v851 = vpop.f32.mrb[0].mxu0
        %v852 = vadd.f32 %v547, %v851
        %v853 = vpop.f32.mrb[0].mxu0
        %v854 = vadd.f32 %v549, %v853
        %855 = vmatprep.mubr.f32.mxu0 0.0
        %v856 = vand.u32 %v276, 4294901760
        %857 = vmatmul.mubr.f32.gmra.mrb[0].mxu0 %v856
        %v858 = vpop.f32.mrb[0].mxu0
        %v859 = vadd.f32 %v558, %v858
        %v860 = vpop.f32.mrb[0].mxu0
        %v861 = vadd.f32 %v560, %v860
        %862 = vmatprep.mubr.f32.mxu0 0.0
        %v863 = vand.u32 %v277, 4294901760
        %864 = vmatmul.mubr.f32.gmra.mrb[0].mxu0 %v863
        %v865 = vpop.f32.mrb[0].mxu0
        %v866 = vadd.f32 %v569, %v865
        %v867 = vpop.f32.mrb[0].mxu0
        %v868 = vadd.f32 %v571, %v867
        %869 = vmatprep.mubr.f32.mxu0 0.0
        %v870 = vand.u32 %v278, 4294901760
        %871 = vmatmul.mubr.f32.gmra.mrb[0].mxu0 %v870
        %v872 = vpop.f32.mrb[0].mxu0
        %v873 = vadd.f32 %v580, %v872
        %v874 = vpop.f32.mrb[0].mxu0
        %v875 = vadd.f32 %v582, %v874
        %876 = vmatprep.mubr.f32.mxu0 0.0
        %v877 = vand.u32 %v279, 4294901760
        %878 = vmatmul.mubr.f32.gmra.mrb[0].mxu0 %v877
        %v879 = vpop.f32.mrb[0].mxu0
        %v880 = vadd.f32 %v591, %v879
        %v881 = vpop.f32.mrb[0].mxu0
        %v882 = vadd.f32 %v593, %v881
        %883 = vmatprep.mubr.f32.mxu0 0.0
        %v884 = vand.u32 %v280, 4294901760
        %885 = vmatmul.mubr.f32.gmra.mrb[0].mxu0 %v884
        %v886 = vpop.f32.mrb[0].mxu0
        %v887 = vadd.f32 %v602, %v886
        %v888 = vpop.f32.mrb[0].mxu0
        %v889 = vadd.f32 %v604, %v888
        %890 = vmatprep.mubr.f32.mxu0 0.0
        %v891 = vand.u32 %v281, 4294901760
        %892 = vmatmul.mubr.f32.gmra.mrb[0].mxu0 %v891
        %v893 = vpop.f32.mrb[0].mxu0
        %v894 = vadd.f32 %v613, %v893
        %v895 = vpop.f32.mrb[0].mxu0
        %v896 = vadd.f32 %v615, %v895
        %897 = vdwg.mxu0
        %v898 = vand.u32 %v283, 4294901760
        %v899 = vsub.f32 %v283, %v898
        %900 = vmatprep.subr.mxu0 %v899
        %v901 = vand.u32 %v282, 4294901760
        %v902 = vsub.f32 %v282, %v901
        %903 = vmatpush1.msra.mxu0 %v902
        %v904 = vand.u32 %v287, 4294901760
        %v905 = vsub.f32 %v287, %v904
        %906 = vmatprep.subr.mxu0 %v905
        %v907 = vand.u32 %v286, 4294901760
        %v908 = vsub.f32 %v286, %v907
        %909 = vmatpush1.msra.mxu0 %v908
        %v910 = vand.u32 %v291, 4294901760
        %v911 = vsub.f32 %v291, %v910
        %912 = vmatprep.subr.mxu0 %v911
        %v913 = vand.u32 %v290, 4294901760
        %v914 = vsub.f32 %v290, %v913
        %915 = vmatpush1.msra.mxu0 %v914
        %v916 = vand.u32 %v295, 4294901760
        %v917 = vsub.f32 %v295, %v916
        %918 = vmatprep.subr.mxu0 %v917
        %v919 = vand.u32 %v294, 4294901760
        %v920 = vsub.f32 %v294, %v919
        %921 = vmatpush1.msra.mxu0 %v920
        %v922 = vand.u32 %v299, 4294901760
        %v923 = vsub.f32 %v299, %v922
        %924 = vmatprep.subr.mxu0 %v923
        %v925 = vand.u32 %v298, 4294901760
        %v926 = vsub.f32 %v298, %v925
        %927 = vmatpush1.msra.mxu0 %v926
        %v928 = vand.u32 %v303, 4294901760
        %v929 = vsub.f32 %v303, %v928
        %930 = vmatprep.subr.mxu0 %v929
        %v931 = vand.u32 %v302, 4294901760
        %v932 = vsub.f32 %v302, %v931
        %933 = vmatpush1.msra.mxu0 %v932
        %v934 = vand.u32 %v307, 4294901760
        %v935 = vsub.f32 %v307, %v934
        %936 = vmatprep.subr.mxu0 %v935
        %v937 = vand.u32 %v306, 4294901760
        %v938 = vsub.f32 %v306, %v937
        %939 = vmatpush1.msra.mxu0 %v938
        %v940 = vand.u32 %v311, 4294901760
        %v941 = vsub.f32 %v311, %v940
        %942 = vmatprep.subr.mxu0 %v941
        %v943 = vand.u32 %v310, 4294901760
        %v944 = vsub.f32 %v310, %v943
        %945 = vmatpush1.msra.mxu0 %v944
        %v946 = vand.u32 %v315, 4294901760
        %v947 = vsub.f32 %v315, %v946
        %948 = vmatprep.subr.mxu0 %v947
        %v949 = vand.u32 %v314, 4294901760
        %v950 = vsub.f32 %v314, %v949
        %951 = vmatpush1.msra.mxu0 %v950
        %v952 = vand.u32 %v319, 4294901760
        %v953 = vsub.f32 %v319, %v952
        %954 = vmatprep.subr.mxu0 %v953
        %v955 = vand.u32 %v318, 4294901760
        %v956 = vsub.f32 %v318, %v955
        %957 = vmatpush1.msra.mxu0 %v956
        %v958 = vand.u32 %v323, 4294901760
        %v959 = vsub.f32 %v323, %v958
        %960 = vmatprep.subr.mxu0 %v959
        %v961 = vand.u32 %v322, 4294901760
        %v962 = vsub.f32 %v322, %v961
        %963 = vmatpush1.msra.mxu0 %v962
        %v964 = vand.u32 %v327, 4294901760
        %v965 = vsub.f32 %v327, %v964
        %966 = vmatprep.subr.mxu0 %v965
        %v967 = vand.u32 %v326, 4294901760
        %v968 = vsub.f32 %v326, %v967
        %969 = vmatpush1.msra.mxu0 %v968
        %v970 = vand.u32 %v331, 4294901760
        %v971 = vsub.f32 %v331, %v970
        %972 = vmatprep.subr.mxu0 %v971
        %v973 = vand.u32 %v330, 4294901760
        %v974 = vsub.f32 %v330, %v973
        %975 = vmatpush1.msra.mxu0 %v974
        %v976 = vand.u32 %v335, 4294901760
        %v977 = vsub.f32 %v335, %v976
        %978 = vmatprep.subr.mxu0 %v977
        %v979 = vand.u32 %v334, 4294901760
        %v980 = vsub.f32 %v334, %v979
        %981 = vmatpush1.msra.mxu0 %v980
        %v982 = vand.u32 %v339, 4294901760
        %v983 = vsub.f32 %v339, %v982
        %984 = vmatprep.subr.mxu0 %v983
        %v985 = vand.u32 %v338, 4294901760
        %v986 = vsub.f32 %v338, %v985
        %987 = vmatpush1.msra.mxu0 %v986
        %v988 = vand.u32 %v343, 4294901760
        %v989 = vsub.f32 %v343, %v988
        %990 = vmatprep.subr.mxu0 %v989
        %v991 = vand.u32 %v342, 4294901760
        %v992 = vsub.f32 %v342, %v991
        %993 = vmatpush1.msra.mxu0 %v992
        %994 = vmatprep.subr.mxu0 0.0
        %995 = vmatpush1.msra.mxu0 0.0
        %996 = vmatprep.subr.mxu0 0.0
        %997 = vmatpush1.msra.mxu0 0.0
        %998 = vmatprep.subr.mxu0 0.0
        %999 = vmatpush1.msra.mxu0 0.0
        %1000 = vmatprep.subr.mxu0 0.0
        %1001 = vmatpush1.msra.mxu0 0.0
        %1002 = vmatprep.subr.mxu0 0.0
        %1003 = vmatpush1.msra.mxu0 0.0
        %1004 = vmatprep.subr.mxu0 0.0
        %1005 = vmatpush1.msra.mxu0 0.0
        %1006 = vmatprep.subr.mxu0 0.0
        %1007 = vmatpush1.msra.mxu0 0.0
        %1008 = vmatprep.subr.mxu0 0.0
        %1009 = vmatpush1.msra.mxu0 0.0
        %1010 = vmatprep.subr.mxu0 0.0
        %1011 = vmatpush1.msra.mxu0 0.0
        %1012 = vmatprep.subr.mxu0 0.0
        %1013 = vmatpush1.msra.mxu0 0.0
        %1014 = vmatprep.subr.mxu0 0.0
        %1015 = vmatpush1.msra.mxu0 0.0
        %1016 = vmatprep.subr.mxu0 0.0
        %1017 = vmatpush1.msra.mxu0 0.0
        %1018 = vmatprep.subr.mxu0 0.0
        %1019 = vmatpush1.msra.mxu0 0.0
        %1020 = vmatprep.subr.mxu0 0.0
        %1021 = vmatpush1.msra.mxu0 0.0
        %1022 = vmatprep.subr.mxu0 0.0
        %1023 = vmatpush1.msra.mxu0 0.0
        %1024 = vmatprep.subr.mxu0 0.0
        %1025 = vmatpush1.msra.mxu0 0.0
        %1026 = vmatprep.mubr.f32.mxu0 0.0
        %v1027 = vand.u32 %v274, 4294901760
        %v1028 = vsub.f32 %v274, %v1027
        %1029 = vmatmul.mubr.f32.gmra.mrb[0].mxu0 %v1028
        %v1030 = vpop.f32.mrb[0].mxu0
        %v1031 = vadd.f32 %v845, %v1030
        %v1032 = vpop.f32.mrb[0].mxu0
        %v1033 = vadd.f32 %v847, %v1032
        %1034 = vmatprep.mubr.f32.mxu0 0.0
        %v1035 = vand.u32 %v275, 4294901760
        %v1036 = vsub.f32 %v275, %v1035
        %1037 = vmatmul.mubr.f32.gmra.mrb[0].mxu0 %v1036
        %v1038 = vpop.f32.mrb[0].mxu0
        %v1039 = vadd.f32 %v852, %v1038
        %v1040 = vpop.f32.mrb[0].mxu0
        %v1041 = vadd.f32 %v854, %v1040
        %1042 = vmatprep.mubr.f32.mxu0 0.0
        %v1043 = vand.u32 %v276, 4294901760
        %v1044 = vsub.f32 %v276, %v1043
        %1045 = vmatmul.mubr.f32.gmra.mrb[0].mxu0 %v1044
        %v1046 = vpop.f32.mrb[0].mxu0
        %v1047 = vadd.f32 %v859, %v1046
        %v1048 = vpop.f32.mrb[0].mxu0
        %v1049 = vadd.f32 %v861, %v1048
        %1050 = vmatprep.mubr.f32.mxu0 0.0
        %v1051 = vand.u32 %v277, 4294901760
        %v1052 = vsub.f32 %v277, %v1051
        %1053 = vmatmul.mubr.f32.gmra.mrb[0].mxu0 %v1052
        %v1054 = vpop.f32.mrb[0].mxu0
        %v1055 = vadd.f32 %v866, %v1054
        %v1056 = vpop.f32.mrb[0].mxu0
        %v1057 = vadd.f32 %v868, %v1056
        %1058 = vmatprep.mubr.f32.mxu0 0.0
        %v1059 = vand.u32 %v278, 4294901760
        %v1060 = vsub.f32 %v278, %v1059
        %1061 = vmatmul.mubr.f32.gmra.mrb[0].mxu0 %v1060
        %v1062 = vpop.f32.mrb[0].mxu0
        %v1063 = vadd.f32 %v873, %v1062
        %v1064 = vpop.f32.mrb[0].mxu0
        %v1065 = vadd.f32 %v875, %v1064
        %1066 = vmatprep.mubr.f32.mxu0 0.0
        %v1067 = vand.u32 %v279, 4294901760
        %v1068 = vsub.f32 %v279, %v1067
        %1069 = vmatmul.mubr.f32.gmra.mrb[0].mxu0 %v1068
        %v1070 = vpop.f32.mrb[0].mxu0
        %v1071 = vadd.f32 %v880, %v1070
        %v1072 = vpop.f32.mrb[0].mxu0
        %v1073 = vadd.f32 %v882, %v1072
        %1074 = vmatprep.mubr.f32.mxu0 0.0
        %v1075 = vand.u32 %v280, 4294901760
        %v1076 = vsub.f32 %v280, %v1075
        %1077 = vmatmul.mubr.f32.gmra.mrb[0].mxu0 %v1076
        %v1078 = vpop.f32.mrb[0].mxu0
        %v1079 = vadd.f32 %v887, %v1078
        %v1080 = vpop.f32.mrb[0].mxu0
        %v1081 = vadd.f32 %v889, %v1080
        %1082 = vmatprep.mubr.f32.mxu0 0.0
        %v1083 = vand.u32 %v281, 4294901760
        %v1084 = vsub.f32 %v281, %v1083
        %1085 = vmatmul.mubr.f32.gmra.mrb[0].mxu0 %v1084
        %v1086 = vpop.f32.mrb[0].mxu0
        %v1087 = vadd.f32 %v894, %v1086
        %v1088 = vpop.f32.mrb[0].mxu0
        %v1089 = vadd.f32 %v896, %v1088
        %1090 = vdwg.mxu0
        %v1091 = vand.u32 %v283, 4294901760
        %1092 = vmatprep.subr.mxu0 %v1091
        %v1093 = vand.u32 %v282, 4294901760
        %1094 = vmatpush1.msra.mxu0 %v1093
        %v1095 = vand.u32 %v287, 4294901760
        %1096 = vmatprep.subr.mxu0 %v1095
        %v1097 = vand.u32 %v286, 4294901760
        %1098 = vmatpush1.msra.mxu0 %v1097
        %v1099 = vand.u32 %v291, 4294901760
        %1100 = vmatprep.subr.mxu0 %v1099
        %v1101 = vand.u32 %v290, 4294901760
        %1102 = vmatpush1.msra.mxu0 %v1101
        %v1103 = vand.u32 %v295, 4294901760
        %1104 = vmatprep.subr.mxu0 %v1103
        %v1105 = vand.u32 %v294, 4294901760
        %1106 = vmatpush1.msra.mxu0 %v1105
        %v1107 = vand.u32 %v299, 4294901760
        %1108 = vmatprep.subr.mxu0 %v1107
        %v1109 = vand.u32 %v298, 4294901760
        %1110 = vmatpush1.msra.mxu0 %v1109
        %v1111 = vand.u32 %v303, 4294901760
        %1112 = vmatprep.subr.mxu0 %v1111
        %v1113 = vand.u32 %v302, 4294901760
        %1114 = vmatpush1.msra.mxu0 %v1113
        %v1115 = vand.u32 %v307, 4294901760
        %1116 = vmatprep.subr.mxu0 %v1115
        %v1117 = vand.u32 %v306, 4294901760
        %1118 = vmatpush1.msra.mxu0 %v1117
        %v1119 = vand.u32 %v311, 4294901760
        %1120 = vmatprep.subr.mxu0 %v1119
        %v1121 = vand.u32 %v310, 4294901760
        %1122 = vmatpush1.msra.mxu0 %v1121
        %v1123 = vand.u32 %v315, 4294901760
        %1124 = vmatprep.subr.mxu0 %v1123
        %v1125 = vand.u32 %v314, 4294901760
        %1126 = vmatpush1.msra.mxu0 %v1125
        %v1127 = vand.u32 %v319, 4294901760
        %1128 = vmatprep.subr.mxu0 %v1127
        %v1129 = vand.u32 %v318, 4294901760
        %1130 = vmatpush1.msra.mxu0 %v1129
        %v1131 = vand.u32 %v323, 4294901760
        %1132 = vmatprep.subr.mxu0 %v1131
        %v1133 = vand.u32 %v322, 4294901760
        %1134 = vmatpush1.msra.mxu0 %v1133
        %v1135 = vand.u32 %v327, 4294901760
        %1136 = vmatprep.subr.mxu0 %v1135
        %v1137 = vand.u32 %v326, 4294901760
        %1138 = vmatpush1.msra.mxu0 %v1137
        %v1139 = vand.u32 %v331, 4294901760
        %1140 = vmatprep.subr.mxu0 %v1139
        %v1141 = vand.u32 %v330, 4294901760
        %1142 = vmatpush1.msra.mxu0 %v1141
        %v1143 = vand.u32 %v335, 4294901760
        %1144 = vmatprep.subr.mxu0 %v1143
        %v1145 = vand.u32 %v334, 4294901760
        %1146 = vmatpush1.msra.mxu0 %v1145
        %v1147 = vand.u32 %v339, 4294901760
        %1148 = vmatprep.subr.mxu0 %v1147
        %v1149 = vand.u32 %v338, 4294901760
        %1150 = vmatpush1.msra.mxu0 %v1149
        %v1151 = vand.u32 %v343, 4294901760
        %1152 = vmatprep.subr.mxu0 %v1151
        %v1153 = vand.u32 %v342, 4294901760
        %1154 = vmatpush1.msra.mxu0 %v1153
        %1155 = vmatprep.subr.mxu0 0.0
        %1156 = vmatpush1.msra.mxu0 0.0
        %1157 = vmatprep.subr.mxu0 0.0
        %1158 = vmatpush1.msra.mxu0 0.0
        %1159 = vmatprep.subr.mxu0 0.0
        %1160 = vmatpush1.msra.mxu0 0.0
        %1161 = vmatprep.subr.mxu0 0.0
        %1162 = vmatpush1.msra.mxu0 0.0
        %1163 = vmatprep.subr.mxu0 0.0
        %1164 = vmatpush1.msra.mxu0 0.0
        %1165 = vmatprep.subr.mxu0 0.0
        %1166 = vmatpush1.msra.mxu0 0.0
        %1167 = vmatprep.subr.mxu0 0.0
        %1168 = vmatpush1.msra.mxu0 0.0
        %1169 = vmatprep.subr.mxu0 0.0
        %1170 = vmatpush1.msra.mxu0 0.0
        %1171 = vmatprep.subr.mxu0 0.0
        %1172 = vmatpush1.msra.mxu0 0.0
        %1173 = vmatprep.subr.mxu0 0.0
        %1174 = vmatpush1.msra.mxu0 0.0
        %1175 = vmatprep.subr.mxu0 0.0
        %1176 = vmatpush1.msra.mxu0 0.0
        %1177 = vmatprep.subr.mxu0 0.0
        %1178 = vmatpush1.msra.mxu0 0.0
        %1179 = vmatprep.subr.mxu0 0.0
        %1180 = vmatpush1.msra.mxu0 0.0
        %1181 = vmatprep.subr.mxu0 0.0
        %1182 = vmatpush1.msra.mxu0 0.0
        %1183 = vmatprep.subr.mxu0 0.0
        %1184 = vmatpush1.msra.mxu0 0.0
        %1185 = vmatprep.subr.mxu0 0.0
        %1186 = vmatpush1.msra.mxu0 0.0
        %1187 = vmatprep.mubr.f32.mxu0 0.0
        %v1188 = vand.u32 %v274, 4294901760
        %v1189 = vsub.f32 %v274, %v1188
        %v1190 = vand.u32 %v1189, 4294901760
        %1191 = vmatmul.mubr.f32.gmra.mrb[0].mxu0 %v1190
        %v1192 = vpop.f32.mrb[0].mxu0
        %v1193 = vadd.f32 %v1031, %v1192
        %v1194 = vpop.f32.mrb[0].mxu0
        %v1195 = vadd.f32 %v1033, %v1194
        %1196 = vmatprep.mubr.f32.mxu0 0.0
        %v1197 = vand.u32 %v275, 4294901760
        %v1198 = vsub.f32 %v275, %v1197
        %v1199 = vand.u32 %v1198, 4294901760
        %1200 = vmatmul.mubr.f32.gmra.mrb[0].mxu0 %v1199
        %v1201 = vpop.f32.mrb[0].mxu0
        %v1202 = vadd.f32 %v1039, %v1201
        %v1203 = vpop.f32.mrb[0].mxu0
        %v1204 = vadd.f32 %v1041, %v1203
        %1205 = vmatprep.mubr.f32.mxu0 0.0
        %v1206 = vand.u32 %v276, 4294901760
        %v1207 = vsub.f32 %v276, %v1206
        %v1208 = vand.u32 %v1207, 4294901760
        %1209 = vmatmul.mubr.f32.gmra.mrb[0].mxu0 %v1208
        %v1210 = vpop.f32.mrb[0].mxu0
        %v1211 = vadd.f32 %v1047, %v1210
        %v1212 = vpop.f32.mrb[0].mxu0
        %v1213 = vadd.f32 %v1049, %v1212
        %1214 = vmatprep.mubr.f32.mxu0 0.0
        %v1215 = vand.u32 %v277, 4294901760
        %v1216 = vsub.f32 %v277, %v1215
        %v1217 = vand.u32 %v1216, 4294901760
        %1218 = vmatmul.mubr.f32.gmra.mrb[0].mxu0 %v1217
        %v1219 = vpop.f32.mrb[0].mxu0
        %v1220 = vadd.f32 %v1055, %v1219
        %v1221 = vpop.f32.mrb[0].mxu0
        %v1222 = vadd.f32 %v1057, %v1221
        %1223 = vmatprep.mubr.f32.mxu0 0.0
        %v1224 = vand.u32 %v278, 4294901760
        %v1225 = vsub.f32 %v278, %v1224
        %v1226 = vand.u32 %v1225, 4294901760
        %1227 = vmatmul.mubr.f32.gmra.mrb[0].mxu0 %v1226
        %v1228 = vpop.f32.mrb[0].mxu0
        %v1229 = vadd.f32 %v1063, %v1228
        %v1230 = vpop.f32.mrb[0].mxu0
        %v1231 = vadd.f32 %v1065, %v1230
        %1232 = vmatprep.mubr.f32.mxu0 0.0
        %v1233 = vand.u32 %v279, 4294901760
        %v1234 = vsub.f32 %v279, %v1233
        %v1235 = vand.u32 %v1234, 4294901760
        %1236 = vmatmul.mubr.f32.gmra.mrb[0].mxu0 %v1235
        %v1237 = vpop.f32.mrb[0].mxu0
        %v1238 = vadd.f32 %v1071, %v1237
        %v1239 = vpop.f32.mrb[0].mxu0
        %v1240 = vadd.f32 %v1073, %v1239
        %1241 = vmatprep.mubr.f32.mxu0 0.0
        %v1242 = vand.u32 %v280, 4294901760
        %v1243 = vsub.f32 %v280, %v1242
        %v1244 = vand.u32 %v1243, 4294901760
        %1245 = vmatmul.mubr.f32.gmra.mrb[0].mxu0 %v1244
        %v1246 = vpop.f32.mrb[0].mxu0
        %v1247 = vadd.f32 %v1079, %v1246
        %v1248 = vpop.f32.mrb[0].mxu0
        %v1249 = vadd.f32 %v1081, %v1248
        %1250 = vmatprep.mubr.f32.mxu0 0.0
        %v1251 = vand.u32 %v281, 4294901760
        %v1252 = vsub.f32 %v281, %v1251
        %v1253 = vand.u32 %v1252, 4294901760
        %1254 = vmatmul.mubr.f32.gmra.mrb[0].mxu0 %v1253
        %v1255 = vpop.f32.mrb[0].mxu0
        %v1256 = vadd.f32 %v1087, %v1255
        %v1257 = vpop.f32.mrb[0].mxu0
        %v1258 = vadd.f32 %v1089, %v1257
        %1259 = vdwg.mxu0
        %v1260 = vand.u32 %v283, 4294901760
        %v1261 = vsub.f32 %v283, %v1260
        %v1262 = vand.u32 %v1261, 4294901760
        %1263 = vmatprep.subr.mxu0 %v1262
        %v1264 = vand.u32 %v282, 4294901760
        %v1265 = vsub.f32 %v282, %v1264
        %v1266 = vand.u32 %v1265, 4294901760
        %1267 = vmatpush1.msra.mxu0 %v1266
        %v1268 = vand.u32 %v287, 4294901760
        %v1269 = vsub.f32 %v287, %v1268
        %v1270 = vand.u32 %v1269, 4294901760
        %1271 = vmatprep.subr.mxu0 %v1270
        %v1272 = vand.u32 %v286, 4294901760
        %v1273 = vsub.f32 %v286, %v1272
        %v1274 = vand.u32 %v1273, 4294901760
        %1275 = vmatpush1.msra.mxu0 %v1274
        %v1276 = vand.u32 %v291, 4294901760
        %v1277 = vsub.f32 %v291, %v1276
        %v1278 = vand.u32 %v1277, 4294901760
        %1279 = vmatprep.subr.mxu0 %v1278
        %v1280 = vand.u32 %v290, 4294901760
        %v1281 = vsub.f32 %v290, %v1280
        %v1282 = vand.u32 %v1281, 4294901760
        %1283 = vmatpush1.msra.mxu0 %v1282
        %v1284 = vand.u32 %v295, 4294901760
        %v1285 = vsub.f32 %v295, %v1284
        %v1286 = vand.u32 %v1285, 4294901760
        %1287 = vmatprep.subr.mxu0 %v1286
        %v1288 = vand.u32 %v294, 4294901760
        %v1289 = vsub.f32 %v294, %v1288
        %v1290 = vand.u32 %v1289, 4294901760
        %1291 = vmatpush1.msra.mxu0 %v1290
        %v1292 = vand.u32 %v299, 4294901760
        %v1293 = vsub.f32 %v299, %v1292
        %v1294 = vand.u32 %v1293, 4294901760
        %1295 = vmatprep.subr.mxu0 %v1294
        %v1296 = vand.u32 %v298, 4294901760
        %v1297 = vsub.f32 %v298, %v1296
        %v1298 = vand.u32 %v1297, 4294901760
        %1299 = vmatpush1.msra.mxu0 %v1298
        %v1300 = vand.u32 %v303, 4294901760
        %v1301 = vsub.f32 %v303, %v1300
        %v1302 = vand.u32 %v1301, 4294901760
        %1303 = vmatprep.subr.mxu0 %v1302
        %v1304 = vand.u32 %v302, 4294901760
        %v1305 = vsub.f32 %v302, %v1304
        %v1306 = vand.u32 %v1305, 4294901760
        %1307 = vmatpush1.msra.mxu0 %v1306
        %v1308 = vand.u32 %v307, 4294901760
        %v1309 = vsub.f32 %v307, %v1308
        %v1310 = vand.u32 %v1309, 4294901760
        %1311 = vmatprep.subr.mxu0 %v1310
        %v1312 = vand.u32 %v306, 4294901760
        %v1313 = vsub.f32 %v306, %v1312
        %v1314 = vand.u32 %v1313, 4294901760
        %1315 = vmatpush1.msra.mxu0 %v1314
        %v1316 = vand.u32 %v311, 4294901760
        %v1317 = vsub.f32 %v311, %v1316
        %v1318 = vand.u32 %v1317, 4294901760
        %1319 = vmatprep.subr.mxu0 %v1318
        %v1320 = vand.u32 %v310, 4294901760
        %v1321 = vsub.f32 %v310, %v1320
        %v1322 = vand.u32 %v1321, 4294901760
        %1323 = vmatpush1.msra.mxu0 %v1322
        %v1324 = vand.u32 %v315, 4294901760
        %v1325 = vsub.f32 %v315, %v1324
        %v1326 = vand.u32 %v1325, 4294901760
        %1327 = vmatprep.subr.mxu0 %v1326
        %v1328 = vand.u32 %v314, 4294901760
        %v1329 = vsub.f32 %v314, %v1328
        %v1330 = vand.u32 %v1329, 4294901760
        %1331 = vmatpush1.msra.mxu0 %v1330
        %v1332 = vand.u32 %v319, 4294901760
        %v1333 = vsub.f32 %v319, %v1332
        %v1334 = vand.u32 %v1333, 4294901760
        %1335 = vmatprep.subr.mxu0 %v1334
        %v1336 = vand.u32 %v318, 4294901760
        %v1337 = vsub.f32 %v318, %v1336
        %v1338 = vand.u32 %v1337, 4294901760
        %1339 = vmatpush1.msra.mxu0 %v1338
        %v1340 = vand.u32 %v323, 4294901760
        %v1341 = vsub.f32 %v323, %v1340
        %v1342 = vand.u32 %v1341, 4294901760
        %1343 = vmatprep.subr.mxu0 %v1342
        %v1344 = vand.u32 %v322, 4294901760
        %v1345 = vsub.f32 %v322, %v1344
        %v1346 = vand.u32 %v1345, 4294901760
        %1347 = vmatpush1.msra.mxu0 %v1346
        %v1348 = vand.u32 %v327, 4294901760
        %v1349 = vsub.f32 %v327, %v1348
        %v1350 = vand.u32 %v1349, 4294901760
        %1351 = vmatprep.subr.mxu0 %v1350
        %v1352 = vand.u32 %v326, 4294901760
        %v1353 = vsub.f32 %v326, %v1352
        %v1354 = vand.u32 %v1353, 4294901760
        %1355 = vmatpush1.msra.mxu0 %v1354
        %v1356 = vand.u32 %v331, 4294901760
        %v1357 = vsub.f32 %v331, %v1356
        %v1358 = vand.u32 %v1357, 4294901760
        %1359 = vmatprep.subr.mxu0 %v1358
        %v1360 = vand.u32 %v330, 4294901760
        %v1361 = vsub.f32 %v330, %v1360
        %v1362 = vand.u32 %v1361, 4294901760
        %1363 = vmatpush1.msra.mxu0 %v1362
        %v1364 = vand.u32 %v335, 4294901760
        %v1365 = vsub.f32 %v335, %v1364
        %v1366 = vand.u32 %v1365, 4294901760
        %1367 = vmatprep.subr.mxu0 %v1366
        %v1368 = vand.u32 %v334, 4294901760
        %v1369 = vsub.f32 %v334, %v1368
        %v1370 = vand.u32 %v1369, 4294901760
        %1371 = vmatpush1.msra.mxu0 %v1370
        %v1372 = vand.u32 %v339, 4294901760
        %v1373 = vsub.f32 %v339, %v1372
        %v1374 = vand.u32 %v1373, 4294901760
        %1375 = vmatprep.subr.mxu0 %v1374
        %v1376 = vand.u32 %v338, 4294901760
        %v1377 = vsub.f32 %v338, %v1376
        %v1378 = vand.u32 %v1377, 4294901760
        %1379 = vmatpush1.msra.mxu0 %v1378
        %v1380 = vand.u32 %v343, 4294901760
        %v1381 = vsub.f32 %v343, %v1380
        %v1382 = vand.u32 %v1381, 4294901760
        %1383 = vmatprep.subr.mxu0 %v1382
        %v1384 = vand.u32 %v342, 4294901760
        %v1385 = vsub.f32 %v342, %v1384
        %v1386 = vand.u32 %v1385, 4294901760
        %1387 = vmatpush1.msra.mxu0 %v1386
        %1388 = vmatprep.subr.mxu0 0.0
        %1389 = vmatpush1.msra.mxu0 0.0
        %1390 = vmatprep.subr.mxu0 0.0
        %1391 = vmatpush1.msra.mxu0 0.0
        %1392 = vmatprep.subr.mxu0 0.0
        %1393 = vmatpush1.msra.mxu0 0.0
        %1394 = vmatprep.subr.mxu0 0.0
        %1395 = vmatpush1.msra.mxu0 0.0
        %1396 = vmatprep.subr.mxu0 0.0
        %1397 = vmatpush1.msra.mxu0 0.0
        %1398 = vmatprep.subr.mxu0 0.0
        %1399 = vmatpush1.msra.mxu0 0.0
        %1400 = vmatprep.subr.mxu0 0.0
        %1401 = vmatpush1.msra.mxu0 0.0
        %1402 = vmatprep.subr.mxu0 0.0
        %1403 = vmatpush1.msra.mxu0 0.0
        %1404 = vmatprep.subr.mxu0 0.0
        %1405 = vmatpush1.msra.mxu0 0.0
        %1406 = vmatprep.subr.mxu0 0.0
        %1407 = vmatpush1.msra.mxu0 0.0
        %1408 = vmatprep.subr.mxu0 0.0
        %1409 = vmatpush1.msra.mxu0 0.0
        %1410 = vmatprep.subr.mxu0 0.0
        %1411 = vmatpush1.msra.mxu0 0.0
        %1412 = vmatprep.subr.mxu0 0.0
        %1413 = vmatpush1.msra.mxu0 0.0
        %1414 = vmatprep.subr.mxu0 0.0
        %1415 = vmatpush1.msra.mxu0 0.0
        %1416 = vmatprep.subr.mxu0 0.0
        %1417 = vmatpush1.msra.mxu0 0.0
        %1418 = vmatprep.subr.mxu0 0.0
        %1419 = vmatpush1.msra.mxu0 0.0
        %1420 = vmatprep.mubr.f32.mxu0 0.0
        %v1421 = vand.u32 %v274, 4294901760
        %1422 = vmatmul.mubr.f32.gmra.mrb[0].mxu0 %v1421
        %v1423 = vpop.f32.mrb[0].mxu0
        %v1424 = vadd.f32 %v1193, %v1423
        %v1425 = vpop.f32.mrb[0].mxu0
        %v1426 = vadd.f32 %v1195, %v1425
        %1427 = vmatprep.mubr.f32.mxu0 0.0
        %v1428 = vand.u32 %v275, 4294901760
        %1429 = vmatmul.mubr.f32.gmra.mrb[0].mxu0 %v1428
        %v1430 = vpop.f32.mrb[0].mxu0
        %v1431 = vadd.f32 %v1202, %v1430
        %v1432 = vpop.f32.mrb[0].mxu0
        %v1433 = vadd.f32 %v1204, %v1432
        %1434 = vmatprep.mubr.f32.mxu0 0.0
        %v1435 = vand.u32 %v276, 4294901760
        %1436 = vmatmul.mubr.f32.gmra.mrb[0].mxu0 %v1435
        %v1437 = vpop.f32.mrb[0].mxu0
        %v1438 = vadd.f32 %v1211, %v1437
        %v1439 = vpop.f32.mrb[0].mxu0
        %v1440 = vadd.f32 %v1213, %v1439
        %1441 = vmatprep.mubr.f32.mxu0 0.0
        %v1442 = vand.u32 %v277, 4294901760
        %1443 = vmatmul.mubr.f32.gmra.mrb[0].mxu0 %v1442
        %v1444 = vpop.f32.mrb[0].mxu0
        %v1445 = vadd.f32 %v1220, %v1444
        %v1446 = vpop.f32.mrb[0].mxu0
        %v1447 = vadd.f32 %v1222, %v1446
        %1448 = vmatprep.mubr.f32.mxu0 0.0
        %v1449 = vand.u32 %v278, 4294901760
        %1450 = vmatmul.mubr.f32.gmra.mrb[0].mxu0 %v1449
        %v1451 = vpop.f32.mrb[0].mxu0
        %v1452 = vadd.f32 %v1229, %v1451
        %v1453 = vpop.f32.mrb[0].mxu0
        %v1454 = vadd.f32 %v1231, %v1453
        %1455 = vmatprep.mubr.f32.mxu0 0.0
        %v1456 = vand.u32 %v279, 4294901760
        %1457 = vmatmul.mubr.f32.gmra.mrb[0].mxu0 %v1456
        %v1458 = vpop.f32.mrb[0].mxu0
        %v1459 = vadd.f32 %v1238, %v1458
        %v1460 = vpop.f32.mrb[0].mxu0
        %v1461 = vadd.f32 %v1240, %v1460
        %1462 = vmatprep.mubr.f32.mxu0 0.0
        %v1463 = vand.u32 %v280, 4294901760
        %1464 = vmatmul.mubr.f32.gmra.mrb[0].mxu0 %v1463
        %v1465 = vpop.f32.mrb[0].mxu0
        %v1466 = vadd.f32 %v1247, %v1465
        %v1467 = vpop.f32.mrb[0].mxu0
        %v1468 = vadd.f32 %v1249, %v1467
        %1469 = vmatprep.mubr.f32.mxu0 0.0
        %v1470 = vand.u32 %v281, 4294901760
        %1471 = vmatmul.mubr.f32.gmra.mrb[0].mxu0 %v1470
        %v1472 = vpop.f32.mrb[0].mxu0
        %v1473 = vadd.f32 %v1256, %v1472
        %v1474 = vpop.f32.mrb[0].mxu0
        %v1475 = vadd.f32 %v1258, %v1474
        %1476 = vdwg.mxu0
        %v1477 = vand.u32 %v283, 4294901760
        %1478 = vmatprep.subr.mxu0 %v1477
        %v1479 = vand.u32 %v282, 4294901760
        %1480 = vmatpush1.msra.mxu0 %v1479
        %v1481 = vand.u32 %v287, 4294901760
        %1482 = vmatprep.subr.mxu0 %v1481
        %v1483 = vand.u32 %v286, 4294901760
        %1484 = vmatpush1.msra.mxu0 %v1483
        %v1485 = vand.u32 %v291, 4294901760
        %1486 = vmatprep.subr.mxu0 %v1485
        %v1487 = vand.u32 %v290, 4294901760
        %1488 = vmatpush1.msra.mxu0 %v1487
        %v1489 = vand.u32 %v295, 4294901760
        %1490 = vmatprep.subr.mxu0 %v1489
        %v1491 = vand.u32 %v294, 4294901760
        %1492 = vmatpush1.msra.mxu0 %v1491
        %v1493 = vand.u32 %v299, 4294901760
        %1494 = vmatprep.subr.mxu0 %v1493
        %v1495 = vand.u32 %v298, 4294901760
        %1496 = vmatpush1.msra.mxu0 %v1495
        %v1497 = vand.u32 %v303, 4294901760
        %1498 = vmatprep.subr.mxu0 %v1497
        %v1499 = vand.u32 %v302, 4294901760
        %1500 = vmatpush1.msra.mxu0 %v1499
        %v1501 = vand.u32 %v307, 4294901760
        %1502 = vmatprep.subr.mxu0 %v1501
        %v1503 = vand.u32 %v306, 4294901760
        %1504 = vmatpush1.msra.mxu0 %v1503
        %v1505 = vand.u32 %v311, 4294901760
        %1506 = vmatprep.subr.mxu0 %v1505
        %v1507 = vand.u32 %v310, 4294901760
        %1508 = vmatpush1.msra.mxu0 %v1507
        %v1509 = vand.u32 %v315, 4294901760
        %1510 = vmatprep.subr.mxu0 %v1509
        %v1511 = vand.u32 %v314, 4294901760
        %1512 = vmatpush1.msra.mxu0 %v1511
        %v1513 = vand.u32 %v319, 4294901760
        %1514 = vmatprep.subr.mxu0 %v1513
        %v1515 = vand.u32 %v318, 4294901760
        %1516 = vmatpush1.msra.mxu0 %v1515
        %v1517 = vand.u32 %v323, 4294901760
        %1518 = vmatprep.subr.mxu0 %v1517
        %v1519 = vand.u32 %v322, 4294901760
        %1520 = vmatpush1.msra.mxu0 %v1519
        %v1521 = vand.u32 %v327, 4294901760
        %1522 = vmatprep.subr.mxu0 %v1521
        %v1523 = vand.u32 %v326, 4294901760
        %1524 = vmatpush1.msra.mxu0 %v1523
        %v1525 = vand.u32 %v331, 4294901760
        %1526 = vmatprep.subr.mxu0 %v1525
        %v1527 = vand.u32 %v330, 4294901760
        %1528 = vmatpush1.msra.mxu0 %v1527
        %v1529 = vand.u32 %v335, 4294901760
        %1530 = vmatprep.subr.mxu0 %v1529
        %v1531 = vand.u32 %v334, 4294901760
        %1532 = vmatpush1.msra.mxu0 %v1531
        %v1533 = vand.u32 %v339, 4294901760
        %1534 = vmatprep.subr.mxu0 %v1533
        %v1535 = vand.u32 %v338, 4294901760
        %1536 = vmatpush1.msra.mxu0 %v1535
        %v1537 = vand.u32 %v343, 4294901760
        %1538 = vmatprep.subr.mxu0 %v1537
        %v1539 = vand.u32 %v342, 4294901760
        %1540 = vmatpush1.msra.mxu0 %v1539
        %1541 = vmatprep.subr.mxu0 0.0
        %1542 = vmatpush1.msra.mxu0 0.0
        %1543 = vmatprep.subr.mxu0 0.0
        %1544 = vmatpush1.msra.mxu0 0.0
        %1545 = vmatprep.subr.mxu0 0.0
        %1546 = vmatpush1.msra.mxu0 0.0
        %1547 = vmatprep.subr.mxu0 0.0
        %1548 = vmatpush1.msra.mxu0 0.0
        %1549 = vmatprep.subr.mxu0 0.0
        %1550 = vmatpush1.msra.mxu0 0.0
        %1551 = vmatprep.subr.mxu0 0.0
        %1552 = vmatpush1.msra.mxu0 0.0
        %1553 = vmatprep.subr.mxu0 0.0
        %1554 = vmatpush1.msra.mxu0 0.0
        %1555 = vmatprep.subr.mxu0 0.0
        %1556 = vmatpush1.msra.mxu0 0.0
        %1557 = vmatprep.subr.mxu0 0.0
        %1558 = vmatpush1.msra.mxu0 0.0
        %1559 = vmatprep.subr.mxu0 0.0
        %1560 = vmatpush1.msra.mxu0 0.0
        %1561 = vmatprep.subr.mxu0 0.0
        %1562 = vmatpush1.msra.mxu0 0.0
        %1563 = vmatprep.subr.mxu0 0.0
        %1564 = vmatpush1.msra.mxu0 0.0
        %1565 = vmatprep.subr.mxu0 0.0
        %1566 = vmatpush1.msra.mxu0 0.0
        %1567 = vmatprep.subr.mxu0 0.0
        %1568 = vmatpush1.msra.mxu0 0.0
        %1569 = vmatprep.subr.mxu0 0.0
        %1570 = vmatpush1.msra.mxu0 0.0
        %1571 = vmatprep.subr.mxu0 0.0
        %1572 = vmatpush1.msra.mxu0 0.0
        %1573 = vmatprep.mubr.f32.mxu0 0.0
        %v1574 = vand.u32 %v274, 4294901760
        %1575 = vmatmul.mubr.f32.gmra.mrb[0].mxu0 %v1574
        %v1576 = vpop.f32.mrb[0].mxu0
        %v1577 = vadd.f32 %v1424, %v1576
        %v1578 = vpop.f32.mrb[0].mxu0
        %v1579 = vadd.f32 %v1426, %v1578
        %1580 = vmatprep.mubr.f32.mxu0 0.0
        %v1581 = vand.u32 %v275, 4294901760
        %1582 = vmatmul.mubr.f32.gmra.mrb[0].mxu0 %v1581
        %v1583 = vpop.f32.mrb[0].mxu0
        %v1584 = vadd.f32 %v1431, %v1583
        %v1585 = vpop.f32.mrb[0].mxu0
        %v1586 = vadd.f32 %v1433, %v1585
        %1587 = vmatprep.mubr.f32.mxu0 0.0
        %v1588 = vand.u32 %v276, 4294901760
        %1589 = vmatmul.mubr.f32.gmra.mrb[0].mxu0 %v1588
        %v1590 = vpop.f32.mrb[0].mxu0
        %v1591 = vadd.f32 %v1438, %v1590
        %v1592 = vpop.f32.mrb[0].mxu0
        %v1593 = vadd.f32 %v1440, %v1592
        %1594 = vmatprep.mubr.f32.mxu0 0.0
        %v1595 = vand.u32 %v277, 4294901760
        %1596 = vmatmul.mubr.f32.gmra.mrb[0].mxu0 %v1595
        %v1597 = vpop.f32.mrb[0].mxu0
        %v1598 = vadd.f32 %v1445, %v1597
        %v1599 = vpop.f32.mrb[0].mxu0
        %v1600 = vadd.f32 %v1447, %v1599
        %1601 = vmatprep.mubr.f32.mxu0 0.0
        %v1602 = vand.u32 %v278, 4294901760
        %1603 = vmatmul.mubr.f32.gmra.mrb[0].mxu0 %v1602
        %v1604 = vpop.f32.mrb[0].mxu0
        %v1605 = vadd.f32 %v1452, %v1604
        %v1606 = vpop.f32.mrb[0].mxu0
        %v1607 = vadd.f32 %v1454, %v1606
        %1608 = vmatprep.mubr.f32.mxu0 0.0
        %v1609 = vand.u32 %v279, 4294901760
        %1610 = vmatmul.mubr.f32.gmra.mrb[0].mxu0 %v1609
        %v1611 = vpop.f32.mrb[0].mxu0
        %v1612 = vadd.f32 %v1459, %v1611
        %v1613 = vpop.f32.mrb[0].mxu0
        %v1614 = vadd.f32 %v1461, %v1613
        %1615 = vmatprep.mubr.f32.mxu0 0.0
        %v1616 = vand.u32 %v280, 4294901760
        %1617 = vmatmul.mubr.f32.gmra.mrb[0].mxu0 %v1616
        %v1618 = vpop.f32.mrb[0].mxu0
        %v1619 = vadd.f32 %v1466, %v1618
        %v1620 = vpop.f32.mrb[0].mxu0
        %v1621 = vadd.f32 %v1468, %v1620
        %1622 = vmatprep.mubr.f32.mxu0 0.0
        %v1623 = vand.u32 %v281, 4294901760
        %1624 = vmatmul.mubr.f32.gmra.mrb[0].mxu0 %v1623
        %v1625 = vpop.f32.mrb[0].mxu0
        %v1626 = vadd.f32 %v1473, %v1625
        %v1627 = vpop.f32.mrb[0].mxu0
        %v1628 = vadd.f32 %v1475, %v1627
        %1629 = vdwg.mxu0
        %v1630 = vand.u32 %v285, 4294901760
        %1631 = vmatprep.subr.mxu0 %v1630
        %v1632 = vand.u32 %v284, 4294901760
        %1633 = vmatpush1.msra.mxu0 %v1632
        %v1634 = vand.u32 %v289, 4294901760
        %1635 = vmatprep.subr.mxu0 %v1634
        %v1636 = vand.u32 %v288, 4294901760
        %1637 = vmatpush1.msra.mxu0 %v1636
        %v1638 = vand.u32 %v293, 4294901760
        %1639 = vmatprep.subr.mxu0 %v1638
        %v1640 = vand.u32 %v292, 4294901760
        %1641 = vmatpush1.msra.mxu0 %v1640
        %v1642 = vand.u32 %v297, 4294901760
        %1643 = vmatprep.subr.mxu0 %v1642
        %v1644 = vand.u32 %v296, 4294901760
        %1645 = vmatpush1.msra.mxu0 %v1644
        %v1646 = vand.u32 %v301, 4294901760
        %1647 = vmatprep.subr.mxu0 %v1646
        %v1648 = vand.u32 %v300, 4294901760
        %1649 = vmatpush1.msra.mxu0 %v1648
        %v1650 = vand.u32 %v305, 4294901760
        %1651 = vmatprep.subr.mxu0 %v1650
        %v1652 = vand.u32 %v304, 4294901760
        %1653 = vmatpush1.msra.mxu0 %v1652
        %v1654 = vand.u32 %v309, 4294901760
        %1655 = vmatprep.subr.mxu0 %v1654
        %v1656 = vand.u32 %v308, 4294901760
        %1657 = vmatpush1.msra.mxu0 %v1656
        %v1658 = vand.u32 %v313, 4294901760
        %1659 = vmatprep.subr.mxu0 %v1658
        %v1660 = vand.u32 %v312, 4294901760
        %1661 = vmatpush1.msra.mxu0 %v1660
        %v1662 = vand.u32 %v317, 4294901760
        %1663 = vmatprep.subr.mxu0 %v1662
        %v1664 = vand.u32 %v316, 4294901760
        %1665 = vmatpush1.msra.mxu0 %v1664
        %v1666 = vand.u32 %v321, 4294901760
        %1667 = vmatprep.subr.mxu0 %v1666
        %v1668 = vand.u32 %v320, 4294901760
        %1669 = vmatpush1.msra.mxu0 %v1668
        %v1670 = vand.u32 %v325, 4294901760
        %1671 = vmatprep.subr.mxu0 %v1670
        %v1672 = vand.u32 %v324, 4294901760
        %1673 = vmatpush1.msra.mxu0 %v1672
        %v1674 = vand.u32 %v329, 4294901760
        %1675 = vmatprep.subr.mxu0 %v1674
        %v1676 = vand.u32 %v328, 4294901760
        %1677 = vmatpush1.msra.mxu0 %v1676
        %v1678 = vand.u32 %v333, 4294901760
        %1679 = vmatprep.subr.mxu0 %v1678
        %v1680 = vand.u32 %v332, 4294901760
        %1681 = vmatpush1.msra.mxu0 %v1680
        %v1682 = vand.u32 %v337, 4294901760
        %1683 = vmatprep.subr.mxu0 %v1682
        %v1684 = vand.u32 %v336, 4294901760
        %1685 = vmatpush1.msra.mxu0 %v1684
        %v1686 = vand.u32 %v341, 4294901760
        %1687 = vmatprep.subr.mxu0 %v1686
        %v1688 = vand.u32 %v340, 4294901760
        %1689 = vmatpush1.msra.mxu0 %v1688
        %v1690 = vand.u32 %v345, 4294901760
        %1691 = vmatprep.subr.mxu0 %v1690
        %v1692 = vand.u32 %v344, 4294901760
        %1693 = vmatpush1.msra.mxu0 %v1692
        %1694 = vmatprep.subr.mxu0 0.0
        %1695 = vmatpush1.msra.mxu0 0.0
        %1696 = vmatprep.subr.mxu0 0.0
        %1697 = vmatpush1.msra.mxu0 0.0
        %1698 = vmatprep.subr.mxu0 0.0
        %1699 = vmatpush1.msra.mxu0 0.0
        %1700 = vmatprep.subr.mxu0 0.0
        %1701 = vmatpush1.msra.mxu0 0.0
        %1702 = vmatprep.subr.mxu0 0.0
        %1703 = vmatpush1.msra.mxu0 0.0
        %1704 = vmatprep.subr.mxu0 0.0
        %1705 = vmatpush1.msra.mxu0 0.0
        %1706 = vmatprep.subr.mxu0 0.0
        %1707 = vmatpush1.msra.mxu0 0.0
        %1708 = vmatprep.subr.mxu0 0.0
        %1709 = vmatpush1.msra.mxu0 0.0
        %1710 = vmatprep.subr.mxu0 0.0
        %1711 = vmatpush1.msra.mxu0 0.0
        %1712 = vmatprep.subr.mxu0 0.0
        %1713 = vmatpush1.msra.mxu0 0.0
        %1714 = vmatprep.subr.mxu0 0.0
        %1715 = vmatpush1.msra.mxu0 0.0
        %1716 = vmatprep.subr.mxu0 0.0
        %1717 = vmatpush1.msra.mxu0 0.0
        %1718 = vmatprep.subr.mxu0 0.0
        %1719 = vmatpush1.msra.mxu0 0.0
        %1720 = vmatprep.subr.mxu0 0.0
        %1721 = vmatpush1.msra.mxu0 0.0
        %1722 = vmatprep.subr.mxu0 0.0
        %1723 = vmatpush1.msra.mxu0 0.0
        %1724 = vmatprep.subr.mxu0 0.0
        %1725 = vmatpush1.msra.mxu0 0.0
        %1726 = vmatprep.mubr.f32.mxu0 0.0
        %v1727 = vand.u32 %v274, 4294901760
        %v1728 = vsub.f32 %v274, %v1727
        %v1729 = vand.u32 %v1728, 4294901760
        %v1730 = vsub.f32 %v1728, %v1729
        %v1731 = vand.u32 %v1730, 4294901760
        %1732 = vmatmul.mubr.f32.gmra.mrb[0].mxu0 %v1731
        %v1733 = vpop.f32.mrb[0].mxu0
        %v1734 = vadd.f32 %v423, %v1733
        %v1735 = vpop.f32.mrb[0].mxu0
        %v1736 = vadd.f32 %v427, %v1735
        %1737 = vmatprep.mubr.f32.mxu0 0.0
        %v1738 = vand.u32 %v275, 4294901760
        %v1739 = vsub.f32 %v275, %v1738
        %v1740 = vand.u32 %v1739, 4294901760
        %v1741 = vsub.f32 %v1739, %v1740
        %v1742 = vand.u32 %v1741, 4294901760
        %1743 = vmatmul.mubr.f32.gmra.mrb[0].mxu0 %v1742
        %v1744 = vpop.f32.mrb[0].mxu0
        %v1745 = vadd.f32 %v423, %v1744
        %v1746 = vpop.f32.mrb[0].mxu0
        %v1747 = vadd.f32 %v427, %v1746
        %1748 = vmatprep.mubr.f32.mxu0 0.0
        %v1749 = vand.u32 %v276, 4294901760
        %v1750 = vsub.f32 %v276, %v1749
        %v1751 = vand.u32 %v1750, 4294901760
        %v1752 = vsub.f32 %v1750, %v1751
        %v1753 = vand.u32 %v1752, 4294901760
        %1754 = vmatmul.mubr.f32.gmra.mrb[0].mxu0 %v1753
        %v1755 = vpop.f32.mrb[0].mxu0
        %v1756 = vadd.f32 %v423, %v1755
        %v1757 = vpop.f32.mrb[0].mxu0
        %v1758 = vadd.f32 %v427, %v1757
        %1759 = vmatprep.mubr.f32.mxu0 0.0
        %v1760 = vand.u32 %v277, 4294901760
        %v1761 = vsub.f32 %v277, %v1760
        %v1762 = vand.u32 %v1761, 4294901760
        %v1763 = vsub.f32 %v1761, %v1762
        %v1764 = vand.u32 %v1763, 4294901760
        %1765 = vmatmul.mubr.f32.gmra.mrb[0].mxu0 %v1764
        %v1766 = vpop.f32.mrb[0].mxu0
        %v1767 = vadd.f32 %v423, %v1766
        %v1768 = vpop.f32.mrb[0].mxu0
        %v1769 = vadd.f32 %v427, %v1768
        %1770 = vmatprep.mubr.f32.mxu0 0.0
        %v1771 = vand.u32 %v278, 4294901760
        %v1772 = vsub.f32 %v278, %v1771
        %v1773 = vand.u32 %v1772, 4294901760
        %v1774 = vsub.f32 %v1772, %v1773
        %v1775 = vand.u32 %v1774, 4294901760
        %1776 = vmatmul.mubr.f32.gmra.mrb[0].mxu0 %v1775
        %v1777 = vpop.f32.mrb[0].mxu0
        %v1778 = vadd.f32 %v423, %v1777
        %v1779 = vpop.f32.mrb[0].mxu0
        %v1780 = vadd.f32 %v427, %v1779
        %1781 = vmatprep.mubr.f32.mxu0 0.0
        %v1782 = vand.u32 %v279, 4294901760
        %v1783 = vsub.f32 %v279, %v1782
        %v1784 = vand.u32 %v1783, 4294901760
        %v1785 = vsub.f32 %v1783, %v1784
        %v1786 = vand.u32 %v1785, 4294901760
        %1787 = vmatmul.mubr.f32.gmra.mrb[0].mxu0 %v1786
        %v1788 = vpop.f32.mrb[0].mxu0
        %v1789 = vadd.f32 %v423, %v1788
        %v1790 = vpop.f32.mrb[0].mxu0
        %v1791 = vadd.f32 %v427, %v1790
        %1792 = vmatprep.mubr.f32.mxu0 0.0
        %v1793 = vand.u32 %v280, 4294901760
        %v1794 = vsub.f32 %v280, %v1793
        %v1795 = vand.u32 %v1794, 4294901760
        %v1796 = vsub.f32 %v1794, %v1795
        %v1797 = vand.u32 %v1796, 4294901760
        %1798 = vmatmul.mubr.f32.gmra.mrb[0].mxu0 %v1797
        %v1799 = vpop.f32.mrb[0].mxu0
        %v1800 = vadd.f32 %v423, %v1799
        %v1801 = vpop.f32.mrb[0].mxu0
        %v1802 = vadd.f32 %v427, %v1801
        %1803 = vmatprep.mubr.f32.mxu0 0.0
        %v1804 = vand.u32 %v281, 4294901760
        %v1805 = vsub.f32 %v281, %v1804
        %v1806 = vand.u32 %v1805, 4294901760
        %v1807 = vsub.f32 %v1805, %v1806
        %v1808 = vand.u32 %v1807, 4294901760
        %1809 = vmatmul.mubr.f32.gmra.mrb[0].mxu0 %v1808
        %v1810 = vpop.f32.mrb[0].mxu0
        %v1811 = vadd.f32 %v423, %v1810
        %v1812 = vpop.f32.mrb[0].mxu0
        %v1813 = vadd.f32 %v427, %v1812
        %1814 = vdwg.mxu0
        %v1815 = vand.u32 %v285, 4294901760
        %v1816 = vsub.f32 %v285, %v1815
        %v1817 = vand.u32 %v1816, 4294901760
        %v1818 = vsub.f32 %v1816, %v1817
        %v1819 = vand.u32 %v1818, 4294901760
        %1820 = vmatprep.subr.mxu0 %v1819
        %v1821 = vand.u32 %v284, 4294901760
        %v1822 = vsub.f32 %v284, %v1821
        %v1823 = vand.u32 %v1822, 4294901760
        %v1824 = vsub.f32 %v1822, %v1823
        %v1825 = vand.u32 %v1824, 4294901760
        %1826 = vmatpush1.msra.mxu0 %v1825
        %v1827 = vand.u32 %v289, 4294901760
        %v1828 = vsub.f32 %v289, %v1827
        %v1829 = vand.u32 %v1828, 4294901760
        %v1830 = vsub.f32 %v1828, %v1829
        %v1831 = vand.u32 %v1830, 4294901760
        %1832 = vmatprep.subr.mxu0 %v1831
        %v1833 = vand.u32 %v288, 4294901760
        %v1834 = vsub.f32 %v288, %v1833
        %v1835 = vand.u32 %v1834, 4294901760
        %v1836 = vsub.f32 %v1834, %v1835
        %v1837 = vand.u32 %v1836, 4294901760
        %1838 = vmatpush1.msra.mxu0 %v1837
        %v1839 = vand.u32 %v293, 4294901760
        %v1840 = vsub.f32 %v293, %v1839
        %v1841 = vand.u32 %v1840, 4294901760
        %v1842 = vsub.f32 %v1840, %v1841
        %v1843 = vand.u32 %v1842, 4294901760
        %1844 = vmatprep.subr.mxu0 %v1843
        %v1845 = vand.u32 %v292, 4294901760
        %v1846 = vsub.f32 %v292, %v1845
        %v1847 = vand.u32 %v1846, 4294901760
        %v1848 = vsub.f32 %v1846, %v1847
        %v1849 = vand.u32 %v1848, 4294901760
        %1850 = vmatpush1.msra.mxu0 %v1849
        %v1851 = vand.u32 %v297, 4294901760
        %v1852 = vsub.f32 %v297, %v1851
        %v1853 = vand.u32 %v1852, 4294901760
        %v1854 = vsub.f32 %v1852, %v1853
        %v1855 = vand.u32 %v1854, 4294901760
        %1856 = vmatprep.subr.mxu0 %v1855
        %v1857 = vand.u32 %v296, 4294901760
        %v1858 = vsub.f32 %v296, %v1857
        %v1859 = vand.u32 %v1858, 4294901760
        %v1860 = vsub.f32 %v1858, %v1859
        %v1861 = vand.u32 %v1860, 4294901760
        %1862 = vmatpush1.msra.mxu0 %v1861
        %v1863 = vand.u32 %v301, 4294901760
        %v1864 = vsub.f32 %v301, %v1863
        %v1865 = vand.u32 %v1864, 4294901760
        %v1866 = vsub.f32 %v1864, %v1865
        %v1867 = vand.u32 %v1866, 4294901760
        %1868 = vmatprep.subr.mxu0 %v1867
        %v1869 = vand.u32 %v300, 4294901760
        %v1870 = vsub.f32 %v300, %v1869
        %v1871 = vand.u32 %v1870, 4294901760
        %v1872 = vsub.f32 %v1870, %v1871
        %v1873 = vand.u32 %v1872, 4294901760
        %1874 = vmatpush1.msra.mxu0 %v1873
        %v1875 = vand.u32 %v305, 4294901760
        %v1876 = vsub.f32 %v305, %v1875
        %v1877 = vand.u32 %v1876, 4294901760
        %v1878 = vsub.f32 %v1876, %v1877
        %v1879 = vand.u32 %v1878, 4294901760
        %1880 = vmatprep.subr.mxu0 %v1879
        %v1881 = vand.u32 %v304, 4294901760
        %v1882 = vsub.f32 %v304, %v1881
        %v1883 = vand.u32 %v1882, 4294901760
        %v1884 = vsub.f32 %v1882, %v1883
        %v1885 = vand.u32 %v1884, 4294901760
        %1886 = vmatpush1.msra.mxu0 %v1885
        %v1887 = vand.u32 %v309, 4294901760
        %v1888 = vsub.f32 %v309, %v1887
        %v1889 = vand.u32 %v1888, 4294901760
        %v1890 = vsub.f32 %v1888, %v1889
        %v1891 = vand.u32 %v1890, 4294901760
        %1892 = vmatprep.subr.mxu0 %v1891
        %v1893 = vand.u32 %v308, 4294901760
        %v1894 = vsub.f32 %v308, %v1893
        %v1895 = vand.u32 %v1894, 4294901760
        %v1896 = vsub.f32 %v1894, %v1895
        %v1897 = vand.u32 %v1896, 4294901760
        %1898 = vmatpush1.msra.mxu0 %v1897
        %v1899 = vand.u32 %v313, 4294901760
        %v1900 = vsub.f32 %v313, %v1899
        %v1901 = vand.u32 %v1900, 4294901760
        %v1902 = vsub.f32 %v1900, %v1901
        %v1903 = vand.u32 %v1902, 4294901760
        %1904 = vmatprep.subr.mxu0 %v1903
        %v1905 = vand.u32 %v312, 4294901760
        %v1906 = vsub.f32 %v312, %v1905
        %v1907 = vand.u32 %v1906, 4294901760
        %v1908 = vsub.f32 %v1906, %v1907
        %v1909 = vand.u32 %v1908, 4294901760
        %1910 = vmatpush1.msra.mxu0 %v1909
        %v1911 = vand.u32 %v317, 4294901760
        %v1912 = vsub.f32 %v317, %v1911
        %v1913 = vand.u32 %v1912, 4294901760
        %v1914 = vsub.f32 %v1912, %v1913
        %v1915 = vand.u32 %v1914, 4294901760
        %1916 = vmatprep.subr.mxu0 %v1915
        %v1917 = vand.u32 %v316, 4294901760
        %v1918 = vsub.f32 %v316, %v1917
        %v1919 = vand.u32 %v1918, 4294901760
        %v1920 = vsub.f32 %v1918, %v1919
        %v1921 = vand.u32 %v1920, 4294901760
        %1922 = vmatpush1.msra.mxu0 %v1921
        %v1923 = vand.u32 %v321, 4294901760
        %v1924 = vsub.f32 %v321, %v1923
        %v1925 = vand.u32 %v1924, 4294901760
        %v1926 = vsub.f32 %v1924, %v1925
        %v1927 = vand.u32 %v1926, 4294901760
        %1928 = vmatprep.subr.mxu0 %v1927
        %v1929 = vand.u32 %v320, 4294901760
        %v1930 = vsub.f32 %v320, %v1929
        %v1931 = vand.u32 %v1930, 4294901760
        %v1932 = vsub.f32 %v1930, %v1931
        %v1933 = vand.u32 %v1932, 4294901760
        %1934 = vmatpush1.msra.mxu0 %v1933
        %v1935 = vand.u32 %v325, 4294901760
        %v1936 = vsub.f32 %v325, %v1935
        %v1937 = vand.u32 %v1936, 4294901760
        %v1938 = vsub.f32 %v1936, %v1937
        %v1939 = vand.u32 %v1938, 4294901760
        %1940 = vmatprep.subr.mxu0 %v1939
        %v1941 = vand.u32 %v324, 4294901760
        %v1942 = vsub.f32 %v324, %v1941
        %v1943 = vand.u32 %v1942, 4294901760
        %v1944 = vsub.f32 %v1942, %v1943
        %v1945 = vand.u32 %v1944, 4294901760
        %1946 = vmatpush1.msra.mxu0 %v1945
        %v1947 = vand.u32 %v329, 4294901760
        %v1948 = vsub.f32 %v329, %v1947
        %v1949 = vand.u32 %v1948, 4294901760
        %v1950 = vsub.f32 %v1948, %v1949
        %v1951 = vand.u32 %v1950, 4294901760
        %1952 = vmatprep.subr.mxu0 %v1951
        %v1953 = vand.u32 %v328, 4294901760
        %v1954 = vsub.f32 %v328, %v1953
        %v1955 = vand.u32 %v1954, 4294901760
        %v1956 = vsub.f32 %v1954, %v1955
        %v1957 = vand.u32 %v1956, 4294901760
        %1958 = vmatpush1.msra.mxu0 %v1957
        %v1959 = vand.u32 %v333, 4294901760
        %v1960 = vsub.f32 %v333, %v1959
        %v1961 = vand.u32 %v1960, 4294901760
        %v1962 = vsub.f32 %v1960, %v1961
        %v1963 = vand.u32 %v1962, 4294901760
        %1964 = vmatprep.subr.mxu0 %v1963
        %v1965 = vand.u32 %v332, 4294901760
        %v1966 = vsub.f32 %v332, %v1965
        %v1967 = vand.u32 %v1966, 4294901760
        %v1968 = vsub.f32 %v1966, %v1967
        %v1969 = vand.u32 %v1968, 4294901760
        %1970 = vmatpush1.msra.mxu0 %v1969
        %v1971 = vand.u32 %v337, 4294901760
        %v1972 = vsub.f32 %v337, %v1971
        %v1973 = vand.u32 %v1972, 4294901760
        %v1974 = vsub.f32 %v1972, %v1973
        %v1975 = vand.u32 %v1974, 4294901760
        %1976 = vmatprep.subr.mxu0 %v1975
        %v1977 = vand.u32 %v336, 4294901760
        %v1978 = vsub.f32 %v336, %v1977
        %v1979 = vand.u32 %v1978, 4294901760
        %v1980 = vsub.f32 %v1978, %v1979
        %v1981 = vand.u32 %v1980, 4294901760
        %1982 = vmatpush1.msra.mxu0 %v1981
        %v1983 = vand.u32 %v341, 4294901760
        %v1984 = vsub.f32 %v341, %v1983
        %v1985 = vand.u32 %v1984, 4294901760
        %v1986 = vsub.f32 %v1984, %v1985
        %v1987 = vand.u32 %v1986, 4294901760
        %1988 = vmatprep.subr.mxu0 %v1987
        %v1989 = vand.u32 %v340, 4294901760
        %v1990 = vsub.f32 %v340, %v1989
        %v1991 = vand.u32 %v1990, 4294901760
        %v1992 = vsub.f32 %v1990, %v1991
        %v1993 = vand.u32 %v1992, 4294901760
        %1994 = vmatpush1.msra.mxu0 %v1993
        %v1995 = vand.u32 %v345, 4294901760
        %v1996 = vsub.f32 %v345, %v1995
        %v1997 = vand.u32 %v1996, 4294901760
        %v1998 = vsub.f32 %v1996, %v1997
        %v1999 = vand.u32 %v1998, 4294901760
        %2000 = vmatprep.subr.mxu0 %v1999
        %v2001 = vand.u32 %v344, 4294901760
        %v2002 = vsub.f32 %v344, %v2001
        %v2003 = vand.u32 %v2002, 4294901760
        %v2004 = vsub.f32 %v2002, %v2003
        %v2005 = vand.u32 %v2004, 4294901760
        %2006 = vmatpush1.msra.mxu0 %v2005
        %2007 = vmatprep.subr.mxu0 0.0
        %2008 = vmatpush1.msra.mxu0 0.0
        %2009 = vmatprep.subr.mxu0 0.0
        %2010 = vmatpush1.msra.mxu0 0.0
        %2011 = vmatprep.subr.mxu0 0.0
        %2012 = vmatpush1.msra.mxu0 0.0
        %2013 = vmatprep.subr.mxu0 0.0
        %2014 = vmatpush1.msra.mxu0 0.0
        %2015 = vmatprep.subr.mxu0 0.0
        %2016 = vmatpush1.msra.mxu0 0.0
        %2017 = vmatprep.subr.mxu0 0.0
        %2018 = vmatpush1.msra.mxu0 0.0
        %2019 = vmatprep.subr.mxu0 0.0
        %2020 = vmatpush1.msra.mxu0 0.0
        %2021 = vmatprep.subr.mxu0 0.0
        %2022 = vmatpush1.msra.mxu0 0.0
        %2023 = vmatprep.subr.mxu0 0.0
        %2024 = vmatpush1.msra.mxu0 0.0
        %2025 = vmatprep.subr.mxu0 0.0
        %2026 = vmatpush1.msra.mxu0 0.0
        %2027 = vmatprep.subr.mxu0 0.0
        %2028 = vmatpush1.msra.mxu0 0.0
        %2029 = vmatprep.subr.mxu0 0.0
        %2030 = vmatpush1.msra.mxu0 0.0
        %2031 = vmatprep.subr.mxu0 0.0
        %2032 = vmatpush1.msra.mxu0 0.0
        %2033 = vmatprep.subr.mxu0 0.0
        %2034 = vmatpush1.msra.mxu0 0.0
        %2035 = vmatprep.subr.mxu0 0.0
        %2036 = vmatpush1.msra.mxu0 0.0
        %2037 = vmatprep.subr.mxu0 0.0
        %2038 = vmatpush1.msra.mxu0 0.0
        %2039 = vmatprep.mubr.f32.mxu0 0.0
        %v2040 = vand.u32 %v274, 4294901760
        %2041 = vmatmul.mubr.f32.gmra.mrb[0].mxu0 %v2040
        %v2042 = vpop.f32.mrb[0].mxu0
        %v2043 = vadd.f32 %v1734, %v2042
        %v2044 = vpop.f32.mrb[0].mxu0
        %v2045 = vadd.f32 %v1736, %v2044
        %2046 = vmatprep.mubr.f32.mxu0 0.0
        %v2047 = vand.u32 %v275, 4294901760
        %2048 = vmatmul.mubr.f32.gmra.mrb[0].mxu0 %v2047
        %v2049 = vpop.f32.mrb[0].mxu0
        %v2050 = vadd.f32 %v1745, %v2049
        %v2051 = vpop.f32.mrb[0].mxu0
        %v2052 = vadd.f32 %v1747, %v2051
        %2053 = vmatprep.mubr.f32.mxu0 0.0
        %v2054 = vand.u32 %v276, 4294901760
        %2055 = vmatmul.mubr.f32.gmra.mrb[0].mxu0 %v2054
        %v2056 = vpop.f32.mrb[0].mxu0
        %v2057 = vadd.f32 %v1756, %v2056
        %v2058 = vpop.f32.mrb[0].mxu0
        %v2059 = vadd.f32 %v1758, %v2058
        %2060 = vmatprep.mubr.f32.mxu0 0.0
        %v2061 = vand.u32 %v277, 4294901760
        %2062 = vmatmul.mubr.f32.gmra.mrb[0].mxu0 %v2061
        %v2063 = vpop.f32.mrb[0].mxu0
        %v2064 = vadd.f32 %v1767, %v2063
        %v2065 = vpop.f32.mrb[0].mxu0
        %v2066 = vadd.f32 %v1769, %v2065
        %2067 = vmatprep.mubr.f32.mxu0 0.0
        %v2068 = vand.u32 %v278, 4294901760
        %2069 = vmatmul.mubr.f32.gmra.mrb[0].mxu0 %v2068
        %v2070 = vpop.f32.mrb[0].mxu0
        %v2071 = vadd.f32 %v1778, %v2070
        %v2072 = vpop.f32.mrb[0].mxu0
        %v2073 = vadd.f32 %v1780, %v2072
        %2074 = vmatprep.mubr.f32.mxu0 0.0
        %v2075 = vand.u32 %v279, 4294901760
        %2076 = vmatmul.mubr.f32.gmra.mrb[0].mxu0 %v2075
        %v2077 = vpop.f32.mrb[0].mxu0
        %v2078 = vadd.f32 %v1789, %v2077
        %v2079 = vpop.f32.mrb[0].mxu0
        %v2080 = vadd.f32 %v1791, %v2079
        %2081 = vmatprep.mubr.f32.mxu0 0.0
        %v2082 = vand.u32 %v280, 4294901760
        %2083 = vmatmul.mubr.f32.gmra.mrb[0].mxu0 %v2082
        %v2084 = vpop.f32.mrb[0].mxu0
        %v2085 = vadd.f32 %v1800, %v2084
        %v2086 = vpop.f32.mrb[0].mxu0
        %v2087 = vadd.f32 %v1802, %v2086
        %2088 = vmatprep.mubr.f32.mxu0 0.0
        %v2089 = vand.u32 %v281, 4294901760
        %2090 = vmatmul.mubr.f32.gmra.mrb[0].mxu0 %v2089
        %v2091 = vpop.f32.mrb[0].mxu0
        %v2092 = vadd.f32 %v1811, %v2091
        %v2093 = vpop.f32.mrb[0].mxu0
        %v2094 = vadd.f32 %v1813, %v2093
        %2095 = vdwg.mxu0
        %v2096 = vand.u32 %v285, 4294901760
        %v2097 = vsub.f32 %v285, %v2096
        %2098 = vmatprep.subr.mxu0 %v2097
        %v2099 = vand.u32 %v284, 4294901760
        %v2100 = vsub.f32 %v284, %v2099
        %2101 = vmatpush1.msra.mxu0 %v2100
        %v2102 = vand.u32 %v289, 4294901760
        %v2103 = vsub.f32 %v289, %v2102
        %2104 = vmatprep.subr.mxu0 %v2103
        %v2105 = vand.u32 %v288, 4294901760
        %v2106 = vsub.f32 %v288, %v2105
        %2107 = vmatpush1.msra.mxu0 %v2106
        %v2108 = vand.u32 %v293, 4294901760
        %v2109 = vsub.f32 %v293, %v2108
        %2110 = vmatprep.subr.mxu0 %v2109
        %v2111 = vand.u32 %v292, 4294901760
        %v2112 = vsub.f32 %v292, %v2111
        %2113 = vmatpush1.msra.mxu0 %v2112
        %v2114 = vand.u32 %v297, 4294901760
        %v2115 = vsub.f32 %v297, %v2114
        %2116 = vmatprep.subr.mxu0 %v2115
        %v2117 = vand.u32 %v296, 4294901760
        %v2118 = vsub.f32 %v296, %v2117
        %2119 = vmatpush1.msra.mxu0 %v2118
        %v2120 = vand.u32 %v301, 4294901760
        %v2121 = vsub.f32 %v301, %v2120
        %2122 = vmatprep.subr.mxu0 %v2121
        %v2123 = vand.u32 %v300, 4294901760
        %v2124 = vsub.f32 %v300, %v2123
        %2125 = vmatpush1.msra.mxu0 %v2124
        %v2126 = vand.u32 %v305, 4294901760
        %v2127 = vsub.f32 %v305, %v2126
        %2128 = vmatprep.subr.mxu0 %v2127
        %v2129 = vand.u32 %v304, 4294901760
        %v2130 = vsub.f32 %v304, %v2129
        %2131 = vmatpush1.msra.mxu0 %v2130
        %v2132 = vand.u32 %v309, 4294901760
        %v2133 = vsub.f32 %v309, %v2132
        %2134 = vmatprep.subr.mxu0 %v2133
        %v2135 = vand.u32 %v308, 4294901760
        %v2136 = vsub.f32 %v308, %v2135
        %2137 = vmatpush1.msra.mxu0 %v2136
        %v2138 = vand.u32 %v313, 4294901760
        %v2139 = vsub.f32 %v313, %v2138
        %2140 = vmatprep.subr.mxu0 %v2139
        %v2141 = vand.u32 %v312, 4294901760
        %v2142 = vsub.f32 %v312, %v2141
        %2143 = vmatpush1.msra.mxu0 %v2142
        %v2144 = vand.u32 %v317, 4294901760
        %v2145 = vsub.f32 %v317, %v2144
        %2146 = vmatprep.subr.mxu0 %v2145
        %v2147 = vand.u32 %v316, 4294901760
        %v2148 = vsub.f32 %v316, %v2147
        %2149 = vmatpush1.msra.mxu0 %v2148
        %v2150 = vand.u32 %v321, 4294901760
        %v2151 = vsub.f32 %v321, %v2150
        %2152 = vmatprep.subr.mxu0 %v2151
        %v2153 = vand.u32 %v320, 4294901760
        %v2154 = vsub.f32 %v320, %v2153
        %2155 = vmatpush1.msra.mxu0 %v2154
        %v2156 = vand.u32 %v325, 4294901760
        %v2157 = vsub.f32 %v325, %v2156
        %2158 = vmatprep.subr.mxu0 %v2157
        %v2159 = vand.u32 %v324, 4294901760
        %v2160 = vsub.f32 %v324, %v2159
        %2161 = vmatpush1.msra.mxu0 %v2160
        %v2162 = vand.u32 %v329, 4294901760
        %v2163 = vsub.f32 %v329, %v2162
        %2164 = vmatprep.subr.mxu0 %v2163
        %v2165 = vand.u32 %v328, 4294901760
        %v2166 = vsub.f32 %v328, %v2165
        %2167 = vmatpush1.msra.mxu0 %v2166
        %v2168 = vand.u32 %v333, 4294901760
        %v2169 = vsub.f32 %v333, %v2168
        %2170 = vmatprep.subr.mxu0 %v2169
        %v2171 = vand.u32 %v332, 4294901760
        %v2172 = vsub.f32 %v332, %v2171
        %2173 = vmatpush1.msra.mxu0 %v2172
        %v2174 = vand.u32 %v337, 4294901760
        %v2175 = vsub.f32 %v337, %v2174
        %2176 = vmatprep.subr.mxu0 %v2175
        %v2177 = vand.u32 %v336, 4294901760
        %v2178 = vsub.f32 %v336, %v2177
        %2179 = vmatpush1.msra.mxu0 %v2178
        %v2180 = vand.u32 %v341, 4294901760
        %v2181 = vsub.f32 %v341, %v2180
        %2182 = vmatprep.subr.mxu0 %v2181
        %v2183 = vand.u32 %v340, 4294901760
        %v2184 = vsub.f32 %v340, %v2183
        %2185 = vmatpush1.msra.mxu0 %v2184
        %v2186 = vand.u32 %v345, 4294901760
        %v2187 = vsub.f32 %v345, %v2186
        %2188 = vmatprep.subr.mxu0 %v2187
        %v2189 = vand.u32 %v344, 4294901760
        %v2190 = vsub.f32 %v344, %v2189
        %2191 = vmatpush1.msra.mxu0 %v2190
        %2192 = vmatprep.subr.mxu0 0.0
        %2193 = vmatpush1.msra.mxu0 0.0
        %2194 = vmatprep.subr.mxu0 0.0
        %2195 = vmatpush1.msra.mxu0 0.0
        %2196 = vmatprep.subr.mxu0 0.0
        %2197 = vmatpush1.msra.mxu0 0.0
        %2198 = vmatprep.subr.mxu0 0.0
        %2199 = vmatpush1.msra.mxu0 0.0
        %2200 = vmatprep.subr.mxu0 0.0
        %2201 = vmatpush1.msra.mxu0 0.0
        %2202 = vmatprep.subr.mxu0 0.0
        %2203 = vmatpush1.msra.mxu0 0.0
        %2204 = vmatprep.subr.mxu0 0.0
        %2205 = vmatpush1.msra.mxu0 0.0
        %2206 = vmatprep.subr.mxu0 0.0
        %2207 = vmatpush1.msra.mxu0 0.0
        %2208 = vmatprep.subr.mxu0 0.0
        %2209 = vmatpush1.msra.mxu0 0.0
        %2210 = vmatprep.subr.mxu0 0.0
        %2211 = vmatpush1.msra.mxu0 0.0
        %2212 = vmatprep.subr.mxu0 0.0
        %2213 = vmatpush1.msra.mxu0 0.0
        %2214 = vmatprep.subr.mxu0 0.0
        %2215 = vmatpush1.msra.mxu0 0.0
        %2216 = vmatprep.subr.mxu0 0.0
        %2217 = vmatpush1.msra.mxu0 0.0
        %2218 = vmatprep.subr.mxu0 0.0
        %2219 = vmatpush1.msra.mxu0 0.0
        %2220 = vmatprep.subr.mxu0 0.0
        %2221 = vmatpush1.msra.mxu0 0.0
        %2222 = vmatprep.subr.mxu0 0.0
        %2223 = vmatpush1.msra.mxu0 0.0
        %2224 = vmatprep.mubr.f32.mxu0 0.0
        %v2225 = vand.u32 %v274, 4294901760
        %v2226 = vsub.f32 %v274, %v2225
        %2227 = vmatmul.mubr.f32.gmra.mrb[0].mxu0 %v2226
        %v2228 = vpop.f32.mrb[0].mxu0
        %v2229 = vadd.f32 %v2043, %v2228
        %v2230 = vpop.f32.mrb[0].mxu0
        %v2231 = vadd.f32 %v2045, %v2230
        %2232 = vmatprep.mubr.f32.mxu0 0.0
        %v2233 = vand.u32 %v275, 4294901760
        %v2234 = vsub.f32 %v275, %v2233
        %2235 = vmatmul.mubr.f32.gmra.mrb[0].mxu0 %v2234
        %v2236 = vpop.f32.mrb[0].mxu0
        %v2237 = vadd.f32 %v2050, %v2236
        %v2238 = vpop.f32.mrb[0].mxu0
        %v2239 = vadd.f32 %v2052, %v2238
        %2240 = vmatprep.mubr.f32.mxu0 0.0
        %v2241 = vand.u32 %v276, 4294901760
        %v2242 = vsub.f32 %v276, %v2241
        %2243 = vmatmul.mubr.f32.gmra.mrb[0].mxu0 %v2242
        %v2244 = vpop.f32.mrb[0].mxu0
        %v2245 = vadd.f32 %v2057, %v2244
        %v2246 = vpop.f32.mrb[0].mxu0
        %v2247 = vadd.f32 %v2059, %v2246
        %2248 = vmatprep.mubr.f32.mxu0 0.0
        %v2249 = vand.u32 %v277, 4294901760
        %v2250 = vsub.f32 %v277, %v2249
        %2251 = vmatmul.mubr.f32.gmra.mrb[0].mxu0 %v2250
        %v2252 = vpop.f32.mrb[0].mxu0
        %v2253 = vadd.f32 %v2064, %v2252
        %v2254 = vpop.f32.mrb[0].mxu0
        %v2255 = vadd.f32 %v2066, %v2254
        %2256 = vmatprep.mubr.f32.mxu0 0.0
        %v2257 = vand.u32 %v278, 4294901760
        %v2258 = vsub.f32 %v278, %v2257
        %2259 = vmatmul.mubr.f32.gmra.mrb[0].mxu0 %v2258
        %v2260 = vpop.f32.mrb[0].mxu0
        %v2261 = vadd.f32 %v2071, %v2260
        %v2262 = vpop.f32.mrb[0].mxu0
        %v2263 = vadd.f32 %v2073, %v2262
        %2264 = vmatprep.mubr.f32.mxu0 0.0
        %v2265 = vand.u32 %v279, 4294901760
        %v2266 = vsub.f32 %v279, %v2265
        %2267 = vmatmul.mubr.f32.gmra.mrb[0].mxu0 %v2266
        %v2268 = vpop.f32.mrb[0].mxu0
        %v2269 = vadd.f32 %v2078, %v2268
        %v2270 = vpop.f32.mrb[0].mxu0
        %v2271 = vadd.f32 %v2080, %v2270
        %2272 = vmatprep.mubr.f32.mxu0 0.0
        %v2273 = vand.u32 %v280, 4294901760
        %v2274 = vsub.f32 %v280, %v2273
        %2275 = vmatmul.mubr.f32.gmra.mrb[0].mxu0 %v2274
        %v2276 = vpop.f32.mrb[0].mxu0
        %v2277 = vadd.f32 %v2085, %v2276
        %v2278 = vpop.f32.mrb[0].mxu0
        %v2279 = vadd.f32 %v2087, %v2278
        %2280 = vmatprep.mubr.f32.mxu0 0.0
        %v2281 = vand.u32 %v281, 4294901760
        %v2282 = vsub.f32 %v281, %v2281
        %2283 = vmatmul.mubr.f32.gmra.mrb[0].mxu0 %v2282
        %v2284 = vpop.f32.mrb[0].mxu0
        %v2285 = vadd.f32 %v2092, %v2284
        %v2286 = vpop.f32.mrb[0].mxu0
        %v2287 = vadd.f32 %v2094, %v2286
        %2288 = vdwg.mxu0
        %v2289 = vand.u32 %v285, 4294901760
        %2290 = vmatprep.subr.mxu0 %v2289
        %v2291 = vand.u32 %v284, 4294901760
        %2292 = vmatpush1.msra.mxu0 %v2291
        %v2293 = vand.u32 %v289, 4294901760
        %2294 = vmatprep.subr.mxu0 %v2293
        %v2295 = vand.u32 %v288, 4294901760
        %2296 = vmatpush1.msra.mxu0 %v2295
        %v2297 = vand.u32 %v293, 4294901760
        %2298 = vmatprep.subr.mxu0 %v2297
        %v2299 = vand.u32 %v292, 4294901760
        %2300 = vmatpush1.msra.mxu0 %v2299
        %v2301 = vand.u32 %v297, 4294901760
        %2302 = vmatprep.subr.mxu0 %v2301
        %v2303 = vand.u32 %v296, 4294901760
        %2304 = vmatpush1.msra.mxu0 %v2303
        %v2305 = vand.u32 %v301, 4294901760
        %2306 = vmatprep.subr.mxu0 %v2305
        %v2307 = vand.u32 %v300, 4294901760
        %2308 = vmatpush1.msra.mxu0 %v2307
        %v2309 = vand.u32 %v305, 4294901760
        %2310 = vmatprep.subr.mxu0 %v2309
        %v2311 = vand.u32 %v304, 4294901760
        %2312 = vmatpush1.msra.mxu0 %v2311
        %v2313 = vand.u32 %v309, 4294901760
        %2314 = vmatprep.subr.mxu0 %v2313
        %v2315 = vand.u32 %v308, 4294901760
        %2316 = vmatpush1.msra.mxu0 %v2315
        %v2317 = vand.u32 %v313, 4294901760
        %2318 = vmatprep.subr.mxu0 %v2317
        %v2319 = vand.u32 %v312, 4294901760
        %2320 = vmatpush1.msra.mxu0 %v2319
        %v2321 = vand.u32 %v317, 4294901760
        %2322 = vmatprep.subr.mxu0 %v2321
        %v2323 = vand.u32 %v316, 4294901760
        %2324 = vmatpush1.msra.mxu0 %v2323
        %v2325 = vand.u32 %v321, 4294901760
        %2326 = vmatprep.subr.mxu0 %v2325
        %v2327 = vand.u32 %v320, 4294901760
        %2328 = vmatpush1.msra.mxu0 %v2327
        %v2329 = vand.u32 %v325, 4294901760
        %2330 = vmatprep.subr.mxu0 %v2329
        %v2331 = vand.u32 %v324, 4294901760
        %2332 = vmatpush1.msra.mxu0 %v2331
        %v2333 = vand.u32 %v329, 4294901760
        %2334 = vmatprep.subr.mxu0 %v2333
        %v2335 = vand.u32 %v328, 4294901760
        %2336 = vmatpush1.msra.mxu0 %v2335
        %v2337 = vand.u32 %v333, 4294901760
        %2338 = vmatprep.subr.mxu0 %v2337
        %v2339 = vand.u32 %v332, 4294901760
        %2340 = vmatpush1.msra.mxu0 %v2339
        %v2341 = vand.u32 %v337, 4294901760
        %2342 = vmatprep.subr.mxu0 %v2341
        %v2343 = vand.u32 %v336, 4294901760
        %2344 = vmatpush1.msra.mxu0 %v2343
        %v2345 = vand.u32 %v341, 4294901760
        %2346 = vmatprep.subr.mxu0 %v2345
        %v2347 = vand.u32 %v340, 4294901760
        %2348 = vmatpush1.msra.mxu0 %v2347
        %v2349 = vand.u32 %v345, 4294901760
        %2350 = vmatprep.subr.mxu0 %v2349
        %v2351 = vand.u32 %v344, 4294901760
        %2352 = vmatpush1.msra.mxu0 %v2351
        %2353 = vmatprep.subr.mxu0 0.0
        %2354 = vmatpush1.msra.mxu0 0.0
        %2355 = vmatprep.subr.mxu0 0.0
        %2356 = vmatpush1.msra.mxu0 0.0
        %2357 = vmatprep.subr.mxu0 0.0
        %2358 = vmatpush1.msra.mxu0 0.0
        %2359 = vmatprep.subr.mxu0 0.0
        %2360 = vmatpush1.msra.mxu0 0.0
        %2361 = vmatprep.subr.mxu0 0.0
        %2362 = vmatpush1.msra.mxu0 0.0
        %2363 = vmatprep.subr.mxu0 0.0
        %2364 = vmatpush1.msra.mxu0 0.0
        %2365 = vmatprep.subr.mxu0 0.0
        %2366 = vmatpush1.msra.mxu0 0.0
        %2367 = vmatprep.subr.mxu0 0.0
        %2368 = vmatpush1.msra.mxu0 0.0
        %2369 = vmatprep.subr.mxu0 0.0
        %2370 = vmatpush1.msra.mxu0 0.0
        %2371 = vmatprep.subr.mxu0 0.0
        %2372 = vmatpush1.msra.mxu0 0.0
        %2373 = vmatprep.subr.mxu0 0.0
        %2374 = vmatpush1.msra.mxu0 0.0
        %2375 = vmatprep.subr.mxu0 0.0
        %2376 = vmatpush1.msra.mxu0 0.0
        %2377 = vmatprep.subr.mxu0 0.0
        %2378 = vmatpush1.msra.mxu0 0.0
        %2379 = vmatprep.subr.mxu0 0.0
        %2380 = vmatpush1.msra.mxu0 0.0
        %2381 = vmatprep.subr.mxu0 0.0
        %2382 = vmatpush1.msra.mxu0 0.0
        %2383 = vmatprep.subr.mxu0 0.0
        %2384 = vmatpush1.msra.mxu0 0.0
        %2385 = vmatprep.mubr.f32.mxu0 0.0
        %v2386 = vand.u32 %v274, 4294901760
        %v2387 = vsub.f32 %v274, %v2386
        %v2388 = vand.u32 %v2387, 4294901760
        %2389 = vmatmul.mubr.f32.gmra.mrb[0].mxu0 %v2388
        %v2390 = vpop.f32.mrb[0].mxu0
        %v2391 = vadd.f32 %v2229, %v2390
        %v2392 = vpop.f32.mrb[0].mxu0
        %v2393 = vadd.f32 %v2231, %v2392
        %2394 = vmatprep.mubr.f32.mxu0 0.0
        %v2395 = vand.u32 %v275, 4294901760
        %v2396 = vsub.f32 %v275, %v2395
        %v2397 = vand.u32 %v2396, 4294901760
        %2398 = vmatmul.mubr.f32.gmra.mrb[0].mxu0 %v2397
        %v2399 = vpop.f32.mrb[0].mxu0
        %v2400 = vadd.f32 %v2237, %v2399
        %v2401 = vpop.f32.mrb[0].mxu0
        %v2402 = vadd.f32 %v2239, %v2401
        %2403 = vmatprep.mubr.f32.mxu0 0.0
        %v2404 = vand.u32 %v276, 4294901760
        %v2405 = vsub.f32 %v276, %v2404
        %v2406 = vand.u32 %v2405, 4294901760
        %2407 = vmatmul.mubr.f32.gmra.mrb[0].mxu0 %v2406
        %v2408 = vpop.f32.mrb[0].mxu0
        %v2409 = vadd.f32 %v2245, %v2408
        %v2410 = vpop.f32.mrb[0].mxu0
        %v2411 = vadd.f32 %v2247, %v2410
        %2412 = vmatprep.mubr.f32.mxu0 0.0
        %v2413 = vand.u32 %v277, 4294901760
        %v2414 = vsub.f32 %v277, %v2413
        %v2415 = vand.u32 %v2414, 4294901760
        %2416 = vmatmul.mubr.f32.gmra.mrb[0].mxu0 %v2415
        %v2417 = vpop.f32.mrb[0].mxu0
        %v2418 = vadd.f32 %v2253, %v2417
        %v2419 = vpop.f32.mrb[0].mxu0
        %v2420 = vadd.f32 %v2255, %v2419
        %2421 = vmatprep.mubr.f32.mxu0 0.0
        %v2422 = vand.u32 %v278, 4294901760
        %v2423 = vsub.f32 %v278, %v2422
        %v2424 = vand.u32 %v2423, 4294901760
        %2425 = vmatmul.mubr.f32.gmra.mrb[0].mxu0 %v2424
        %v2426 = vpop.f32.mrb[0].mxu0
        %v2427 = vadd.f32 %v2261, %v2426
        %v2428 = vpop.f32.mrb[0].mxu0
        %v2429 = vadd.f32 %v2263, %v2428
        %2430 = vmatprep.mubr.f32.mxu0 0.0
        %v2431 = vand.u32 %v279, 4294901760
        %v2432 = vsub.f32 %v279, %v2431
        %v2433 = vand.u32 %v2432, 4294901760
        %2434 = vmatmul.mubr.f32.gmra.mrb[0].mxu0 %v2433
        %v2435 = vpop.f32.mrb[0].mxu0
        %v2436 = vadd.f32 %v2269, %v2435
        %v2437 = vpop.f32.mrb[0].mxu0
        %v2438 = vadd.f32 %v2271, %v2437
        %2439 = vmatprep.mubr.f32.mxu0 0.0
        %v2440 = vand.u32 %v280, 4294901760
        %v2441 = vsub.f32 %v280, %v2440
        %v2442 = vand.u32 %v2441, 4294901760
        %2443 = vmatmul.mubr.f32.gmra.mrb[0].mxu0 %v2442
        %v2444 = vpop.f32.mrb[0].mxu0
        %v2445 = vadd.f32 %v2277, %v2444
        %v2446 = vpop.f32.mrb[0].mxu0
        %v2447 = vadd.f32 %v2279, %v2446
        %2448 = vmatprep.mubr.f32.mxu0 0.0
        %v2449 = vand.u32 %v281, 4294901760
        %v2450 = vsub.f32 %v281, %v2449
        %v2451 = vand.u32 %v2450, 4294901760
        %2452 = vmatmul.mubr.f32.gmra.mrb[0].mxu0 %v2451
        %v2453 = vpop.f32.mrb[0].mxu0
        %v2454 = vadd.f32 %v2285, %v2453
        %v2455 = vpop.f32.mrb[0].mxu0
        %v2456 = vadd.f32 %v2287, %v2455
        %2457 = vdwg.mxu0
        %v2458 = vand.u32 %v285, 4294901760
        %v2459 = vsub.f32 %v285, %v2458
        %v2460 = vand.u32 %v2459, 4294901760
        %2461 = vmatprep.subr.mxu0 %v2460
        %v2462 = vand.u32 %v284, 4294901760
        %v2463 = vsub.f32 %v284, %v2462
        %v2464 = vand.u32 %v2463, 4294901760
        %2465 = vmatpush1.msra.mxu0 %v2464
        %v2466 = vand.u32 %v289, 4294901760
        %v2467 = vsub.f32 %v289, %v2466
        %v2468 = vand.u32 %v2467, 4294901760
        %2469 = vmatprep.subr.mxu0 %v2468
        %v2470 = vand.u32 %v288, 4294901760
        %v2471 = vsub.f32 %v288, %v2470
        %v2472 = vand.u32 %v2471, 4294901760
        %2473 = vmatpush1.msra.mxu0 %v2472
        %v2474 = vand.u32 %v293, 4294901760
        %v2475 = vsub.f32 %v293, %v2474
        %v2476 = vand.u32 %v2475, 4294901760
        %2477 = vmatprep.subr.mxu0 %v2476
        %v2478 = vand.u32 %v292, 4294901760
        %v2479 = vsub.f32 %v292, %v2478
        %v2480 = vand.u32 %v2479, 4294901760
        %2481 = vmatpush1.msra.mxu0 %v2480
        %v2482 = vand.u32 %v297, 4294901760
        %v2483 = vsub.f32 %v297, %v2482
        %v2484 = vand.u32 %v2483, 4294901760
        %2485 = vmatprep.subr.mxu0 %v2484
        %v2486 = vand.u32 %v296, 4294901760
        %v2487 = vsub.f32 %v296, %v2486
        %v2488 = vand.u32 %v2487, 4294901760
        %2489 = vmatpush1.msra.mxu0 %v2488
        %v2490 = vand.u32 %v301, 4294901760
        %v2491 = vsub.f32 %v301, %v2490
        %v2492 = vand.u32 %v2491, 4294901760
        %2493 = vmatprep.subr.mxu0 %v2492
        %v2494 = vand.u32 %v300, 4294901760
        %v2495 = vsub.f32 %v300, %v2494
        %v2496 = vand.u32 %v2495, 4294901760
        %2497 = vmatpush1.msra.mxu0 %v2496
        %v2498 = vand.u32 %v305, 4294901760
        %v2499 = vsub.f32 %v305, %v2498
        %v2500 = vand.u32 %v2499, 4294901760
        %2501 = vmatprep.subr.mxu0 %v2500
        %v2502 = vand.u32 %v304, 4294901760
        %v2503 = vsub.f32 %v304, %v2502
        %v2504 = vand.u32 %v2503, 4294901760
        %2505 = vmatpush1.msra.mxu0 %v2504
        %v2506 = vand.u32 %v309, 4294901760
        %v2507 = vsub.f32 %v309, %v2506
        %v2508 = vand.u32 %v2507, 4294901760
        %2509 = vmatprep.subr.mxu0 %v2508
        %v2510 = vand.u32 %v308, 4294901760
        %v2511 = vsub.f32 %v308, %v2510
        %v2512 = vand.u32 %v2511, 4294901760
        %2513 = vmatpush1.msra.mxu0 %v2512
        %v2514 = vand.u32 %v313, 4294901760
        %v2515 = vsub.f32 %v313, %v2514
        %v2516 = vand.u32 %v2515, 4294901760
        %2517 = vmatprep.subr.mxu0 %v2516
        %v2518 = vand.u32 %v312, 4294901760
        %v2519 = vsub.f32 %v312, %v2518
        %v2520 = vand.u32 %v2519, 4294901760
        %2521 = vmatpush1.msra.mxu0 %v2520
        %v2522 = vand.u32 %v317, 4294901760
        %v2523 = vsub.f32 %v317, %v2522
        %v2524 = vand.u32 %v2523, 4294901760
        %2525 = vmatprep.subr.mxu0 %v2524
        %v2526 = vand.u32 %v316, 4294901760
        %v2527 = vsub.f32 %v316, %v2526
        %v2528 = vand.u32 %v2527, 4294901760
        %2529 = vmatpush1.msra.mxu0 %v2528
        %v2530 = vand.u32 %v321, 4294901760
        %v2531 = vsub.f32 %v321, %v2530
        %v2532 = vand.u32 %v2531, 4294901760
        %2533 = vmatprep.subr.mxu0 %v2532
        %v2534 = vand.u32 %v320, 4294901760
        %v2535 = vsub.f32 %v320, %v2534
        %v2536 = vand.u32 %v2535, 4294901760
        %2537 = vmatpush1.msra.mxu0 %v2536
        %v2538 = vand.u32 %v325, 4294901760
        %v2539 = vsub.f32 %v325, %v2538
        %v2540 = vand.u32 %v2539, 4294901760
        %2541 = vmatprep.subr.mxu0 %v2540
        %v2542 = vand.u32 %v324, 4294901760
        %v2543 = vsub.f32 %v324, %v2542
        %v2544 = vand.u32 %v2543, 4294901760
        %2545 = vmatpush1.msra.mxu0 %v2544
        %v2546 = vand.u32 %v329, 4294901760
        %v2547 = vsub.f32 %v329, %v2546
        %v2548 = vand.u32 %v2547, 4294901760
        %2549 = vmatprep.subr.mxu0 %v2548
        %v2550 = vand.u32 %v328, 4294901760
        %v2551 = vsub.f32 %v328, %v2550
        %v2552 = vand.u32 %v2551, 4294901760
        %2553 = vmatpush1.msra.mxu0 %v2552
        %v2554 = vand.u32 %v333, 4294901760
        %v2555 = vsub.f32 %v333, %v2554
        %v2556 = vand.u32 %v2555, 4294901760
        %2557 = vmatprep.subr.mxu0 %v2556
        %v2558 = vand.u32 %v332, 4294901760
        %v2559 = vsub.f32 %v332, %v2558
        %v2560 = vand.u32 %v2559, 4294901760
        %2561 = vmatpush1.msra.mxu0 %v2560
        %v2562 = vand.u32 %v337, 4294901760
        %v2563 = vsub.f32 %v337, %v2562
        %v2564 = vand.u32 %v2563, 4294901760
        %2565 = vmatprep.subr.mxu0 %v2564
        %v2566 = vand.u32 %v336, 4294901760
        %v2567 = vsub.f32 %v336, %v2566
        %v2568 = vand.u32 %v2567, 4294901760
        %2569 = vmatpush1.msra.mxu0 %v2568
        %v2570 = vand.u32 %v341, 4294901760
        %v2571 = vsub.f32 %v341, %v2570
        %v2572 = vand.u32 %v2571, 4294901760
        %2573 = vmatprep.subr.mxu0 %v2572
        %v2574 = vand.u32 %v340, 4294901760
        %v2575 = vsub.f32 %v340, %v2574
        %v2576 = vand.u32 %v2575, 4294901760
        %2577 = vmatpush1.msra.mxu0 %v2576
        %v2578 = vand.u32 %v345, 4294901760
        %v2579 = vsub.f32 %v345, %v2578
        %v2580 = vand.u32 %v2579, 4294901760
        %2581 = vmatprep.subr.mxu0 %v2580
        %v2582 = vand.u32 %v344, 4294901760
        %v2583 = vsub.f32 %v344, %v2582
        %v2584 = vand.u32 %v2583, 4294901760
        %2585 = vmatpush1.msra.mxu0 %v2584
        %2586 = vmatprep.subr.mxu0 0.0
        %2587 = vmatpush1.msra.mxu0 0.0
        %2588 = vmatprep.subr.mxu0 0.0
        %2589 = vmatpush1.msra.mxu0 0.0
        %2590 = vmatprep.subr.mxu0 0.0
        %2591 = vmatpush1.msra.mxu0 0.0
        %2592 = vmatprep.subr.mxu0 0.0
        %2593 = vmatpush1.msra.mxu0 0.0
        %2594 = vmatprep.subr.mxu0 0.0
        %2595 = vmatpush1.msra.mxu0 0.0
        %2596 = vmatprep.subr.mxu0 0.0
        %2597 = vmatpush1.msra.mxu0 0.0
        %2598 = vmatprep.subr.mxu0 0.0
        %2599 = vmatpush1.msra.mxu0 0.0
        %2600 = vmatprep.subr.mxu0 0.0
        %2601 = vmatpush1.msra.mxu0 0.0
        %2602 = vmatprep.subr.mxu0 0.0
        %2603 = vmatpush1.msra.mxu0 0.0
        %2604 = vmatprep.subr.mxu0 0.0
        %2605 = vmatpush1.msra.mxu0 0.0
        %2606 = vmatprep.subr.mxu0 0.0
        %2607 = vmatpush1.msra.mxu0 0.0
        %2608 = vmatprep.subr.mxu0 0.0
        %2609 = vmatpush1.msra.mxu0 0.0
        %2610 = vmatprep.subr.mxu0 0.0
        %2611 = vmatpush1.msra.mxu0 0.0
        %2612 = vmatprep.subr.mxu0 0.0
        %2613 = vmatpush1.msra.mxu0 0.0
        %2614 = vmatprep.subr.mxu0 0.0
        %2615 = vmatpush1.msra.mxu0 0.0
        %2616 = vmatprep.subr.mxu0 0.0
        %2617 = vmatpush1.msra.mxu0 0.0
        %2618 = vmatprep.mubr.f32.mxu0 0.0
        %v2619 = vand.u32 %v274, 4294901760
        %2620 = vmatmul.mubr.f32.gmra.mrb[0].mxu0 %v2619
        %v2621 = vpop.f32.mrb[0].mxu0
        %v2622 = vadd.f32 %v2391, %v2621
        %v2623 = vpop.f32.mrb[0].mxu0
        %v2624 = vadd.f32 %v2393, %v2623
        %2625 = vmatprep.mubr.f32.mxu0 0.0
        %v2626 = vand.u32 %v275, 4294901760
        %2627 = vmatmul.mubr.f32.gmra.mrb[0].mxu0 %v2626
        %v2628 = vpop.f32.mrb[0].mxu0
        %v2629 = vadd.f32 %v2400, %v2628
        %v2630 = vpop.f32.mrb[0].mxu0
        %v2631 = vadd.f32 %v2402, %v2630
        %2632 = vmatprep.mubr.f32.mxu0 0.0
        %v2633 = vand.u32 %v276, 4294901760
        %2634 = vmatmul.mubr.f32.gmra.mrb[0].mxu0 %v2633
        %v2635 = vpop.f32.mrb[0].mxu0
        %v2636 = vadd.f32 %v2409, %v2635
        %v2637 = vpop.f32.mrb[0].mxu0
        %v2638 = vadd.f32 %v2411, %v2637
        %2639 = vmatprep.mubr.f32.mxu0 0.0
        %v2640 = vand.u32 %v277, 4294901760
        %2641 = vmatmul.mubr.f32.gmra.mrb[0].mxu0 %v2640
        %v2642 = vpop.f32.mrb[0].mxu0
        %v2643 = vadd.f32 %v2418, %v2642
        %v2644 = vpop.f32.mrb[0].mxu0
        %v2645 = vadd.f32 %v2420, %v2644
        %2646 = vmatprep.mubr.f32.mxu0 0.0
        %v2647 = vand.u32 %v278, 4294901760
        %2648 = vmatmul.mubr.f32.gmra.mrb[0].mxu0 %v2647
        %v2649 = vpop.f32.mrb[0].mxu0
        %v2650 = vadd.f32 %v2427, %v2649
        %v2651 = vpop.f32.mrb[0].mxu0
        %v2652 = vadd.f32 %v2429, %v2651
        %2653 = vmatprep.mubr.f32.mxu0 0.0
        %v2654 = vand.u32 %v279, 4294901760
        %2655 = vmatmul.mubr.f32.gmra.mrb[0].mxu0 %v2654
        %v2656 = vpop.f32.mrb[0].mxu0
        %v2657 = vadd.f32 %v2436, %v2656
        %v2658 = vpop.f32.mrb[0].mxu0
        %v2659 = vadd.f32 %v2438, %v2658
        %2660 = vmatprep.mubr.f32.mxu0 0.0
        %v2661 = vand.u32 %v280, 4294901760
        %2662 = vmatmul.mubr.f32.gmra.mrb[0].mxu0 %v2661
        %v2663 = vpop.f32.mrb[0].mxu0
        %v2664 = vadd.f32 %v2445, %v2663
        %v2665 = vpop.f32.mrb[0].mxu0
        %v2666 = vadd.f32 %v2447, %v2665
        %2667 = vmatprep.mubr.f32.mxu0 0.0
        %v2668 = vand.u32 %v281, 4294901760
        %2669 = vmatmul.mubr.f32.gmra.mrb[0].mxu0 %v2668
        %v2670 = vpop.f32.mrb[0].mxu0
        %v2671 = vadd.f32 %v2454, %v2670
        %v2672 = vpop.f32.mrb[0].mxu0
        %v2673 = vadd.f32 %v2456, %v2672
        %2674 = vdwg.mxu0
        %v2675 = vand.u32 %v285, 4294901760
        %2676 = vmatprep.subr.mxu0 %v2675
        %v2677 = vand.u32 %v284, 4294901760
        %2678 = vmatpush1.msra.mxu0 %v2677
        %v2679 = vand.u32 %v289, 4294901760
        %2680 = vmatprep.subr.mxu0 %v2679
        %v2681 = vand.u32 %v288, 4294901760
        %2682 = vmatpush1.msra.mxu0 %v2681
        %v2683 = vand.u32 %v293, 4294901760
        %2684 = vmatprep.subr.mxu0 %v2683
        %v2685 = vand.u32 %v292, 4294901760
        %2686 = vmatpush1.msra.mxu0 %v2685
        %v2687 = vand.u32 %v297, 4294901760
        %2688 = vmatprep.subr.mxu0 %v2687
        %v2689 = vand.u32 %v296, 4294901760
        %2690 = vmatpush1.msra.mxu0 %v2689
        %v2691 = vand.u32 %v301, 4294901760
        %2692 = vmatprep.subr.mxu0 %v2691
        %v2693 = vand.u32 %v300, 4294901760
        %2694 = vmatpush1.msra.mxu0 %v2693
        %v2695 = vand.u32 %v305, 4294901760
        %2696 = vmatprep.subr.mxu0 %v2695
        %v2697 = vand.u32 %v304, 4294901760
        %2698 = vmatpush1.msra.mxu0 %v2697
        %v2699 = vand.u32 %v309, 4294901760
        %2700 = vmatprep.subr.mxu0 %v2699
        %v2701 = vand.u32 %v308, 4294901760
        %2702 = vmatpush1.msra.mxu0 %v2701
        %v2703 = vand.u32 %v313, 4294901760
        %2704 = vmatprep.subr.mxu0 %v2703
        %v2705 = vand.u32 %v312, 4294901760
        %2706 = vmatpush1.msra.mxu0 %v2705
        %v2707 = vand.u32 %v317, 4294901760
        %2708 = vmatprep.subr.mxu0 %v2707
        %v2709 = vand.u32 %v316, 4294901760
        %2710 = vmatpush1.msra.mxu0 %v2709
        %v2711 = vand.u32 %v321, 4294901760
        %2712 = vmatprep.subr.mxu0 %v2711
        %v2713 = vand.u32 %v320, 4294901760
        %2714 = vmatpush1.msra.mxu0 %v2713
        %v2715 = vand.u32 %v325, 4294901760
        %2716 = vmatprep.subr.mxu0 %v2715
        %v2717 = vand.u32 %v324, 4294901760
        %2718 = vmatpush1.msra.mxu0 %v2717
        %v2719 = vand.u32 %v329, 4294901760
        %2720 = vmatprep.subr.mxu0 %v2719
        %v2721 = vand.u32 %v328, 4294901760
        %2722 = vmatpush1.msra.mxu0 %v2721
        %v2723 = vand.u32 %v333, 4294901760
        %2724 = vmatprep.subr.mxu0 %v2723
        %v2725 = vand.u32 %v332, 4294901760
        %2726 = vmatpush1.msra.mxu0 %v2725
        %v2727 = vand.u32 %v337, 4294901760
        %2728 = vmatprep.subr.mxu0 %v2727
        %v2729 = vand.u32 %v336, 4294901760
        %2730 = vmatpush1.msra.mxu0 %v2729
        %v2731 = vand.u32 %v341, 4294901760
        %2732 = vmatprep.subr.mxu0 %v2731
        %v2733 = vand.u32 %v340, 4294901760
        %2734 = vmatpush1.msra.mxu0 %v2733
        %v2735 = vand.u32 %v345, 4294901760
        %2736 = vmatprep.subr.mxu0 %v2735
        %v2737 = vand.u32 %v344, 4294901760
        %2738 = vmatpush1.msra.mxu0 %v2737
        %2739 = vmatprep.subr.mxu0 0.0
        %2740 = vmatpush1.msra.mxu0 0.0
        %2741 = vmatprep.subr.mxu0 0.0
        %2742 = vmatpush1.msra.mxu0 0.0
        %2743 = vmatprep.subr.mxu0 0.0
        %2744 = vmatpush1.msra.mxu0 0.0
        %2745 = vmatprep.subr.mxu0 0.0
        %2746 = vmatpush1.msra.mxu0 0.0
        %2747 = vmatprep.subr.mxu0 0.0
        %2748 = vmatpush1.msra.mxu0 0.0
        %2749 = vmatprep.subr.mxu0 0.0
        %2750 = vmatpush1.msra.mxu0 0.0
        %2751 = vmatprep.subr.mxu0 0.0
        %2752 = vmatpush1.msra.mxu0 0.0
        %2753 = vmatprep.subr.mxu0 0.0
        %2754 = vmatpush1.msra.mxu0 0.0
        %2755 = vmatprep.subr.mxu0 0.0
        %2756 = vmatpush1.msra.mxu0 0.0
        %2757 = vmatprep.subr.mxu0 0.0
        %2758 = vmatpush1.msra.mxu0 0.0
        %2759 = vmatprep.subr.mxu0 0.0
        %2760 = vmatpush1.msra.mxu0 0.0
        %2761 = vmatprep.subr.mxu0 0.0
        %2762 = vmatpush1.msra.mxu0 0.0
        %2763 = vmatprep.subr.mxu0 0.0
        %2764 = vmatpush1.msra.mxu0 0.0
        %2765 = vmatprep.subr.mxu0 0.0
        %2766 = vmatpush1.msra.mxu0 0.0
        %2767 = vmatprep.subr.mxu0 0.0
        %2768 = vmatpush1.msra.mxu0 0.0
        %2769 = vmatprep.subr.mxu0 0.0
        %2770 = vmatpush1.msra.mxu0 0.0
        %2771 = vmatprep.mubr.f32.mxu0 0.0
        %v2772 = vand.u32 %v274, 4294901760
        %2773 = vmatmul.mubr.f32.gmra.mrb[0].mxu0 %v2772
        %v2774 = vpop.f32.mrb[0].mxu0
        %v2775 = vadd.f32 %v2622, %v2774
        %v2776 = vpop.f32.mrb[0].mxu0
        %v2777 = vadd.f32 %v2624, %v2776
        %2778 = vmatprep.mubr.f32.mxu0 0.0
        %v2779 = vand.u32 %v275, 4294901760
        %2780 = vmatmul.mubr.f32.gmra.mrb[0].mxu0 %v2779
        %v2781 = vpop.f32.mrb[0].mxu0
        %v2782 = vadd.f32 %v2629, %v2781
        %v2783 = vpop.f32.mrb[0].mxu0
        %v2784 = vadd.f32 %v2631, %v2783
        %2785 = vmatprep.mubr.f32.mxu0 0.0
        %v2786 = vand.u32 %v276, 4294901760
        %2787 = vmatmul.mubr.f32.gmra.mrb[0].mxu0 %v2786
        %v2788 = vpop.f32.mrb[0].mxu0
        %v2789 = vadd.f32 %v2636, %v2788
        %v2790 = vpop.f32.mrb[0].mxu0
        %v2791 = vadd.f32 %v2638, %v2790
        %2792 = vmatprep.mubr.f32.mxu0 0.0
        %v2793 = vand.u32 %v277, 4294901760
        %2794 = vmatmul.mubr.f32.gmra.mrb[0].mxu0 %v2793
        %v2795 = vpop.f32.mrb[0].mxu0
        %v2796 = vadd.f32 %v2643, %v2795
        %v2797 = vpop.f32.mrb[0].mxu0
        %v2798 = vadd.f32 %v2645, %v2797
        %2799 = vmatprep.mubr.f32.mxu0 0.0
        %v2800 = vand.u32 %v278, 4294901760
        %2801 = vmatmul.mubr.f32.gmra.mrb[0].mxu0 %v2800
        %v2802 = vpop.f32.mrb[0].mxu0
        %v2803 = vadd.f32 %v2650, %v2802
        %v2804 = vpop.f32.mrb[0].mxu0
        %v2805 = vadd.f32 %v2652, %v2804
        %2806 = vmatprep.mubr.f32.mxu0 0.0
        %v2807 = vand.u32 %v279, 4294901760
        %2808 = vmatmul.mubr.f32.gmra.mrb[0].mxu0 %v2807
        %v2809 = vpop.f32.mrb[0].mxu0
        %v2810 = vadd.f32 %v2657, %v2809
        %v2811 = vpop.f32.mrb[0].mxu0
        %v2812 = vadd.f32 %v2659, %v2811
        %2813 = vmatprep.mubr.f32.mxu0 0.0
        %v2814 = vand.u32 %v280, 4294901760
        %2815 = vmatmul.mubr.f32.gmra.mrb[0].mxu0 %v2814
        %v2816 = vpop.f32.mrb[0].mxu0
        %v2817 = vadd.f32 %v2664, %v2816
        %v2818 = vpop.f32.mrb[0].mxu0
        %v2819 = vadd.f32 %v2666, %v2818
        %2820 = vmatprep.mubr.f32.mxu0 0.0
        %v2821 = vand.u32 %v281, 4294901760
        %2822 = vmatmul.mubr.f32.gmra.mrb[0].mxu0 %v2821
        %v2823 = vpop.f32.mrb[0].mxu0
        %v2824 = vadd.f32 %v2671, %v2823
        %v2825 = vpop.f32.mrb[0].mxu0
        %v2826 = vadd.f32 %v2673, %v2825
        %2827 = vdwg.mxu0
        %v2828 = vmul.f32 %v1577, 0.5
        %v2829 = vmul.f32 %v1579, 0.5
        %v2830 = vmul.f32 %v2775, 0.5
        %v2831 = vmul.f32 %v2777, 0.5
        %v2832 = vmul.f32 %v1584, 0.5
        %v2833 = vmul.f32 %v1586, 0.5
        %v2834 = vmul.f32 %v2782, 0.5
        %v2835 = vmul.f32 %v2784, 0.5
        %v2836 = vmul.f32 %v1591, 0.5
        %v2837 = vmul.f32 %v1593, 0.5
        %v2838 = vmul.f32 %v2789, 0.5
        %v2839 = vmul.f32 %v2791, 0.5
        %v2840 = vmul.f32 %v1598, 0.5
        %v2841 = vmul.f32 %v1600, 0.5
        %v2842 = vmul.f32 %v2796, 0.5
        %v2843 = vmul.f32 %v2798, 0.5
        %v2844 = vmul.f32 %v1605, 0.5
        %v2845 = vmul.f32 %v1607, 0.5
        %v2846 = vmul.f32 %v2803, 0.5
        %v2847 = vmul.f32 %v2805, 0.5
        %v2848 = vmul.f32 %v1612, 0.5
        %v2849 = vmul.f32 %v1614, 0.5
        %v2850 = vmul.f32 %v2810, 0.5
        %v2851 = vmul.f32 %v2812, 0.5
        %v2852 = vmul.f32 %v1619, 0.5
        %v2853 = vmul.f32 %v1621, 0.5
        %v2854 = vmul.f32 %v2817, 0.5
        %v2855 = vmul.f32 %v2819, 0.5
        %v2856 = vmul.f32 %v1626, 0.5
        %v2857 = vmul.f32 %v1628, 0.5
        %v2858 = vmul.f32 %v2824, 0.5
        %v2859 = vmul.f32 %v2826, 0.5
        %v2860 = vmul.f32 %v1577, 0.70710677
        %v2861 = vmul.f32 %v1579, 0.70710677
        %v2862 = vmul.f32 %v2775, 0.70710677
        %v2863 = vmul.f32 %v2777, 0.70710677
        %v2864 = vmul.f32 %v1584, 0.70710677
        %v2865 = vmul.f32 %v1586, 0.70710677
        %v2866 = vmul.f32 %v2782, 0.70710677
        %v2867 = vmul.f32 %v2784, 0.70710677
        %v2868 = vmul.f32 %v1591, 0.70710677
        %v2869 = vmul.f32 %v1593, 0.70710677
        %v2870 = vmul.f32 %v2789, 0.70710677
        %v2871 = vmul.f32 %v2791, 0.70710677
        %v2872 = vmul.f32 %v1598, 0.70710677
        %v2873 = vmul.f32 %v1600, 0.70710677
        %v2874 = vmul.f32 %v2796, 0.70710677
        %v2875 = vmul.f32 %v2798, 0.70710677
        %v2876 = vmul.f32 %v1605, 0.70710677
        %v2877 = vmul.f32 %v1607, 0.70710677
        %v2878 = vmul.f32 %v2803, 0.70710677
        %v2879 = vmul.f32 %v2805, 0.70710677
        %v2880 = vmul.f32 %v1612, 0.70710677
        %v2881 = vmul.f32 %v1614, 0.70710677
        %v2882 = vmul.f32 %v2810, 0.70710677
        %v2883 = vmul.f32 %v2812, 0.70710677
        %v2884 = vmul.f32 %v1619, 0.70710677
        %v2885 = vmul.f32 %v1621, 0.70710677
        %v2886 = vmul.f32 %v2817, 0.70710677
        %v2887 = vmul.f32 %v2819, 0.70710677
        %v2888 = vmul.f32 %v1626, 0.70710677
        %v2889 = vmul.f32 %v1628, 0.70710677
        %v2890 = vmul.f32 %v2824, 0.70710677
        %v2891 = vmul.f32 %v2826, 0.70710677
        %vm2892 = vcmp.lt.f32.partialorder %v2860, 0.0
        %vm2893 = vcmp.lt.f32.partialorder %v2861, 0.0
        %vm2894 = vcmp.lt.f32.partialorder %v2862, 0.0
        %vm2895 = vcmp.lt.f32.partialorder %v2863, 0.0
        %vm2896 = vcmp.lt.f32.partialorder %v2864, 0.0
        %vm2897 = vcmp.lt.f32.partialorder %v2865, 0.0
        %vm2898 = vcmp.lt.f32.partialorder %v2866, 0.0
        %vm2899 = vcmp.lt.f32.partialorder %v2867, 0.0
        %vm2900 = vcmp.lt.f32.partialorder %v2868, 0.0
        %vm2901 = vcmp.lt.f32.partialorder %v2869, 0.0
        %vm2902 = vcmp.lt.f32.partialorder %v2870, 0.0
        %vm2903 = vcmp.lt.f32.partialorder %v2871, 0.0
        %vm2904 = vcmp.lt.f32.partialorder %v2872, 0.0
        %vm2905 = vcmp.lt.f32.partialorder %v2873, 0.0
        %vm2906 = vcmp.lt.f32.partialorder %v2874, 0.0
        %vm2907 = vcmp.lt.f32.partialorder %v2875, 0.0
        %vm2908 = vcmp.lt.f32.partialorder %v2876, 0.0
        %vm2909 = vcmp.lt.f32.partialorder %v2877, 0.0
        %vm2910 = vcmp.lt.f32.partialorder %v2878, 0.0
        %vm2911 = vcmp.lt.f32.partialorder %v2879, 0.0
        %vm2912 = vcmp.lt.f32.partialorder %v2880, 0.0
        %vm2913 = vcmp.lt.f32.partialorder %v2881, 0.0
        %vm2914 = vcmp.lt.f32.partialorder %v2882, 0.0
        %vm2915 = vcmp.lt.f32.partialorder %v2883, 0.0
        %vm2916 = vcmp.lt.f32.partialorder %v2884, 0.0
        %vm2917 = vcmp.lt.f32.partialorder %v2885, 0.0
        %vm2918 = vcmp.lt.f32.partialorder %v2886, 0.0
        %vm2919 = vcmp.lt.f32.partialorder %v2887, 0.0
        %vm2920 = vcmp.lt.f32.partialorder %v2888, 0.0
        %vm2921 = vcmp.lt.f32.partialorder %v2889, 0.0
        %vm2922 = vcmp.lt.f32.partialorder %v2890, 0.0
        %vm2923 = vcmp.lt.f32.partialorder %v2891, 0.0
        %v2924 = vsel %vm2892, -1.0, 1.0
        %v2925 = vsel %vm2893, -1.0, 1.0
        %v2926 = vsel %vm2894, -1.0, 1.0
        %v2927 = vsel %vm2895, -1.0, 1.0
        %v2928 = vsel %vm2896, -1.0, 1.0
        %v2929 = vsel %vm2897, -1.0, 1.0
        %v2930 = vsel %vm2898, -1.0, 1.0
        %v2931 = vsel %vm2899, -1.0, 1.0
        %v2932 = vsel %vm2900, -1.0, 1.0
        %v2933 = vsel %vm2901, -1.0, 1.0
        %v2934 = vsel %vm2902, -1.0, 1.0
        %v2935 = vsel %vm2903, -1.0, 1.0
        %v2936 = vsel %vm2904, -1.0, 1.0
        %v2937 = vsel %vm2905, -1.0, 1.0
        %v2938 = vsel %vm2906, -1.0, 1.0
        %v2939 = vsel %vm2907, -1.0, 1.0
        %v2940 = vsel %vm2908, -1.0, 1.0
        %v2941 = vsel %vm2909, -1.0, 1.0
        %v2942 = vsel %vm2910, -1.0, 1.0
        %v2943 = vsel %vm2911, -1.0, 1.0
        %v2944 = vsel %vm2912, -1.0, 1.0
        %v2945 = vsel %vm2913, -1.0, 1.0
        %v2946 = vsel %vm2914, -1.0, 1.0
        %v2947 = vsel %vm2915, -1.0, 1.0
        %v2948 = vsel %vm2916, -1.0, 1.0
        %v2949 = vsel %vm2917, -1.0, 1.0
        %v2950 = vsel %vm2918, -1.0, 1.0
        %v2951 = vsel %vm2919, -1.0, 1.0
        %v2952 = vsel %vm2920, -1.0, 1.0
        %v2953 = vsel %vm2921, -1.0, 1.0
        %v2954 = vsel %vm2922, -1.0, 1.0
        %v2955 = vsel %vm2923, -1.0, 1.0
        %v2956 = vand.u32 2147483647, %v2860
        %v2957 = vand.u32 2147483647, %v2861
        %v2958 = vand.u32 2147483647, %v2862
        %v2959 = vand.u32 2147483647, %v2863
        %v2960 = vand.u32 2147483647, %v2864
        %v2961 = vand.u32 2147483647, %v2865
        %v2962 = vand.u32 2147483647, %v2866
        %v2963 = vand.u32 2147483647, %v2867
        %v2964 = vand.u32 2147483647, %v2868
        %v2965 = vand.u32 2147483647, %v2869
        %v2966 = vand.u32 2147483647, %v2870
        %v2967 = vand.u32 2147483647, %v2871
        %v2968 = vand.u32 2147483647, %v2872
        %v2969 = vand.u32 2147483647, %v2873
        %v2970 = vand.u32 2147483647, %v2874
        %v2971 = vand.u32 2147483647, %v2875
        %v2972 = vand.u32 2147483647, %v2876
        %v2973 = vand.u32 2147483647, %v2877
        %v2974 = vand.u32 2147483647, %v2878
        %v2975 = vand.u32 2147483647, %v2879
        %v2976 = vand.u32 2147483647, %v2880
        %v2977 = vand.u32 2147483647, %v2881
        %v2978 = vand.u32 2147483647, %v2882
        %v2979 = vand.u32 2147483647, %v2883
        %v2980 = vand.u32 2147483647, %v2884
        %v2981 = vand.u32 2147483647, %v2885
        %v2982 = vand.u32 2147483647, %v2886
        %v2983 = vand.u32 2147483647, %v2887
        %v2984 = vand.u32 2147483647, %v2888
        %v2985 = vand.u32 2147483647, %v2889
        %v2986 = vand.u32 2147483647, %v2890
        %v2987 = vand.u32 2147483647, %v2891
        %v2988 = vmul.f32 %v2956, 0.3275911
        %v2989 = vmul.f32 %v2957, 0.3275911
        %v2990 = vmul.f32 %v2958, 0.3275911
        %v2991 = vmul.f32 %v2959, 0.3275911
        %v2992 = vmul.f32 %v2960, 0.3275911
        %v2993 = vmul.f32 %v2961, 0.3275911
        %v2994 = vmul.f32 %v2962, 0.3275911
        %v2995 = vmul.f32 %v2963, 0.3275911
        %v2996 = vmul.f32 %v2964, 0.3275911
        %v2997 = vmul.f32 %v2965, 0.3275911
        %v2998 = vmul.f32 %v2966, 0.3275911
        %v2999 = vmul.f32 %v2967, 0.3275911
        %v3000 = vmul.f32 %v2968, 0.3275911
        %v3001 = vmul.f32 %v2969, 0.3275911
        %v3002 = vmul.f32 %v2970, 0.3275911
        %v3003 = vmul.f32 %v2971, 0.3275911
        %v3004 = vmul.f32 %v2972, 0.3275911
        %v3005 = vmul.f32 %v2973, 0.3275911
        %v3006 = vmul.f32 %v2974, 0.3275911
        %v3007 = vmul.f32 %v2975, 0.3275911
        %v3008 = vmul.f32 %v2976, 0.3275911
        %v3009 = vmul.f32 %v2977, 0.3275911
        %v3010 = vmul.f32 %v2978, 0.3275911
        %v3011 = vmul.f32 %v2979, 0.3275911
        %v3012 = vmul.f32 %v2980, 0.3275911
        %v3013 = vmul.f32 %v2981, 0.3275911
        %v3014 = vmul.f32 %v2982, 0.3275911
        %v3015 = vmul.f32 %v2983, 0.3275911
        %v3016 = vmul.f32 %v2984, 0.3275911
        %v3017 = vmul.f32 %v2985, 0.3275911
        %v3018 = vmul.f32 %v2986, 0.3275911
        %v3019 = vmul.f32 %v2987, 0.3275911
        %v3020 = vadd.f32 %v2988, 1.0
        %v3021 = vadd.f32 %v2989, 1.0
        %v3022 = vadd.f32 %v2990, 1.0
        %v3023 = vadd.f32 %v2991, 1.0
        %v3024 = vadd.f32 %v2992, 1.0
        %v3025 = vadd.f32 %v2993, 1.0
        %v3026 = vadd.f32 %v2994, 1.0
        %v3027 = vadd.f32 %v2995, 1.0
        %v3028 = vadd.f32 %v2996, 1.0
        %v3029 = vadd.f32 %v2997, 1.0
        %v3030 = vadd.f32 %v2998, 1.0
        %v3031 = vadd.f32 %v2999, 1.0
        %v3032 = vadd.f32 %v3000, 1.0
        %v3033 = vadd.f32 %v3001, 1.0
        %v3034 = vadd.f32 %v3002, 1.0
        %v3035 = vadd.f32 %v3003, 1.0
        %v3036 = vadd.f32 %v3004, 1.0
        %v3037 = vadd.f32 %v3005, 1.0
        %v3038 = vadd.f32 %v3006, 1.0
        %v3039 = vadd.f32 %v3007, 1.0
        %v3040 = vadd.f32 %v3008, 1.0
        %v3041 = vadd.f32 %v3009, 1.0
        %v3042 = vadd.f32 %v3010, 1.0
        %v3043 = vadd.f32 %v3011, 1.0
        %v3044 = vadd.f32 %v3012, 1.0
        %v3045 = vadd.f32 %v3013, 1.0
        %v3046 = vadd.f32 %v3014, 1.0
        %v3047 = vadd.f32 %v3015, 1.0
        %v3048 = vadd.f32 %v3016, 1.0
        %v3049 = vadd.f32 %v3017, 1.0
        %v3050 = vadd.f32 %v3018, 1.0
        %v3051 = vadd.f32 %v3019, 1.0
        %v3052 = vrcp.pop %v3020
        %v3053 = vmul.f32 1.0, %v3052
        %v3054 = vrcp.pop %v3021
        %v3055 = vmul.f32 1.0, %v3054
        %v3056 = vrcp.pop %v3022
        %v3057 = vmul.f32 1.0, %v3056
        %v3058 = vrcp.pop %v3023
        %v3059 = vmul.f32 1.0, %v3058
        %v3060 = vrcp.pop %v3024
        %v3061 = vmul.f32 1.0, %v3060
        %v3062 = vrcp.pop %v3025
        %v3063 = vmul.f32 1.0, %v3062
        %v3064 = vrcp.pop %v3026
        %v3065 = vmul.f32 1.0, %v3064
        %v3066 = vrcp.pop %v3027
        %v3067 = vmul.f32 1.0, %v3066
        %v3068 = vrcp.pop %v3028
        %v3069 = vmul.f32 1.0, %v3068
        %v3070 = vrcp.pop %v3029
        %v3071 = vmul.f32 1.0, %v3070
        %v3072 = vrcp.pop %v3030
        %v3073 = vmul.f32 1.0, %v3072
        %v3074 = vrcp.pop %v3031
        %v3075 = vmul.f32 1.0, %v3074
        %v3076 = vrcp.pop %v3032
        %v3077 = vmul.f32 1.0, %v3076
        %v3078 = vrcp.pop %v3033
        %v3079 = vmul.f32 1.0, %v3078
        %v3080 = vrcp.pop %v3034
        %v3081 = vmul.f32 1.0, %v3080
        %v3082 = vrcp.pop %v3035
        %v3083 = vmul.f32 1.0, %v3082
        %v3084 = vrcp.pop %v3036
        %v3085 = vmul.f32 1.0, %v3084
        %v3086 = vrcp.pop %v3037
        %v3087 = vmul.f32 1.0, %v3086
        %v3088 = vrcp.pop %v3038
        %v3089 = vmul.f32 1.0, %v3088
        %v3090 = vrcp.pop %v3039
        %v3091 = vmul.f32 1.0, %v3090
        %v3092 = vrcp.pop %v3040
        %v3093 = vmul.f32 1.0, %v3092
        %v3094 = vrcp.pop %v3041
        %v3095 = vmul.f32 1.0, %v3094
        %v3096 = vrcp.pop %v3042
        %v3097 = vmul.f32 1.0, %v3096
        %v3098 = vrcp.pop %v3043
        %v3099 = vmul.f32 1.0, %v3098
        %v3100 = vrcp.pop %v3044
        %v3101 = vmul.f32 1.0, %v3100
        %v3102 = vrcp.pop %v3045
        %v3103 = vmul.f32 1.0, %v3102
        %v3104 = vrcp.pop %v3046
        %v3105 = vmul.f32 1.0, %v3104
        %v3106 = vrcp.pop %v3047
        %v3107 = vmul.f32 1.0, %v3106
        %v3108 = vrcp.pop %v3048
        %v3109 = vmul.f32 1.0, %v3108
        %v3110 = vrcp.pop %v3049
        %v3111 = vmul.f32 1.0, %v3110
        %v3112 = vrcp.pop %v3050
        %v3113 = vmul.f32 1.0, %v3112
        %v3114 = vrcp.pop %v3051
        %v3115 = vmul.f32 1.0, %v3114
        %v3116 = vmul.f32 %v3053, 1.0614054
        %v3117 = vmul.f32 %v3055, 1.0614054
        %v3118 = vmul.f32 %v3057, 1.0614054
        %v3119 = vmul.f32 %v3059, 1.0614054
        %v3120 = vmul.f32 %v3061, 1.0614054
        %v3121 = vmul.f32 %v3063, 1.0614054
        %v3122 = vmul.f32 %v3065, 1.0614054
        %v3123 = vmul.f32 %v3067, 1.0614054
        %v3124 = vmul.f32 %v3069, 1.0614054
        %v3125 = vmul.f32 %v3071, 1.0614054
        %v3126 = vmul.f32 %v3073, 1.0614054
        %v3127 = vmul.f32 %v3075, 1.0614054
        %v3128 = vmul.f32 %v3077, 1.0614054
        %v3129 = vmul.f32 %v3079, 1.0614054
        %v3130 = vmul.f32 %v3081, 1.0614054
        %v3131 = vmul.f32 %v3083, 1.0614054
        %v3132 = vmul.f32 %v3085, 1.0614054
        %v3133 = vmul.f32 %v3087, 1.0614054
        %v3134 = vmul.f32 %v3089, 1.0614054
        %v3135 = vmul.f32 %v3091, 1.0614054
        %v3136 = vmul.f32 %v3093, 1.0614054
        %v3137 = vmul.f32 %v3095, 1.0614054
        %v3138 = vmul.f32 %v3097, 1.0614054
        %v3139 = vmul.f32 %v3099, 1.0614054
        %v3140 = vmul.f32 %v3101, 1.0614054
        %v3141 = vmul.f32 %v3103, 1.0614054
        %v3142 = vmul.f32 %v3105, 1.0614054
        %v3143 = vmul.f32 %v3107, 1.0614054
        %v3144 = vmul.f32 %v3109, 1.0614054
        %v3145 = vmul.f32 %v3111, 1.0614054
        %v3146 = vmul.f32 %v3113, 1.0614054
        %v3147 = vmul.f32 %v3115, 1.0614054
        %v3148 = vadd.f32 %v3116, -1.4531521
        %v3149 = vadd.f32 %v3117, -1.4531521
        %v3150 = vadd.f32 %v3118, -1.4531521
        %v3151 = vadd.f32 %v3119, -1.4531521
        %v3152 = vadd.f32 %v3120, -1.4531521
        %v3153 = vadd.f32 %v3121, -1.4531521
        %v3154 = vadd.f32 %v3122, -1.4531521
        %v3155 = vadd.f32 %v3123, -1.4531521
        %v3156 = vadd.f32 %v3124, -1.4531521
        %v3157 = vadd.f32 %v3125, -1.4531521
        %v3158 = vadd.f32 %v3126, -1.4531521
        %v3159 = vadd.f32 %v3127, -1.4531521
        %v3160 = vadd.f32 %v3128, -1.4531521
        %v3161 = vadd.f32 %v3129, -1.4531521
        %v3162 = vadd.f32 %v3130, -1.4531521
        %v3163 = vadd.f32 %v3131, -1.4531521
        %v3164 = vadd.f32 %v3132, -1.4531521
        %v3165 = vadd.f32 %v3133, -1.4531521
        %v3166 = vadd.f32 %v3134, -1.4531521
        %v3167 = vadd.f32 %v3135, -1.4531521
        %v3168 = vadd.f32 %v3136, -1.4531521
        %v3169 = vadd.f32 %v3137, -1.4531521
        %v3170 = vadd.f32 %v3138, -1.4531521
        %v3171 = vadd.f32 %v3139, -1.4531521
        %v3172 = vadd.f32 %v3140, -1.4531521
        %v3173 = vadd.f32 %v3141, -1.4531521
        %v3174 = vadd.f32 %v3142, -1.4531521
        %v3175 = vadd.f32 %v3143, -1.4531521
        %v3176 = vadd.f32 %v3144, -1.4531521
        %v3177 = vadd.f32 %v3145, -1.4531521
        %v3178 = vadd.f32 %v3146, -1.4531521
        %v3179 = vadd.f32 %v3147, -1.4531521
        %v3180 = vmul.f32 %v3148, %v3053
        %v3181 = vmul.f32 %v3149, %v3055
        %v3182 = vmul.f32 %v3150, %v3057
        %v3183 = vmul.f32 %v3151, %v3059
        %v3184 = vmul.f32 %v3152, %v3061
        %v3185 = vmul.f32 %v3153, %v3063
        %v3186 = vmul.f32 %v3154, %v3065
        %v3187 = vmul.f32 %v3155, %v3067
        %v3188 = vmul.f32 %v3156, %v3069
        %v3189 = vmul.f32 %v3157, %v3071
        %v3190 = vmul.f32 %v3158, %v3073
        %v3191 = vmul.f32 %v3159, %v3075
        %v3192 = vmul.f32 %v3160, %v3077
        %v3193 = vmul.f32 %v3161, %v3079
        %v3194 = vmul.f32 %v3162, %v3081
        %v3195 = vmul.f32 %v3163, %v3083
        %v3196 = vmul.f32 %v3164, %v3085
        %v3197 = vmul.f32 %v3165, %v3087
        %v3198 = vmul.f32 %v3166, %v3089
        %v3199 = vmul.f32 %v3167, %v3091
        %v3200 = vmul.f32 %v3168, %v3093
        %v3201 = vmul.f32 %v3169, %v3095
        %v3202 = vmul.f32 %v3170, %v3097
        %v3203 = vmul.f32 %v3171, %v3099
        %v3204 = vmul.f32 %v3172, %v3101
        %v3205 = vmul.f32 %v3173, %v3103
        %v3206 = vmul.f32 %v3174, %v3105
        %v3207 = vmul.f32 %v3175, %v3107
        %v3208 = vmul.f32 %v3176, %v3109
        %v3209 = vmul.f32 %v3177, %v3111
        %v3210 = vmul.f32 %v3178, %v3113
        %v3211 = vmul.f32 %v3179, %v3115
        %v3212 = vadd.f32 %v3180, 1.4214138
        %v3213 = vadd.f32 %v3181, 1.4214138
        %v3214 = vadd.f32 %v3182, 1.4214138
        %v3215 = vadd.f32 %v3183, 1.4214138
        %v3216 = vadd.f32 %v3184, 1.4214138
        %v3217 = vadd.f32 %v3185, 1.4214138
        %v3218 = vadd.f32 %v3186, 1.4214138
        %v3219 = vadd.f32 %v3187, 1.4214138
        %v3220 = vadd.f32 %v3188, 1.4214138
        %v3221 = vadd.f32 %v3189, 1.4214138
        %v3222 = vadd.f32 %v3190, 1.4214138
        %v3223 = vadd.f32 %v3191, 1.4214138
        %v3224 = vadd.f32 %v3192, 1.4214138
        %v3225 = vadd.f32 %v3193, 1.4214138
        %v3226 = vadd.f32 %v3194, 1.4214138
        %v3227 = vadd.f32 %v3195, 1.4214138
        %v3228 = vadd.f32 %v3196, 1.4214138
        %v3229 = vadd.f32 %v3197, 1.4214138
        %v3230 = vadd.f32 %v3198, 1.4214138
        %v3231 = vadd.f32 %v3199, 1.4214138
        %v3232 = vadd.f32 %v3200, 1.4214138
        %v3233 = vadd.f32 %v3201, 1.4214138
        %v3234 = vadd.f32 %v3202, 1.4214138
        %v3235 = vadd.f32 %v3203, 1.4214138
        %v3236 = vadd.f32 %v3204, 1.4214138
        %v3237 = vadd.f32 %v3205, 1.4214138
        %v3238 = vadd.f32 %v3206, 1.4214138
        %v3239 = vadd.f32 %v3207, 1.4214138
        %v3240 = vadd.f32 %v3208, 1.4214138
        %v3241 = vadd.f32 %v3209, 1.4214138
        %v3242 = vadd.f32 %v3210, 1.4214138
        %v3243 = vadd.f32 %v3211, 1.4214138
        %v3244 = vmul.f32 %v3212, %v3053
        %v3245 = vmul.f32 %v3213, %v3055
        %v3246 = vmul.f32 %v3214, %v3057
        %v3247 = vmul.f32 %v3215, %v3059
        %v3248 = vmul.f32 %v3216, %v3061
        %v3249 = vmul.f32 %v3217, %v3063
        %v3250 = vmul.f32 %v3218, %v3065
        %v3251 = vmul.f32 %v3219, %v3067
        %v3252 = vmul.f32 %v3220, %v3069
        %v3253 = vmul.f32 %v3221, %v3071
        %v3254 = vmul.f32 %v3222, %v3073
        %v3255 = vmul.f32 %v3223, %v3075
        %v3256 = vmul.f32 %v3224, %v3077
        %v3257 = vmul.f32 %v3225, %v3079
        %v3258 = vmul.f32 %v3226, %v3081
        %v3259 = vmul.f32 %v3227, %v3083
        %v3260 = vmul.f32 %v3228, %v3085
        %v3261 = vmul.f32 %v3229, %v3087
        %v3262 = vmul.f32 %v3230, %v3089
        %v3263 = vmul.f32 %v3231, %v3091
        %v3264 = vmul.f32 %v3232, %v3093
        %v3265 = vmul.f32 %v3233, %v3095
        %v3266 = vmul.f32 %v3234, %v3097
        %v3267 = vmul.f32 %v3235, %v3099
        %v3268 = vmul.f32 %v3236, %v3101
        %v3269 = vmul.f32 %v3237, %v3103
        %v3270 = vmul.f32 %v3238, %v3105
        %v3271 = vmul.f32 %v3239, %v3107
        %v3272 = vmul.f32 %v3240, %v3109
        %v3273 = vmul.f32 %v3241, %v3111
        %v3274 = vmul.f32 %v3242, %v3113
        %v3275 = vmul.f32 %v3243, %v3115
        %v3276 = vadd.f32 %v3244, -0.28449672
        %v3277 = vadd.f32 %v3245, -0.28449672
        %v3278 = vadd.f32 %v3246, -0.28449672
        %v3279 = vadd.f32 %v3247, -0.28449672
        %v3280 = vadd.f32 %v3248, -0.28449672
        %v3281 = vadd.f32 %v3249, -0.28449672
        %v3282 = vadd.f32 %v3250, -0.28449672
        %v3283 = vadd.f32 %v3251, -0.28449672
        %v3284 = vadd.f32 %v3252, -0.28449672
        %v3285 = vadd.f32 %v3253, -0.28449672
        %v3286 = vadd.f32 %v3254, -0.28449672
        %v3287 = vadd.f32 %v3255, -0.28449672
        %v3288 = vadd.f32 %v3256, -0.28449672
        %v3289 = vadd.f32 %v3257, -0.28449672
        %v3290 = vadd.f32 %v3258, -0.28449672
        %v3291 = vadd.f32 %v3259, -0.28449672
        %v3292 = vadd.f32 %v3260, -0.28449672
        %v3293 = vadd.f32 %v3261, -0.28449672
        %v3294 = vadd.f32 %v3262, -0.28449672
        %v3295 = vadd.f32 %v3263, -0.28449672
        %v3296 = vadd.f32 %v3264, -0.28449672
        %v3297 = vadd.f32 %v3265, -0.28449672
        %v3298 = vadd.f32 %v3266, -0.28449672
        %v3299 = vadd.f32 %v3267, -0.28449672
        %v3300 = vadd.f32 %v3268, -0.28449672
        %v3301 = vadd.f32 %v3269, -0.28449672
        %v3302 = vadd.f32 %v3270, -0.28449672
        %v3303 = vadd.f32 %v3271, -0.28449672
        %v3304 = vadd.f32 %v3272, -0.28449672
        %v3305 = vadd.f32 %v3273, -0.28449672
        %v3306 = vadd.f32 %v3274, -0.28449672
        %v3307 = vadd.f32 %v3275, -0.28449672
        %v3308 = vmul.f32 %v3276, %v3053
        %v3309 = vmul.f32 %v3277, %v3055
        %v3310 = vmul.f32 %v3278, %v3057
        %v3311 = vmul.f32 %v3279, %v3059
        %v3312 = vmul.f32 %v3280, %v3061
        %v3313 = vmul.f32 %v3281, %v3063
        %v3314 = vmul.f32 %v3282, %v3065
        %v3315 = vmul.f32 %v3283, %v3067
        %v3316 = vmul.f32 %v3284, %v3069
        %v3317 = vmul.f32 %v3285, %v3071
        %v3318 = vmul.f32 %v3286, %v3073
        %v3319 = vmul.f32 %v3287, %v3075
        %v3320 = vmul.f32 %v3288, %v3077
        %v3321 = vmul.f32 %v3289, %v3079
        %v3322 = vmul.f32 %v3290, %v3081
        %v3323 = vmul.f32 %v3291, %v3083
        %v3324 = vmul.f32 %v3292, %v3085
        %v3325 = vmul.f32 %v3293, %v3087
        %v3326 = vmul.f32 %v3294, %v3089
        %v3327 = vmul.f32 %v3295, %v3091
        %v3328 = vmul.f32 %v3296, %v3093
        %v3329 = vmul.f32 %v3297, %v3095
        %v3330 = vmul.f32 %v3298, %v3097
        %v3331 = vmul.f32 %v3299, %v3099
        %v3332 = vmul.f32 %v3300, %v3101
        %v3333 = vmul.f32 %v3301, %v3103
        %v3334 = vmul.f32 %v3302, %v3105
        %v3335 = vmul.f32 %v3303, %v3107
        %v3336 = vmul.f32 %v3304, %v3109
        %v3337 = vmul.f32 %v3305, %v3111
        %v3338 = vmul.f32 %v3306, %v3113
        %v3339 = vmul.f32 %v3307, %v3115
        %v3340 = vadd.f32 %v3308, 0.2548296
        %v3341 = vadd.f32 %v3309, 0.2548296
        %v3342 = vadd.f32 %v3310, 0.2548296
        %v3343 = vadd.f32 %v3311, 0.2548296
        %v3344 = vadd.f32 %v3312, 0.2548296
        %v3345 = vadd.f32 %v3313, 0.2548296
        %v3346 = vadd.f32 %v3314, 0.2548296
        %v3347 = vadd.f32 %v3315, 0.2548296
        %v3348 = vadd.f32 %v3316, 0.2548296
        %v3349 = vadd.f32 %v3317, 0.2548296
        %v3350 = vadd.f32 %v3318, 0.2548296
        %v3351 = vadd.f32 %v3319, 0.2548296
        %v3352 = vadd.f32 %v3320, 0.2548296
        %v3353 = vadd.f32 %v3321, 0.2548296
        %v3354 = vadd.f32 %v3322, 0.2548296
        %v3355 = vadd.f32 %v3323, 0.2548296
        %v3356 = vadd.f32 %v3324, 0.2548296
        %v3357 = vadd.f32 %v3325, 0.2548296
        %v3358 = vadd.f32 %v3326, 0.2548296
        %v3359 = vadd.f32 %v3327, 0.2548296
        %v3360 = vadd.f32 %v3328, 0.2548296
        %v3361 = vadd.f32 %v3329, 0.2548296
        %v3362 = vadd.f32 %v3330, 0.2548296
        %v3363 = vadd.f32 %v3331, 0.2548296
        %v3364 = vadd.f32 %v3332, 0.2548296
        %v3365 = vadd.f32 %v3333, 0.2548296
        %v3366 = vadd.f32 %v3334, 0.2548296
        %v3367 = vadd.f32 %v3335, 0.2548296
        %v3368 = vadd.f32 %v3336, 0.2548296
        %v3369 = vadd.f32 %v3337, 0.2548296
        %v3370 = vadd.f32 %v3338, 0.2548296
        %v3371 = vadd.f32 %v3339, 0.2548296
        %v3372 = vmul.f32 %v3340, %v3053
        %v3373 = vmul.f32 %v3341, %v3055
        %v3374 = vmul.f32 %v3342, %v3057
        %v3375 = vmul.f32 %v3343, %v3059
        %v3376 = vmul.f32 %v3344, %v3061
        %v3377 = vmul.f32 %v3345, %v3063
        %v3378 = vmul.f32 %v3346, %v3065
        %v3379 = vmul.f32 %v3347, %v3067
        %v3380 = vmul.f32 %v3348, %v3069
        %v3381 = vmul.f32 %v3349, %v3071
        %v3382 = vmul.f32 %v3350, %v3073
        %v3383 = vmul.f32 %v3351, %v3075
        %v3384 = vmul.f32 %v3352, %v3077
        %v3385 = vmul.f32 %v3353, %v3079
        %v3386 = vmul.f32 %v3354, %v3081
        %v3387 = vmul.f32 %v3355, %v3083
        %v3388 = vmul.f32 %v3356, %v3085
        %v3389 = vmul.f32 %v3357, %v3087
        %v3390 = vmul.f32 %v3358, %v3089
        %v3391 = vmul.f32 %v3359, %v3091
        %v3392 = vmul.f32 %v3360, %v3093
        %v3393 = vmul.f32 %v3361, %v3095
        %v3394 = vmul.f32 %v3362, %v3097
        %v3395 = vmul.f32 %v3363, %v3099
        %v3396 = vmul.f32 %v3364, %v3101
        %v3397 = vmul.f32 %v3365, %v3103
        %v3398 = vmul.f32 %v3366, %v3105
        %v3399 = vmul.f32 %v3367, %v3107
        %v3400 = vmul.f32 %v3368, %v3109
        %v3401 = vmul.f32 %v3369, %v3111
        %v3402 = vmul.f32 %v3370, %v3113
        %v3403 = vmul.f32 %v3371, %v3115
        %v3404 = vsub.f32 0.0, %v2956
        %v3405 = vsub.f32 0.0, %v2957
        %v3406 = vsub.f32 0.0, %v2958
        %v3407 = vsub.f32 0.0, %v2959
        %v3408 = vsub.f32 0.0, %v2960
        %v3409 = vsub.f32 0.0, %v2961
        %v3410 = vsub.f32 0.0, %v2962
        %v3411 = vsub.f32 0.0, %v2963
        %v3412 = vsub.f32 0.0, %v2964
        %v3413 = vsub.f32 0.0, %v2965
        %v3414 = vsub.f32 0.0, %v2966
        %v3415 = vsub.f32 0.0, %v2967
        %v3416 = vsub.f32 0.0, %v2968
        %v3417 = vsub.f32 0.0, %v2969
        %v3418 = vsub.f32 0.0, %v2970
        %v3419 = vsub.f32 0.0, %v2971
        %v3420 = vsub.f32 0.0, %v2972
        %v3421 = vsub.f32 0.0, %v2973
        %v3422 = vsub.f32 0.0, %v2974
        %v3423 = vsub.f32 0.0, %v2975
        %v3424 = vsub.f32 0.0, %v2976
        %v3425 = vsub.f32 0.0, %v2977
        %v3426 = vsub.f32 0.0, %v2978
        %v3427 = vsub.f32 0.0, %v2979
        %v3428 = vsub.f32 0.0, %v2980
        %v3429 = vsub.f32 0.0, %v2981
        %v3430 = vsub.f32 0.0, %v2982
        %v3431 = vsub.f32 0.0, %v2983
        %v3432 = vsub.f32 0.0, %v2984
        %v3433 = vsub.f32 0.0, %v2985
        %v3434 = vsub.f32 0.0, %v2986
        %v3435 = vsub.f32 0.0, %v2987
        %v3436 = vmul.f32 %v3404, %v2956
        %v3437 = vmul.f32 %v3405, %v2957
        %v3438 = vmul.f32 %v3406, %v2958
        %v3439 = vmul.f32 %v3407, %v2959
        %v3440 = vmul.f32 %v3408, %v2960
        %v3441 = vmul.f32 %v3409, %v2961
        %v3442 = vmul.f32 %v3410, %v2962
        %v3443 = vmul.f32 %v3411, %v2963
        %v3444 = vmul.f32 %v3412, %v2964
        %v3445 = vmul.f32 %v3413, %v2965
        %v3446 = vmul.f32 %v3414, %v2966
        %v3447 = vmul.f32 %v3415, %v2967
        %v3448 = vmul.f32 %v3416, %v2968
        %v3449 = vmul.f32 %v3417, %v2969
        %v3450 = vmul.f32 %v3418, %v2970
        %v3451 = vmul.f32 %v3419, %v2971
        %v3452 = vmul.f32 %v3420, %v2972
        %v3453 = vmul.f32 %v3421, %v2973
        %v3454 = vmul.f32 %v3422, %v2974
        %v3455 = vmul.f32 %v3423, %v2975
        %v3456 = vmul.f32 %v3424, %v2976
        %v3457 = vmul.f32 %v3425, %v2977
        %v3458 = vmul.f32 %v3426, %v2978
        %v3459 = vmul.f32 %v3427, %v2979
        %v3460 = vmul.f32 %v3428, %v2980
        %v3461 = vmul.f32 %v3429, %v2981
        %v3462 = vmul.f32 %v3430, %v2982
        %v3463 = vmul.f32 %v3431, %v2983
        %v3464 = vmul.f32 %v3432, %v2984
        %v3465 = vmul.f32 %v3433, %v2985
        %v3466 = vmul.f32 %v3434, %v2986
        %v3467 = vmul.f32 %v3435, %v2987
        %v3468 = vmul.f32 %v3436, 1.442695
        %v3469 = vpow.pop %v3468
        %v3470 = vmul.f32 %v3437, 1.442695
        %v3471 = vpow.pop %v3470
        %v3472 = vmul.f32 %v3438, 1.442695
        %v3473 = vpow.pop %v3472
        %v3474 = vmul.f32 %v3439, 1.442695
        %v3475 = vpow.pop %v3474
        %v3476 = vmul.f32 %v3440, 1.442695
        %v3477 = vpow.pop %v3476
        %v3478 = vmul.f32 %v3441, 1.442695
        %v3479 = vpow.pop %v3478
        %v3480 = vmul.f32 %v3442, 1.442695
        %v3481 = vpow.pop %v3480
        %v3482 = vmul.f32 %v3443, 1.442695
        %v3483 = vpow.pop %v3482
        %v3484 = vmul.f32 %v3444, 1.442695
        %v3485 = vpow.pop %v3484
        %v3486 = vmul.f32 %v3445, 1.442695
        %v3487 = vpow.pop %v3486
        %v3488 = vmul.f32 %v3446, 1.442695
        %v3489 = vpow.pop %v3488
        %v3490 = vmul.f32 %v3447, 1.442695
        %v3491 = vpow.pop %v3490
        %v3492 = vmul.f32 %v3448, 1.442695
        %v3493 = vpow.pop %v3492
        %v3494 = vmul.f32 %v3449, 1.442695
        %v3495 = vpow.pop %v3494
        %v3496 = vmul.f32 %v3450, 1.442695
        %v3497 = vpow.pop %v3496
        %v3498 = vmul.f32 %v3451, 1.442695
        %v3499 = vpow.pop %v3498
        %v3500 = vmul.f32 %v3452, 1.442695
        %v3501 = vpow.pop %v3500
        %v3502 = vmul.f32 %v3453, 1.442695
        %v3503 = vpow.pop %v3502
        %v3504 = vmul.f32 %v3454, 1.442695
        %v3505 = vpow.pop %v3504
        %v3506 = vmul.f32 %v3455, 1.442695
        %v3507 = vpow.pop %v3506
        %v3508 = vmul.f32 %v3456, 1.442695
        %v3509 = vpow.pop %v3508
        %v3510 = vmul.f32 %v3457, 1.442695
        %v3511 = vpow.pop %v3510
        %v3512 = vmul.f32 %v3458, 1.442695
        %v3513 = vpow.pop %v3512
        %v3514 = vmul.f32 %v3459, 1.442695
        %v3515 = vpow.pop %v3514
        %v3516 = vmul.f32 %v3460, 1.442695
        %v3517 = vpow.pop %v3516
        %v3518 = vmul.f32 %v3461, 1.442695
        %v3519 = vpow.pop %v3518
        %v3520 = vmul.f32 %v3462, 1.442695
        %v3521 = vpow.pop %v3520
        %v3522 = vmul.f32 %v3463, 1.442695
        %v3523 = vpow.pop %v3522
        %v3524 = vmul.f32 %v3464, 1.442695
        %v3525 = vpow.pop %v3524
        %v3526 = vmul.f32 %v3465, 1.442695
        %v3527 = vpow.pop %v3526
        %v3528 = vmul.f32 %v3466, 1.442695
        %v3529 = vpow.pop %v3528
        %v3530 = vmul.f32 %v3467, 1.442695
        %v3531 = vpow.pop %v3530
        %v3532 = vmul.f32 %v3372, %v3469
        %v3533 = vmul.f32 %v3373, %v3471
        %v3534 = vmul.f32 %v3374, %v3473
        %v3535 = vmul.f32 %v3375, %v3475
        %v3536 = vmul.f32 %v3376, %v3477
        %v3537 = vmul.f32 %v3377, %v3479
        %v3538 = vmul.f32 %v3378, %v3481
        %v3539 = vmul.f32 %v3379, %v3483
        %v3540 = vmul.f32 %v3380, %v3485
        %v3541 = vmul.f32 %v3381, %v3487
        %v3542 = vmul.f32 %v3382, %v3489
        %v3543 = vmul.f32 %v3383, %v3491
        %v3544 = vmul.f32 %v3384, %v3493
        %v3545 = vmul.f32 %v3385, %v3495
        %v3546 = vmul.f32 %v3386, %v3497
        %v3547 = vmul.f32 %v3387, %v3499
        %v3548 = vmul.f32 %v3388, %v3501
        %v3549 = vmul.f32 %v3389, %v3503
        %v3550 = vmul.f32 %v3390, %v3505
        %v3551 = vmul.f32 %v3391, %v3507
        %v3552 = vmul.f32 %v3392, %v3509
        %v3553 = vmul.f32 %v3393, %v3511
        %v3554 = vmul.f32 %v3394, %v3513
        %v3555 = vmul.f32 %v3395, %v3515
        %v3556 = vmul.f32 %v3396, %v3517
        %v3557 = vmul.f32 %v3397, %v3519
        %v3558 = vmul.f32 %v3398, %v3521
        %v3559 = vmul.f32 %v3399, %v3523
        %v3560 = vmul.f32 %v3400, %v3525
        %v3561 = vmul.f32 %v3401, %v3527
        %v3562 = vmul.f32 %v3402, %v3529
        %v3563 = vmul.f32 %v3403, %v3531
        %v3564 = vsub.f32 1.0, %v3532
        %v3565 = vsub.f32 1.0, %v3533
        %v3566 = vsub.f32 1.0, %v3534
        %v3567 = vsub.f32 1.0, %v3535
        %v3568 = vsub.f32 1.0, %v3536
        %v3569 = vsub.f32 1.0, %v3537
        %v3570 = vsub.f32 1.0, %v3538
        %v3571 = vsub.f32 1.0, %v3539
        %v3572 = vsub.f32 1.0, %v3540
        %v3573 = vsub.f32 1.0, %v3541
        %v3574 = vsub.f32 1.0, %v3542
        %v3575 = vsub.f32 1.0, %v3543
        %v3576 = vsub.f32 1.0, %v3544
        %v3577 = vsub.f32 1.0, %v3545
        %v3578 = vsub.f32 1.0, %v3546
        %v3579 = vsub.f32 1.0, %v3547
        %v3580 = vsub.f32 1.0, %v3548
        %v3581 = vsub.f32 1.0, %v3549
        %v3582 = vsub.f32 1.0, %v3550
        %v3583 = vsub.f32 1.0, %v3551
        %v3584 = vsub.f32 1.0, %v3552
        %v3585 = vsub.f32 1.0, %v3553
        %v3586 = vsub.f32 1.0, %v3554
        %v3587 = vsub.f32 1.0, %v3555
        %v3588 = vsub.f32 1.0, %v3556
        %v3589 = vsub.f32 1.0, %v3557
        %v3590 = vsub.f32 1.0, %v3558
        %v3591 = vsub.f32 1.0, %v3559
        %v3592 = vsub.f32 1.0, %v3560
        %v3593 = vsub.f32 1.0, %v3561
        %v3594 = vsub.f32 1.0, %v3562
        %v3595 = vsub.f32 1.0, %v3563
        %v3596 = vmul.f32 %v2924, %v3564
        %v3597 = vmul.f32 %v2925, %v3565
        %v3598 = vmul.f32 %v2926, %v3566
        %v3599 = vmul.f32 %v2927, %v3567
        %v3600 = vmul.f32 %v2928, %v3568
        %v3601 = vmul.f32 %v2929, %v3569
        %v3602 = vmul.f32 %v2930, %v3570
        %v3603 = vmul.f32 %v2931, %v3571
        %v3604 = vmul.f32 %v2932, %v3572
        %v3605 = vmul.f32 %v2933, %v3573
        %v3606 = vmul.f32 %v2934, %v3574
        %v3607 = vmul.f32 %v2935, %v3575
        %v3608 = vmul.f32 %v2936, %v3576
        %v3609 = vmul.f32 %v2937, %v3577
        %v3610 = vmul.f32 %v2938, %v3578
        %v3611 = vmul.f32 %v2939, %v3579
        %v3612 = vmul.f32 %v2940, %v3580
        %v3613 = vmul.f32 %v2941, %v3581
        %v3614 = vmul.f32 %v2942, %v3582
        %v3615 = vmul.f32 %v2943, %v3583
        %v3616 = vmul.f32 %v2944, %v3584
        %v3617 = vmul.f32 %v2945, %v3585
        %v3618 = vmul.f32 %v2946, %v3586
        %v3619 = vmul.f32 %v2947, %v3587
        %v3620 = vmul.f32 %v2948, %v3588
        %v3621 = vmul.f32 %v2949, %v3589
        %v3622 = vmul.f32 %v2950, %v3590
        %v3623 = vmul.f32 %v2951, %v3591
        %v3624 = vmul.f32 %v2952, %v3592
        %v3625 = vmul.f32 %v2953, %v3593
        %v3626 = vmul.f32 %v2954, %v3594
        %v3627 = vmul.f32 %v2955, %v3595
        %v3628 = vadd.f32 %v3596, 1.0
        %v3629 = vadd.f32 %v3597, 1.0
        %v3630 = vadd.f32 %v3598, 1.0
        %v3631 = vadd.f32 %v3599, 1.0
        %v3632 = vadd.f32 %v3600, 1.0
        %v3633 = vadd.f32 %v3601, 1.0
        %v3634 = vadd.f32 %v3602, 1.0
        %v3635 = vadd.f32 %v3603, 1.0
        %v3636 = vadd.f32 %v3604, 1.0
        %v3637 = vadd.f32 %v3605, 1.0
        %v3638 = vadd.f32 %v3606, 1.0
        %v3639 = vadd.f32 %v3607, 1.0
        %v3640 = vadd.f32 %v3608, 1.0
        %v3641 = vadd.f32 %v3609, 1.0
        %v3642 = vadd.f32 %v3610, 1.0
        %v3643 = vadd.f32 %v3611, 1.0
        %v3644 = vadd.f32 %v3612, 1.0
        %v3645 = vadd.f32 %v3613, 1.0
        %v3646 = vadd.f32 %v3614, 1.0
        %v3647 = vadd.f32 %v3615, 1.0
        %v3648 = vadd.f32 %v3616, 1.0
        %v3649 = vadd.f32 %v3617, 1.0
        %v3650 = vadd.f32 %v3618, 1.0
        %v3651 = vadd.f32 %v3619, 1.0
        %v3652 = vadd.f32 %v3620, 1.0
        %v3653 = vadd.f32 %v3621, 1.0
        %v3654 = vadd.f32 %v3622, 1.0
        %v3655 = vadd.f32 %v3623, 1.0
        %v3656 = vadd.f32 %v3624, 1.0
        %v3657 = vadd.f32 %v3625, 1.0
        %v3658 = vadd.f32 %v3626, 1.0
        %v3659 = vadd.f32 %v3627, 1.0
        %v3660 = vmul.f32 %v2828, %v3628
        %v3661 = vmul.f32 %v2829, %v3629
        %v3662 = vmul.f32 %v2830, %v3630
        %v3663 = vmul.f32 %v2831, %v3631
        %v3664 = vmul.f32 %v2832, %v3632
        %v3665 = vmul.f32 %v2833, %v3633
        %v3666 = vmul.f32 %v2834, %v3634
        %v3667 = vmul.f32 %v2835, %v3635
        %v3668 = vmul.f32 %v2836, %v3636
        %v3669 = vmul.f32 %v2837, %v3637
        %v3670 = vmul.f32 %v2838, %v3638
        %v3671 = vmul.f32 %v2839, %v3639
        %v3672 = vmul.f32 %v2840, %v3640
        %v3673 = vmul.f32 %v2841, %v3641
        %v3674 = vmul.f32 %v2842, %v3642
        %v3675 = vmul.f32 %v2843, %v3643
        %v3676 = vmul.f32 %v2844, %v3644
        %v3677 = vmul.f32 %v2845, %v3645
        %v3678 = vmul.f32 %v2846, %v3646
        %v3679 = vmul.f32 %v2847, %v3647
        %v3680 = vmul.f32 %v2848, %v3648
        %v3681 = vmul.f32 %v2849, %v3649
        %v3682 = vmul.f32 %v2850, %v3650
        %v3683 = vmul.f32 %v2851, %v3651
        %v3684 = vmul.f32 %v2852, %v3652
        %v3685 = vmul.f32 %v2853, %v3653
        %v3686 = vmul.f32 %v2854, %v3654
        %v3687 = vmul.f32 %v2855, %v3655
        %v3688 = vmul.f32 %v2856, %v3656
        %v3689 = vmul.f32 %v2857, %v3657
        %v3690 = vmul.f32 %v2858, %v3658
        %v3691 = vmul.f32 %v2859, %v3659
        %v3692 = vld [vmem:[%s4] sm:$0x1]
        %v3694 = vlaneseq
        %v3695 = vshrl.u32 %v3694, 7
        %v3696 = vsub.s32 0, %v3695
        %v3697 = vrot.slane %v3692, %v3696
        %3699 = vmatprep.subr.mxu0 0.0
        %v3700 = vand.u32 %v346, 4294901760
        %3701 = vmatpush1.msra.mxu0 %v3700
        %3702 = vmatprep.subr.mxu0 0.0
        %v3703 = vand.u32 %v347, 4294901760
        %3704 = vmatpush1.msra.mxu0 %v3703
        %3705 = vmatprep.subr.mxu0 0.0
        %v3706 = vand.u32 %v348, 4294901760
        %3707 = vmatpush1.msra.mxu0 %v3706
        %3708 = vmatprep.subr.mxu0 0.0
        %v3709 = vand.u32 %v349, 4294901760
        %3710 = vmatpush1.msra.mxu0 %v3709
        %3711 = vmatprep.subr.mxu0 0.0
        %v3712 = vand.u32 %v350, 4294901760
        %3713 = vmatpush1.msra.mxu0 %v3712
        %3714 = vmatprep.subr.mxu0 0.0
        %v3715 = vand.u32 %v351, 4294901760
        %3716 = vmatpush1.msra.mxu0 %v3715
        %3717 = vmatprep.subr.mxu0 0.0
        %v3718 = vand.u32 %v352, 4294901760
        %3719 = vmatpush1.msra.mxu0 %v3718
        %3720 = vmatprep.subr.mxu0 0.0
        %v3721 = vand.u32 %v353, 4294901760
        %3722 = vmatpush1.msra.mxu0 %v3721
        %3723 = vmatprep.subr.mxu0 0.0
        %v3724 = vand.u32 %v354, 4294901760
        %3725 = vmatpush1.msra.mxu0 %v3724
        %3726 = vmatprep.subr.mxu0 0.0
        %v3727 = vand.u32 %v355, 4294901760
        %3728 = vmatpush1.msra.mxu0 %v3727
        %3729 = vmatprep.subr.mxu0 0.0
        %v3730 = vand.u32 %v356, 4294901760
        %3731 = vmatpush1.msra.mxu0 %v3730
        %3732 = vmatprep.subr.mxu0 0.0
        %v3733 = vand.u32 %v357, 4294901760
        %3734 = vmatpush1.msra.mxu0 %v3733
        %3735 = vmatprep.subr.mxu0 0.0
        %v3736 = vand.u32 %v358, 4294901760
        %3737 = vmatpush1.msra.mxu0 %v3736
        %3738 = vmatprep.subr.mxu0 0.0
        %v3739 = vand.u32 %v359, 4294901760
        %3740 = vmatpush1.msra.mxu0 %v3739
        %3741 = vmatprep.subr.mxu0 0.0
        %v3742 = vand.u32 %v360, 4294901760
        %3743 = vmatpush1.msra.mxu0 %v3742
        %3744 = vmatprep.subr.mxu0 0.0
        %v3745 = vand.u32 %v361, 4294901760
        %3746 = vmatpush1.msra.mxu0 %v3745
        %3747 = vmatprep.subr.mxu0 0.0
        %v3748 = vand.u32 %v362, 4294901760
        %3749 = vmatpush1.msra.mxu0 %v3748
        %3750 = vmatprep.subr.mxu0 0.0
        %v3751 = vand.u32 %v363, 4294901760
        %3752 = vmatpush1.msra.mxu0 %v3751
        %3753 = vmatprep.subr.mxu0 0.0
        %v3754 = vand.u32 %v364, 4294901760
        %3755 = vmatpush1.msra.mxu0 %v3754
        %3756 = vmatprep.subr.mxu0 0.0
        %v3757 = vand.u32 %v365, 4294901760
        %3758 = vmatpush1.msra.mxu0 %v3757
        %3759 = vmatprep.subr.mxu0 0.0
        %v3760 = vand.u32 %v366, 4294901760
        %3761 = vmatpush1.msra.mxu0 %v3760
        %3762 = vmatprep.subr.mxu0 0.0
        %v3763 = vand.u32 %v367, 4294901760
        %3764 = vmatpush1.msra.mxu0 %v3763
        %3765 = vmatprep.subr.mxu0 0.0
        %v3766 = vand.u32 %v368, 4294901760
        %3767 = vmatpush1.msra.mxu0 %v3766
        %3768 = vmatprep.subr.mxu0 0.0
        %v3769 = vand.u32 %v369, 4294901760
        %3770 = vmatpush1.msra.mxu0 %v3769
        %3771 = vmatprep.subr.mxu0 0.0
        %v3772 = vand.u32 %v370, 4294901760
        %3773 = vmatpush1.msra.mxu0 %v3772
        %3774 = vmatprep.subr.mxu0 0.0
        %v3775 = vand.u32 %v371, 4294901760
        %3776 = vmatpush1.msra.mxu0 %v3775
        %3777 = vmatprep.subr.mxu0 0.0
        %v3778 = vand.u32 %v372, 4294901760
        %3779 = vmatpush1.msra.mxu0 %v3778
        %3780 = vmatprep.subr.mxu0 0.0
        %v3781 = vand.u32 %v373, 4294901760
        %3782 = vmatpush1.msra.mxu0 %v3781
        %3783 = vmatprep.subr.mxu0 0.0
        %v3784 = vand.u32 %v374, 4294901760
        %3785 = vmatpush1.msra.mxu0 %v3784
        %3786 = vmatprep.subr.mxu0 0.0
        %v3787 = vand.u32 %v375, 4294901760
        %3788 = vmatpush1.msra.mxu0 %v3787
        %3789 = vmatprep.subr.mxu0 0.0
        %v3790 = vand.u32 %v376, 4294901760
        %3791 = vmatpush1.msra.mxu0 %v3790
        %3792 = vmatprep.subr.mxu0 0.0
        %v3793 = vand.u32 %v377, 4294901760
        %3794 = vmatpush1.msra.mxu0 %v3793
        %v3795 = vand.u32 %v3661, 4294901760
        %v3796 = vsub.f32 %v3661, %v3795
        %v3797 = vand.u32 %v3796, 4294901760
        %v3798 = vsub.f32 %v3796, %v3797
        %v3799 = vand.u32 %v3798, 4294901760
        %3800 = vmatprep.mubr.f32.mxu0 %v3799
        %v3801 = vand.u32 %v3660, 4294901760
        %v3802 = vsub.f32 %v3660, %v3801
        %v3803 = vand.u32 %v3802, 4294901760
        %v3804 = vsub.f32 %v3802, %v3803
        %v3805 = vand.u32 %v3804, 4294901760
        %3806 = vmatmul.mubr.f32.gmra.mrb[0].mxu0 %v3805
        %v3807 = vpop.f32.mrb[0].mxu0
        %v3808 = vadd.f32 %v3697, %v3807
        %v3809 = vpop.f32.mrb[0].mxu0
        %v3810 = vand.u32 %v3665, 4294901760
        %v3811 = vsub.f32 %v3665, %v3810
        %v3812 = vand.u32 %v3811, 4294901760
        %v3813 = vsub.f32 %v3811, %v3812
        %v3814 = vand.u32 %v3813, 4294901760
        %3815 = vmatprep.mubr.f32.mxu0 %v3814
        %v3816 = vand.u32 %v3664, 4294901760
        %v3817 = vsub.f32 %v3664, %v3816
        %v3818 = vand.u32 %v3817, 4294901760
        %v3819 = vsub.f32 %v3817, %v3818
        %v3820 = vand.u32 %v3819, 4294901760
        %3821 = vmatmul.mubr.f32.gmra.mrb[0].mxu0 %v3820
        %v3822 = vpop.f32.mrb[0].mxu0
        %v3823 = vadd.f32 %v3697, %v3822
        %v3824 = vpop.f32.mrb[0].mxu0
        %v3825 = vand.u32 %v3669, 4294901760
        %v3826 = vsub.f32 %v3669, %v3825
        %v3827 = vand.u32 %v3826, 4294901760
        %v3828 = vsub.f32 %v3826, %v3827
        %v3829 = vand.u32 %v3828, 4294901760
        %3830 = vmatprep.mubr.f32.mxu0 %v3829
        %v3831 = vand.u32 %v3668, 4294901760
        %v3832 = vsub.f32 %v3668, %v3831
        %v3833 = vand.u32 %v3832, 4294901760
        %v3834 = vsub.f32 %v3832, %v3833
        %v3835 = vand.u32 %v3834, 4294901760
        %3836 = vmatmul.mubr.f32.gmra.mrb[0].mxu0 %v3835
        %v3837 = vpop.f32.mrb[0].mxu0
        %v3838 = vadd.f32 %v3697, %v3837
        %v3839 = vpop.f32.mrb[0].mxu0
        %v3840 = vand.u32 %v3673, 4294901760
        %v3841 = vsub.f32 %v3673, %v3840
        %v3842 = vand.u32 %v3841, 4294901760
        %v3843 = vsub.f32 %v3841, %v3842
        %v3844 = vand.u32 %v3843, 4294901760
        %3845 = vmatprep.mubr.f32.mxu0 %v3844
        %v3846 = vand.u32 %v3672, 4294901760
        %v3847 = vsub.f32 %v3672, %v3846
        %v3848 = vand.u32 %v3847, 4294901760
        %v3849 = vsub.f32 %v3847, %v3848
        %v3850 = vand.u32 %v3849, 4294901760
        %3851 = vmatmul.mubr.f32.gmra.mrb[0].mxu0 %v3850
        %v3852 = vpop.f32.mrb[0].mxu0
        %v3853 = vadd.f32 %v3697, %v3852
        %v3854 = vpop.f32.mrb[0].mxu0
        %v3855 = vand.u32 %v3677, 4294901760
        %v3856 = vsub.f32 %v3677, %v3855
        %v3857 = vand.u32 %v3856, 4294901760
        %v3858 = vsub.f32 %v3856, %v3857
        %v3859 = vand.u32 %v3858, 4294901760
        %3860 = vmatprep.mubr.f32.mxu0 %v3859
        %v3861 = vand.u32 %v3676, 4294901760
        %v3862 = vsub.f32 %v3676, %v3861
        %v3863 = vand.u32 %v3862, 4294901760
        %v3864 = vsub.f32 %v3862, %v3863
        %v3865 = vand.u32 %v3864, 4294901760
        %3866 = vmatmul.mubr.f32.gmra.mrb[0].mxu0 %v3865
        %v3867 = vpop.f32.mrb[0].mxu0
        %v3868 = vadd.f32 %v3697, %v3867
        %v3869 = vpop.f32.mrb[0].mxu0
        %v3870 = vand.u32 %v3681, 4294901760
        %v3871 = vsub.f32 %v3681, %v3870
        %v3872 = vand.u32 %v3871, 4294901760
        %v3873 = vsub.f32 %v3871, %v3872
        %v3874 = vand.u32 %v3873, 4294901760
        %3875 = vmatprep.mubr.f32.mxu0 %v3874
        %v3876 = vand.u32 %v3680, 4294901760
        %v3877 = vsub.f32 %v3680, %v3876
        %v3878 = vand.u32 %v3877, 4294901760
        %v3879 = vsub.f32 %v3877, %v3878
        %v3880 = vand.u32 %v3879, 4294901760
        %3881 = vmatmul.mubr.f32.gmra.mrb[0].mxu0 %v3880
        %v3882 = vpop.f32.mrb[0].mxu0
        %v3883 = vadd.f32 %v3697, %v3882
        %v3884 = vpop.f32.mrb[0].mxu0
        %v3885 = vand.u32 %v3685, 4294901760
        %v3886 = vsub.f32 %v3685, %v3885
        %v3887 = vand.u32 %v3886, 4294901760
        %v3888 = vsub.f32 %v3886, %v3887
        %v3889 = vand.u32 %v3888, 4294901760
        %3890 = vmatprep.mubr.f32.mxu0 %v3889
        %v3891 = vand.u32 %v3684, 4294901760
        %v3892 = vsub.f32 %v3684, %v3891
        %v3893 = vand.u32 %v3892, 4294901760
        %v3894 = vsub.f32 %v3892, %v3893
        %v3895 = vand.u32 %v3894, 4294901760
        %3896 = vmatmul.mubr.f32.gmra.mrb[0].mxu0 %v3895
        %v3897 = vpop.f32.mrb[0].mxu0
        %v3898 = vadd.f32 %v3697, %v3897
        %v3899 = vpop.f32.mrb[0].mxu0
        %v3900 = vand.u32 %v3689, 4294901760
        %v3901 = vsub.f32 %v3689, %v3900
        %v3902 = vand.u32 %v3901, 4294901760
        %v3903 = vsub.f32 %v3901, %v3902
        %v3904 = vand.u32 %v3903, 4294901760
        %3905 = vmatprep.mubr.f32.mxu0 %v3904
        %v3906 = vand.u32 %v3688, 4294901760
        %v3907 = vsub.f32 %v3688, %v3906
        %v3908 = vand.u32 %v3907, 4294901760
        %v3909 = vsub.f32 %v3907, %v3908
        %v3910 = vand.u32 %v3909, 4294901760
        %3911 = vmatmul.mubr.f32.gmra.mrb[0].mxu0 %v3910
        %v3912 = vpop.f32.mrb[0].mxu0
        %v3913 = vadd.f32 %v3697, %v3912
        %v3914 = vpop.f32.mrb[0].mxu0
        %3915 = vdwg.mxu0
        %3916 = vmatprep.subr.mxu0 0.0
        %v3917 = vand.u32 %v346, 4294901760
        %v3918 = vsub.f32 %v346, %v3917
        %v3919 = vand.u32 %v3918, 4294901760
        %v3920 = vsub.f32 %v3918, %v3919
        %v3921 = vand.u32 %v3920, 4294901760
        %3922 = vmatpush1.msra.mxu0 %v3921
        %3923 = vmatprep.subr.mxu0 0.0
        %v3924 = vand.u32 %v347, 4294901760
        %v3925 = vsub.f32 %v347, %v3924
        %v3926 = vand.u32 %v3925, 4294901760
        %v3927 = vsub.f32 %v3925, %v3926
        %v3928 = vand.u32 %v3927, 4294901760
        %3929 = vmatpush1.msra.mxu0 %v3928
        %3930 = vmatprep.subr.mxu0 0.0
        %v3931 = vand.u32 %v348, 4294901760
        %v3932 = vsub.f32 %v348, %v3931
        %v3933 = vand.u32 %v3932, 4294901760
        %v3934 = vsub.f32 %v3932, %v3933
        %v3935 = vand.u32 %v3934, 4294901760
        %3936 = vmatpush1.msra.mxu0 %v3935
        %3937 = vmatprep.subr.mxu0 0.0
        %v3938 = vand.u32 %v349, 4294901760
        %v3939 = vsub.f32 %v349, %v3938
        %v3940 = vand.u32 %v3939, 4294901760
        %v3941 = vsub.f32 %v3939, %v3940
        %v3942 = vand.u32 %v3941, 4294901760
        %3943 = vmatpush1.msra.mxu0 %v3942
        %3944 = vmatprep.subr.mxu0 0.0
        %v3945 = vand.u32 %v350, 4294901760
        %v3946 = vsub.f32 %v350, %v3945
        %v3947 = vand.u32 %v3946, 4294901760
        %v3948 = vsub.f32 %v3946, %v3947
        %v3949 = vand.u32 %v3948, 4294901760
        %3950 = vmatpush1.msra.mxu0 %v3949
        %3951 = vmatprep.subr.mxu0 0.0
        %v3952 = vand.u32 %v351, 4294901760
        %v3953 = vsub.f32 %v351, %v3952
        %v3954 = vand.u32 %v3953, 4294901760
        %v3955 = vsub.f32 %v3953, %v3954
        %v3956 = vand.u32 %v3955, 4294901760
        %3957 = vmatpush1.msra.mxu0 %v3956
        %3958 = vmatprep.subr.mxu0 0.0
        %v3959 = vand.u32 %v352, 4294901760
        %v3960 = vsub.f32 %v352, %v3959
        %v3961 = vand.u32 %v3960, 4294901760
        %v3962 = vsub.f32 %v3960, %v3961
        %v3963 = vand.u32 %v3962, 4294901760
        %3964 = vmatpush1.msra.mxu0 %v3963
        %3965 = vmatprep.subr.mxu0 0.0
        %v3966 = vand.u32 %v353, 4294901760
        %v3967 = vsub.f32 %v353, %v3966
        %v3968 = vand.u32 %v3967, 4294901760
        %v3969 = vsub.f32 %v3967, %v3968
        %v3970 = vand.u32 %v3969, 4294901760
        %3971 = vmatpush1.msra.mxu0 %v3970
        %3972 = vmatprep.subr.mxu0 0.0
        %v3973 = vand.u32 %v354, 4294901760
        %v3974 = vsub.f32 %v354, %v3973
        %v3975 = vand.u32 %v3974, 4294901760
        %v3976 = vsub.f32 %v3974, %v3975
        %v3977 = vand.u32 %v3976, 4294901760
        %3978 = vmatpush1.msra.mxu0 %v3977
        %3979 = vmatprep.subr.mxu0 0.0
        %v3980 = vand.u32 %v355, 4294901760
        %v3981 = vsub.f32 %v355, %v3980
        %v3982 = vand.u32 %v3981, 4294901760
        %v3983 = vsub.f32 %v3981, %v3982
        %v3984 = vand.u32 %v3983, 4294901760
        %3985 = vmatpush1.msra.mxu0 %v3984
        %3986 = vmatprep.subr.mxu0 0.0
        %v3987 = vand.u32 %v356, 4294901760
        %v3988 = vsub.f32 %v356, %v3987
        %v3989 = vand.u32 %v3988, 4294901760
        %v3990 = vsub.f32 %v3988, %v3989
        %v3991 = vand.u32 %v3990, 4294901760
        %3992 = vmatpush1.msra.mxu0 %v3991
        %3993 = vmatprep.subr.mxu0 0.0
        %v3994 = vand.u32 %v357, 4294901760
        %v3995 = vsub.f32 %v357, %v3994
        %v3996 = vand.u32 %v3995, 4294901760
        %v3997 = vsub.f32 %v3995, %v3996
        %v3998 = vand.u32 %v3997, 4294901760
        %3999 = vmatpush1.msra.mxu0 %v3998
        %4000 = vmatprep.subr.mxu0 0.0
        %v4001 = vand.u32 %v358, 4294901760
        %v4002 = vsub.f32 %v358, %v4001
        %v4003 = vand.u32 %v4002, 4294901760
        %v4004 = vsub.f32 %v4002, %v4003
        %v4005 = vand.u32 %v4004, 4294901760
        %4006 = vmatpush1.msra.mxu0 %v4005
        %4007 = vmatprep.subr.mxu0 0.0
        %v4008 = vand.u32 %v359, 4294901760
        %v4009 = vsub.f32 %v359, %v4008
        %v4010 = vand.u32 %v4009, 4294901760
        %v4011 = vsub.f32 %v4009, %v4010
        %v4012 = vand.u32 %v4011, 4294901760
        %4013 = vmatpush1.msra.mxu0 %v4012
        %4014 = vmatprep.subr.mxu0 0.0
        %v4015 = vand.u32 %v360, 4294901760
        %v4016 = vsub.f32 %v360, %v4015
        %v4017 = vand.u32 %v4016, 4294901760
        %v4018 = vsub.f32 %v4016, %v4017
        %v4019 = vand.u32 %v4018, 4294901760
        %4020 = vmatpush1.msra.mxu0 %v4019
        %4021 = vmatprep.subr.mxu0 0.0
        %v4022 = vand.u32 %v361, 4294901760
        %v4023 = vsub.f32 %v361, %v4022
        %v4024 = vand.u32 %v4023, 4294901760
        %v4025 = vsub.f32 %v4023, %v4024
        %v4026 = vand.u32 %v4025, 4294901760
        %4027 = vmatpush1.msra.mxu0 %v4026
        %4028 = vmatprep.subr.mxu0 0.0
        %v4029 = vand.u32 %v362, 4294901760
        %v4030 = vsub.f32 %v362, %v4029
        %v4031 = vand.u32 %v4030, 4294901760
        %v4032 = vsub.f32 %v4030, %v4031
        %v4033 = vand.u32 %v4032, 4294901760
        %4034 = vmatpush1.msra.mxu0 %v4033
        %4035 = vmatprep.subr.mxu0 0.0
        %v4036 = vand.u32 %v363, 4294901760
        %v4037 = vsub.f32 %v363, %v4036
        %v4038 = vand.u32 %v4037, 4294901760
        %v4039 = vsub.f32 %v4037, %v4038
        %v4040 = vand.u32 %v4039, 4294901760
        %4041 = vmatpush1.msra.mxu0 %v4040
        %4042 = vmatprep.subr.mxu0 0.0
        %v4043 = vand.u32 %v364, 4294901760
        %v4044 = vsub.f32 %v364, %v4043
        %v4045 = vand.u32 %v4044, 4294901760
        %v4046 = vsub.f32 %v4044, %v4045
        %v4047 = vand.u32 %v4046, 4294901760
        %4048 = vmatpush1.msra.mxu0 %v4047
        %4049 = vmatprep.subr.mxu0 0.0
        %v4050 = vand.u32 %v365, 4294901760
        %v4051 = vsub.f32 %v365, %v4050
        %v4052 = vand.u32 %v4051, 4294901760
        %v4053 = vsub.f32 %v4051, %v4052
        %v4054 = vand.u32 %v4053, 4294901760
        %4055 = vmatpush1.msra.mxu0 %v4054
        %4056 = vmatprep.subr.mxu0 0.0
        %v4057 = vand.u32 %v366, 4294901760
        %v4058 = vsub.f32 %v366, %v4057
        %v4059 = vand.u32 %v4058, 4294901760
        %v4060 = vsub.f32 %v4058, %v4059
        %v4061 = vand.u32 %v4060, 4294901760
        %4062 = vmatpush1.msra.mxu0 %v4061
        %4063 = vmatprep.subr.mxu0 0.0
        %v4064 = vand.u32 %v367, 4294901760
        %v4065 = vsub.f32 %v367, %v4064
        %v4066 = vand.u32 %v4065, 4294901760
        %v4067 = vsub.f32 %v4065, %v4066
        %v4068 = vand.u32 %v4067, 4294901760
        %4069 = vmatpush1.msra.mxu0 %v4068
        %4070 = vmatprep.subr.mxu0 0.0
        %v4071 = vand.u32 %v368, 4294901760
        %v4072 = vsub.f32 %v368, %v4071
        %v4073 = vand.u32 %v4072, 4294901760
        %v4074 = vsub.f32 %v4072, %v4073
        %v4075 = vand.u32 %v4074, 4294901760
        %4076 = vmatpush1.msra.mxu0 %v4075
        %4077 = vmatprep.subr.mxu0 0.0
        %v4078 = vand.u32 %v369, 4294901760
        %v4079 = vsub.f32 %v369, %v4078
        %v4080 = vand.u32 %v4079, 4294901760
        %v4081 = vsub.f32 %v4079, %v4080
        %v4082 = vand.u32 %v4081, 4294901760
        %4083 = vmatpush1.msra.mxu0 %v4082
        %4084 = vmatprep.subr.mxu0 0.0
        %v4085 = vand.u32 %v370, 4294901760
        %v4086 = vsub.f32 %v370, %v4085
        %v4087 = vand.u32 %v4086, 4294901760
        %v4088 = vsub.f32 %v4086, %v4087
        %v4089 = vand.u32 %v4088, 4294901760
        %4090 = vmatpush1.msra.mxu0 %v4089
        %4091 = vmatprep.subr.mxu0 0.0
        %v4092 = vand.u32 %v371, 4294901760
        %v4093 = vsub.f32 %v371, %v4092
        %v4094 = vand.u32 %v4093, 4294901760
        %v4095 = vsub.f32 %v4093, %v4094
        %v4096 = vand.u32 %v4095, 4294901760
        %4097 = vmatpush1.msra.mxu0 %v4096
        %4098 = vmatprep.subr.mxu0 0.0
        %v4099 = vand.u32 %v372, 4294901760
        %v4100 = vsub.f32 %v372, %v4099
        %v4101 = vand.u32 %v4100, 4294901760
        %v4102 = vsub.f32 %v4100, %v4101
        %v4103 = vand.u32 %v4102, 4294901760
        %4104 = vmatpush1.msra.mxu0 %v4103
        %4105 = vmatprep.subr.mxu0 0.0
        %v4106 = vand.u32 %v373, 4294901760
        %v4107 = vsub.f32 %v373, %v4106
        %v4108 = vand.u32 %v4107, 4294901760
        %v4109 = vsub.f32 %v4107, %v4108
        %v4110 = vand.u32 %v4109, 4294901760
        %4111 = vmatpush1.msra.mxu0 %v4110
        %4112 = vmatprep.subr.mxu0 0.0
        %v4113 = vand.u32 %v374, 4294901760
        %v4114 = vsub.f32 %v374, %v4113
        %v4115 = vand.u32 %v4114, 4294901760
        %v4116 = vsub.f32 %v4114, %v4115
        %v4117 = vand.u32 %v4116, 4294901760
        %4118 = vmatpush1.msra.mxu0 %v4117
        %4119 = vmatprep.subr.mxu0 0.0
        %v4120 = vand.u32 %v375, 4294901760
        %v4121 = vsub.f32 %v375, %v4120
        %v4122 = vand.u32 %v4121, 4294901760
        %v4123 = vsub.f32 %v4121, %v4122
        %v4124 = vand.u32 %v4123, 4294901760
        %4125 = vmatpush1.msra.mxu0 %v4124
        %4126 = vmatprep.subr.mxu0 0.0
        %v4127 = vand.u32 %v376, 4294901760
        %v4128 = vsub.f32 %v376, %v4127
        %v4129 = vand.u32 %v4128, 4294901760
        %v4130 = vsub.f32 %v4128, %v4129
        %v4131 = vand.u32 %v4130, 4294901760
        %4132 = vmatpush1.msra.mxu0 %v4131
        %4133 = vmatprep.subr.mxu0 0.0
        %v4134 = vand.u32 %v377, 4294901760
        %v4135 = vsub.f32 %v377, %v4134
        %v4136 = vand.u32 %v4135, 4294901760
        %v4137 = vsub.f32 %v4135, %v4136
        %v4138 = vand.u32 %v4137, 4294901760
        %4139 = vmatpush1.msra.mxu0 %v4138
        %v4140 = vand.u32 %v3661, 4294901760
        %4141 = vmatprep.mubr.f32.mxu0 %v4140
        %v4142 = vand.u32 %v3660, 4294901760
        %4143 = vmatmul.mubr.f32.gmra.mrb[0].mxu0 %v4142
        %v4144 = vpop.f32.mrb[0].mxu0
        %v4145 = vadd.f32 %v3808, %v4144
        %v4146 = vpop.f32.mrb[0].mxu0
        %v4147 = vand.u32 %v3665, 4294901760
        %4148 = vmatprep.mubr.f32.mxu0 %v4147
        %v4149 = vand.u32 %v3664, 4294901760
        %4150 = vmatmul.mubr.f32.gmra.mrb[0].mxu0 %v4149
        %v4151 = vpop.f32.mrb[0].mxu0
        %v4152 = vadd.f32 %v3823, %v4151
        %v4153 = vpop.f32.mrb[0].mxu0
        %v4154 = vand.u32 %v3669, 4294901760
        %4155 = vmatprep.mubr.f32.mxu0 %v4154
        %v4156 = vand.u32 %v3668, 4294901760
        %4157 = vmatmul.mubr.f32.gmra.mrb[0].mxu0 %v4156
        %v4158 = vpop.f32.mrb[0].mxu0
        %v4159 = vadd.f32 %v3838, %v4158
        %v4160 = vpop.f32.mrb[0].mxu0
        %v4161 = vand.u32 %v3673, 4294901760
        %4162 = vmatprep.mubr.f32.mxu0 %v4161
        %v4163 = vand.u32 %v3672, 4294901760
        %4164 = vmatmul.mubr.f32.gmra.mrb[0].mxu0 %v4163
        %v4165 = vpop.f32.mrb[0].mxu0
        %v4166 = vadd.f32 %v3853, %v4165
        %v4167 = vpop.f32.mrb[0].mxu0
        %v4168 = vand.u32 %v3677, 4294901760
        %4169 = vmatprep.mubr.f32.mxu0 %v4168
        %v4170 = vand.u32 %v3676, 4294901760
        %4171 = vmatmul.mubr.f32.gmra.mrb[0].mxu0 %v4170
        %v4172 = vpop.f32.mrb[0].mxu0
        %v4173 = vadd.f32 %v3868, %v4172
        %v4174 = vpop.f32.mrb[0].mxu0
        %v4175 = vand.u32 %v3681, 4294901760
        %4176 = vmatprep.mubr.f32.mxu0 %v4175
        %v4177 = vand.u32 %v3680, 4294901760
        %4178 = vmatmul.mubr.f32.gmra.mrb[0].mxu0 %v4177
        %v4179 = vpop.f32.mrb[0].mxu0
        %v4180 = vadd.f32 %v3883, %v4179
        %v4181 = vpop.f32.mrb[0].mxu0
        %v4182 = vand.u32 %v3685, 4294901760
        %4183 = vmatprep.mubr.f32.mxu0 %v4182
        %v4184 = vand.u32 %v3684, 4294901760
        %4185 = vmatmul.mubr.f32.gmra.mrb[0].mxu0 %v4184
        %v4186 = vpop.f32.mrb[0].mxu0
        %v4187 = vadd.f32 %v3898, %v4186
        %v4188 = vpop.f32.mrb[0].mxu0
        %v4189 = vand.u32 %v3689, 4294901760
        %4190 = vmatprep.mubr.f32.mxu0 %v4189
        %v4191 = vand.u32 %v3688, 4294901760
        %4192 = vmatmul.mubr.f32.gmra.mrb[0].mxu0 %v4191
        %v4193 = vpop.f32.mrb[0].mxu0
        %v4194 = vadd.f32 %v3913, %v4193
        %v4195 = vpop.f32.mrb[0].mxu0
        %4196 = vdwg.mxu0
        %4197 = vmatprep.subr.mxu0 0.0
        %v4198 = vand.u32 %v346, 4294901760
        %v4199 = vsub.f32 %v346, %v4198
        %4200 = vmatpush1.msra.mxu0 %v4199
        %4201 = vmatprep.subr.mxu0 0.0
        %v4202 = vand.u32 %v347, 4294901760
        %v4203 = vsub.f32 %v347, %v4202
        %4204 = vmatpush1.msra.mxu0 %v4203
        %4205 = vmatprep.subr.mxu0 0.0
        %v4206 = vand.u32 %v348, 4294901760
        %v4207 = vsub.f32 %v348, %v4206
        %4208 = vmatpush1.msra.mxu0 %v4207
        %4209 = vmatprep.subr.mxu0 0.0
        %v4210 = vand.u32 %v349, 4294901760
        %v4211 = vsub.f32 %v349, %v4210
        %4212 = vmatpush1.msra.mxu0 %v4211
        %4213 = vmatprep.subr.mxu0 0.0
        %v4214 = vand.u32 %v350, 4294901760
        %v4215 = vsub.f32 %v350, %v4214
        %4216 = vmatpush1.msra.mxu0 %v4215
        %4217 = vmatprep.subr.mxu0 0.0
        %v4218 = vand.u32 %v351, 4294901760
        %v4219 = vsub.f32 %v351, %v4218
        %4220 = vmatpush1.msra.mxu0 %v4219
        %4221 = vmatprep.subr.mxu0 0.0
        %v4222 = vand.u32 %v352, 4294901760
        %v4223 = vsub.f32 %v352, %v4222
        %4224 = vmatpush1.msra.mxu0 %v4223
        %4225 = vmatprep.subr.mxu0 0.0
        %v4226 = vand.u32 %v353, 4294901760
        %v4227 = vsub.f32 %v353, %v4226
        %4228 = vmatpush1.msra.mxu0 %v4227
        %4229 = vmatprep.subr.mxu0 0.0
        %v4230 = vand.u32 %v354, 4294901760
        %v4231 = vsub.f32 %v354, %v4230
        %4232 = vmatpush1.msra.mxu0 %v4231
        %4233 = vmatprep.subr.mxu0 0.0
        %v4234 = vand.u32 %v355, 4294901760
        %v4235 = vsub.f32 %v355, %v4234
        %4236 = vmatpush1.msra.mxu0 %v4235
        %4237 = vmatprep.subr.mxu0 0.0
        %v4238 = vand.u32 %v356, 4294901760
        %v4239 = vsub.f32 %v356, %v4238
        %4240 = vmatpush1.msra.mxu0 %v4239
        %4241 = vmatprep.subr.mxu0 0.0
        %v4242 = vand.u32 %v357, 4294901760
        %v4243 = vsub.f32 %v357, %v4242
        %4244 = vmatpush1.msra.mxu0 %v4243
        %4245 = vmatprep.subr.mxu0 0.0
        %v4246 = vand.u32 %v358, 4294901760
        %v4247 = vsub.f32 %v358, %v4246
        %4248 = vmatpush1.msra.mxu0 %v4247
        %4249 = vmatprep.subr.mxu0 0.0
        %v4250 = vand.u32 %v359, 4294901760
        %v4251 = vsub.f32 %v359, %v4250
        %4252 = vmatpush1.msra.mxu0 %v4251
        %4253 = vmatprep.subr.mxu0 0.0
        %v4254 = vand.u32 %v360, 4294901760
        %v4255 = vsub.f32 %v360, %v4254
        %4256 = vmatpush1.msra.mxu0 %v4255
        %4257 = vmatprep.subr.mxu0 0.0
        %v4258 = vand.u32 %v361, 4294901760
        %v4259 = vsub.f32 %v361, %v4258
        %4260 = vmatpush1.msra.mxu0 %v4259
        %4261 = vmatprep.subr.mxu0 0.0
        %v4262 = vand.u32 %v362, 4294901760
        %v4263 = vsub.f32 %v362, %v4262
        %4264 = vmatpush1.msra.mxu0 %v4263
        %4265 = vmatprep.subr.mxu0 0.0
        %v4266 = vand.u32 %v363, 4294901760
        %v4267 = vsub.f32 %v363, %v4266
        %4268 = vmatpush1.msra.mxu0 %v4267
        %4269 = vmatprep.subr.mxu0 0.0
        %v4270 = vand.u32 %v364, 4294901760
        %v4271 = vsub.f32 %v364, %v4270
        %4272 = vmatpush1.msra.mxu0 %v4271
        %4273 = vmatprep.subr.mxu0 0.0
        %v4274 = vand.u32 %v365, 4294901760
        %v4275 = vsub.f32 %v365, %v4274
        %4276 = vmatpush1.msra.mxu0 %v4275
        %4277 = vmatprep.subr.mxu0 0.0
        %v4278 = vand.u32 %v366, 4294901760
        %v4279 = vsub.f32 %v366, %v4278
        %4280 = vmatpush1.msra.mxu0 %v4279
        %4281 = vmatprep.subr.mxu0 0.0
        %v4282 = vand.u32 %v367, 4294901760
        %v4283 = vsub.f32 %v367, %v4282
        %4284 = vmatpush1.msra.mxu0 %v4283
        %4285 = vmatprep.subr.mxu0 0.0
        %v4286 = vand.u32 %v368, 4294901760
        %v4287 = vsub.f32 %v368, %v4286
        %4288 = vmatpush1.msra.mxu0 %v4287
        %4289 = vmatprep.subr.mxu0 0.0
        %v4290 = vand.u32 %v369, 4294901760
        %v4291 = vsub.f32 %v369, %v4290
        %4292 = vmatpush1.msra.mxu0 %v4291
        %4293 = vmatprep.subr.mxu0 0.0
        %v4294 = vand.u32 %v370, 4294901760
        %v4295 = vsub.f32 %v370, %v4294
        %4296 = vmatpush1.msra.mxu0 %v4295
        %4297 = vmatprep.subr.mxu0 0.0
        %v4298 = vand.u32 %v371, 4294901760
        %v4299 = vsub.f32 %v371, %v4298
        %4300 = vmatpush1.msra.mxu0 %v4299
        %4301 = vmatprep.subr.mxu0 0.0
        %v4302 = vand.u32 %v372, 4294901760
        %v4303 = vsub.f32 %v372, %v4302
        %4304 = vmatpush1.msra.mxu0 %v4303
        %4305 = vmatprep.subr.mxu0 0.0
        %v4306 = vand.u32 %v373, 4294901760
        %v4307 = vsub.f32 %v373, %v4306
        %4308 = vmatpush1.msra.mxu0 %v4307
        %4309 = vmatprep.subr.mxu0 0.0
        %v4310 = vand.u32 %v374, 4294901760
        %v4311 = vsub.f32 %v374, %v4310
        %4312 = vmatpush1.msra.mxu0 %v4311
        %4313 = vmatprep.subr.mxu0 0.0
        %v4314 = vand.u32 %v375, 4294901760
        %v4315 = vsub.f32 %v375, %v4314
        %4316 = vmatpush1.msra.mxu0 %v4315
        %4317 = vmatprep.subr.mxu0 0.0
        %v4318 = vand.u32 %v376, 4294901760
        %v4319 = vsub.f32 %v376, %v4318
        %4320 = vmatpush1.msra.mxu0 %v4319
        %4321 = vmatprep.subr.mxu0 0.0
        %v4322 = vand.u32 %v377, 4294901760
        %v4323 = vsub.f32 %v377, %v4322
        %4324 = vmatpush1.msra.mxu0 %v4323
        %v4325 = vand.u32 %v3661, 4294901760
        %v4326 = vsub.f32 %v3661, %v4325
        %4327 = vmatprep.mubr.f32.mxu0 %v4326
        %v4328 = vand.u32 %v3660, 4294901760
        %v4329 = vsub.f32 %v3660, %v4328
        %4330 = vmatmul.mubr.f32.gmra.mrb[0].mxu0 %v4329
        %v4331 = vpop.f32.mrb[0].mxu0
        %v4332 = vadd.f32 %v4145, %v4331
        %v4333 = vpop.f32.mrb[0].mxu0
        %v4334 = vand.u32 %v3665, 4294901760
        %v4335 = vsub.f32 %v3665, %v4334
        %4336 = vmatprep.mubr.f32.mxu0 %v4335
        %v4337 = vand.u32 %v3664, 4294901760
        %v4338 = vsub.f32 %v3664, %v4337
        %4339 = vmatmul.mubr.f32.gmra.mrb[0].mxu0 %v4338
        %v4340 = vpop.f32.mrb[0].mxu0
        %v4341 = vadd.f32 %v4152, %v4340
        %v4342 = vpop.f32.mrb[0].mxu0
        %v4343 = vand.u32 %v3669, 4294901760
        %v4344 = vsub.f32 %v3669, %v4343
        %4345 = vmatprep.mubr.f32.mxu0 %v4344
        %v4346 = vand.u32 %v3668, 4294901760
        %v4347 = vsub.f32 %v3668, %v4346
        %4348 = vmatmul.mubr.f32.gmra.mrb[0].mxu0 %v4347
        %v4349 = vpop.f32.mrb[0].mxu0
        %v4350 = vadd.f32 %v4159, %v4349
        %v4351 = vpop.f32.mrb[0].mxu0
        %v4352 = vand.u32 %v3673, 4294901760
        %v4353 = vsub.f32 %v3673, %v4352
        %4354 = vmatprep.mubr.f32.mxu0 %v4353
        %v4355 = vand.u32 %v3672, 4294901760
        %v4356 = vsub.f32 %v3672, %v4355
        %4357 = vmatmul.mubr.f32.gmra.mrb[0].mxu0 %v4356
        %v4358 = vpop.f32.mrb[0].mxu0
        %v4359 = vadd.f32 %v4166, %v4358
        %v4360 = vpop.f32.mrb[0].mxu0
        %v4361 = vand.u32 %v3677, 4294901760
        %v4362 = vsub.f32 %v3677, %v4361
        %4363 = vmatprep.mubr.f32.mxu0 %v4362
        %v4364 = vand.u32 %v3676, 4294901760
        %v4365 = vsub.f32 %v3676, %v4364
        %4366 = vmatmul.mubr.f32.gmra.mrb[0].mxu0 %v4365
        %v4367 = vpop.f32.mrb[0].mxu0
        %v4368 = vadd.f32 %v4173, %v4367
        %v4369 = vpop.f32.mrb[0].mxu0
        %v4370 = vand.u32 %v3681, 4294901760
        %v4371 = vsub.f32 %v3681, %v4370
        %4372 = vmatprep.mubr.f32.mxu0 %v4371
        %v4373 = vand.u32 %v3680, 4294901760
        %v4374 = vsub.f32 %v3680, %v4373
        %4375 = vmatmul.mubr.f32.gmra.mrb[0].mxu0 %v4374
        %v4376 = vpop.f32.mrb[0].mxu0
        %v4377 = vadd.f32 %v4180, %v4376
        %v4378 = vpop.f32.mrb[0].mxu0
        %v4379 = vand.u32 %v3685, 4294901760
        %v4380 = vsub.f32 %v3685, %v4379
        %4381 = vmatprep.mubr.f32.mxu0 %v4380
        %v4382 = vand.u32 %v3684, 4294901760
        %v4383 = vsub.f32 %v3684, %v4382
        %4384 = vmatmul.mubr.f32.gmra.mrb[0].mxu0 %v4383
        %v4385 = vpop.f32.mrb[0].mxu0
        %v4386 = vadd.f32 %v4187, %v4385
        %v4387 = vpop.f32.mrb[0].mxu0
        %v4388 = vand.u32 %v3689, 4294901760
        %v4389 = vsub.f32 %v3689, %v4388
        %4390 = vmatprep.mubr.f32.mxu0 %v4389
        %v4391 = vand.u32 %v3688, 4294901760
        %v4392 = vsub.f32 %v3688, %v4391
        %4393 = vmatmul.mubr.f32.gmra.mrb[0].mxu0 %v4392
        %v4394 = vpop.f32.mrb[0].mxu0
        %v4395 = vadd.f32 %v4194, %v4394
        %v4396 = vpop.f32.mrb[0].mxu0
        %4397 = vdwg.mxu0
        %4398 = vmatprep.subr.mxu0 0.0
        %v4399 = vand.u32 %v346, 4294901760
        %4400 = vmatpush1.msra.mxu0 %v4399
        %4401 = vmatprep.subr.mxu0 0.0
        %v4402 = vand.u32 %v347, 4294901760
        %4403 = vmatpush1.msra.mxu0 %v4402
        %4404 = vmatprep.subr.mxu0 0.0
        %v4405 = vand.u32 %v348, 4294901760
        %4406 = vmatpush1.msra.mxu0 %v4405
        %4407 = vmatprep.subr.mxu0 0.0
        %v4408 = vand.u32 %v349, 4294901760
        %4409 = vmatpush1.msra.mxu0 %v4408
        %4410 = vmatprep.subr.mxu0 0.0
        %v4411 = vand.u32 %v350, 4294901760
        %4412 = vmatpush1.msra.mxu0 %v4411
        %4413 = vmatprep.subr.mxu0 0.0
        %v4414 = vand.u32 %v351, 4294901760
        %4415 = vmatpush1.msra.mxu0 %v4414
        %4416 = vmatprep.subr.mxu0 0.0
        %v4417 = vand.u32 %v352, 4294901760
        %4418 = vmatpush1.msra.mxu0 %v4417
        %4419 = vmatprep.subr.mxu0 0.0
        %v4420 = vand.u32 %v353, 4294901760
        %4421 = vmatpush1.msra.mxu0 %v4420
        %4422 = vmatprep.subr.mxu0 0.0
        %v4423 = vand.u32 %v354, 4294901760
        %4424 = vmatpush1.msra.mxu0 %v4423
        %4425 = vmatprep.subr.mxu0 0.0
        %v4426 = vand.u32 %v355, 4294901760
        %4427 = vmatpush1.msra.mxu0 %v4426
        %4428 = vmatprep.subr.mxu0 0.0
        %v4429 = vand.u32 %v356, 4294901760
        %4430 = vmatpush1.msra.mxu0 %v4429
        %4431 = vmatprep.subr.mxu0 0.0
        %v4432 = vand.u32 %v357, 4294901760
        %4433 = vmatpush1.msra.mxu0 %v4432
        %4434 = vmatprep.subr.mxu0 0.0
        %v4435 = vand.u32 %v358, 4294901760
        %4436 = vmatpush1.msra.mxu0 %v4435
        %4437 = vmatprep.subr.mxu0 0.0
        %v4438 = vand.u32 %v359, 4294901760
        %4439 = vmatpush1.msra.mxu0 %v4438
        %4440 = vmatprep.subr.mxu0 0.0
        %v4441 = vand.u32 %v360, 4294901760
        %4442 = vmatpush1.msra.mxu0 %v4441
        %4443 = vmatprep.subr.mxu0 0.0
        %v4444 = vand.u32 %v361, 4294901760
        %4445 = vmatpush1.msra.mxu0 %v4444
        %4446 = vmatprep.subr.mxu0 0.0
        %v4447 = vand.u32 %v362, 4294901760
        %4448 = vmatpush1.msra.mxu0 %v4447
        %4449 = vmatprep.subr.mxu0 0.0
        %v4450 = vand.u32 %v363, 4294901760
        %4451 = vmatpush1.msra.mxu0 %v4450
        %4452 = vmatprep.subr.mxu0 0.0
        %v4453 = vand.u32 %v364, 4294901760
        %4454 = vmatpush1.msra.mxu0 %v4453
        %4455 = vmatprep.subr.mxu0 0.0
        %v4456 = vand.u32 %v365, 4294901760
        %4457 = vmatpush1.msra.mxu0 %v4456
        %4458 = vmatprep.subr.mxu0 0.0
        %v4459 = vand.u32 %v366, 4294901760
        %4460 = vmatpush1.msra.mxu0 %v4459
        %4461 = vmatprep.subr.mxu0 0.0
        %v4462 = vand.u32 %v367, 4294901760
        %4463 = vmatpush1.msra.mxu0 %v4462
        %4464 = vmatprep.subr.mxu0 0.0
        %v4465 = vand.u32 %v368, 4294901760
        %4466 = vmatpush1.msra.mxu0 %v4465
        %4467 = vmatprep.subr.mxu0 0.0
        %v4468 = vand.u32 %v369, 4294901760
        %4469 = vmatpush1.msra.mxu0 %v4468
        %4470 = vmatprep.subr.mxu0 0.0
        %v4471 = vand.u32 %v370, 4294901760
        %4472 = vmatpush1.msra.mxu0 %v4471
        %4473 = vmatprep.subr.mxu0 0.0
        %v4474 = vand.u32 %v371, 4294901760
        %4475 = vmatpush1.msra.mxu0 %v4474
        %4476 = vmatprep.subr.mxu0 0.0
        %v4477 = vand.u32 %v372, 4294901760
        %4478 = vmatpush1.msra.mxu0 %v4477
        %4479 = vmatprep.subr.mxu0 0.0
        %v4480 = vand.u32 %v373, 4294901760
        %4481 = vmatpush1.msra.mxu0 %v4480
        %4482 = vmatprep.subr.mxu0 0.0
        %v4483 = vand.u32 %v374, 4294901760
        %4484 = vmatpush1.msra.mxu0 %v4483
        %4485 = vmatprep.subr.mxu0 0.0
        %v4486 = vand.u32 %v375, 4294901760
        %4487 = vmatpush1.msra.mxu0 %v4486
        %4488 = vmatprep.subr.mxu0 0.0
        %v4489 = vand.u32 %v376, 4294901760
        %4490 = vmatpush1.msra.mxu0 %v4489
        %4491 = vmatprep.subr.mxu0 0.0
        %v4492 = vand.u32 %v377, 4294901760
        %4493 = vmatpush1.msra.mxu0 %v4492
        %v4494 = vand.u32 %v3661, 4294901760
        %v4495 = vsub.f32 %v3661, %v4494
        %v4496 = vand.u32 %v4495, 4294901760
        %4497 = vmatprep.mubr.f32.mxu0 %v4496
        %v4498 = vand.u32 %v3660, 4294901760
        %v4499 = vsub.f32 %v3660, %v4498
        %v4500 = vand.u32 %v4499, 4294901760
        %4501 = vmatmul.mubr.f32.gmra.mrb[0].mxu0 %v4500
        %v4502 = vpop.f32.mrb[0].mxu0
        %v4503 = vadd.f32 %v4332, %v4502
        %v4504 = vpop.f32.mrb[0].mxu0
        %v4505 = vand.u32 %v3665, 4294901760
        %v4506 = vsub.f32 %v3665, %v4505
        %v4507 = vand.u32 %v4506, 4294901760
        %4508 = vmatprep.mubr.f32.mxu0 %v4507
        %v4509 = vand.u32 %v3664, 4294901760
        %v4510 = vsub.f32 %v3664, %v4509
        %v4511 = vand.u32 %v4510, 4294901760
        %4512 = vmatmul.mubr.f32.gmra.mrb[0].mxu0 %v4511
        %v4513 = vpop.f32.mrb[0].mxu0
        %v4514 = vadd.f32 %v4341, %v4513
        %v4515 = vpop.f32.mrb[0].mxu0
        %v4516 = vand.u32 %v3669, 4294901760
        %v4517 = vsub.f32 %v3669, %v4516
        %v4518 = vand.u32 %v4517, 4294901760
        %4519 = vmatprep.mubr.f32.mxu0 %v4518
        %v4520 = vand.u32 %v3668, 4294901760
        %v4521 = vsub.f32 %v3668, %v4520
        %v4522 = vand.u32 %v4521, 4294901760
        %4523 = vmatmul.mubr.f32.gmra.mrb[0].mxu0 %v4522
        %v4524 = vpop.f32.mrb[0].mxu0
        %v4525 = vadd.f32 %v4350, %v4524
        %v4526 = vpop.f32.mrb[0].mxu0
        %v4527 = vand.u32 %v3673, 4294901760
        %v4528 = vsub.f32 %v3673, %v4527
        %v4529 = vand.u32 %v4528, 4294901760
        %4530 = vmatprep.mubr.f32.mxu0 %v4529
        %v4531 = vand.u32 %v3672, 4294901760
        %v4532 = vsub.f32 %v3672, %v4531
        %v4533 = vand.u32 %v4532, 4294901760
        %4534 = vmatmul.mubr.f32.gmra.mrb[0].mxu0 %v4533
        %v4535 = vpop.f32.mrb[0].mxu0
        %v4536 = vadd.f32 %v4359, %v4535
        %v4537 = vpop.f32.mrb[0].mxu0
        %v4538 = vand.u32 %v3677, 4294901760
        %v4539 = vsub.f32 %v3677, %v4538
        %v4540 = vand.u32 %v4539, 4294901760
        %4541 = vmatprep.mubr.f32.mxu0 %v4540
        %v4542 = vand.u32 %v3676, 4294901760
        %v4543 = vsub.f32 %v3676, %v4542
        %v4544 = vand.u32 %v4543, 4294901760
        %4545 = vmatmul.mubr.f32.gmra.mrb[0].mxu0 %v4544
        %v4546 = vpop.f32.mrb[0].mxu0
        %v4547 = vadd.f32 %v4368, %v4546
        %v4548 = vpop.f32.mrb[0].mxu0
        %v4549 = vand.u32 %v3681, 4294901760
        %v4550 = vsub.f32 %v3681, %v4549
        %v4551 = vand.u32 %v4550, 4294901760
        %4552 = vmatprep.mubr.f32.mxu0 %v4551
        %v4553 = vand.u32 %v3680, 4294901760
        %v4554 = vsub.f32 %v3680, %v4553
        %v4555 = vand.u32 %v4554, 4294901760
        %4556 = vmatmul.mubr.f32.gmra.mrb[0].mxu0 %v4555
        %v4557 = vpop.f32.mrb[0].mxu0
        %v4558 = vadd.f32 %v4377, %v4557
        %v4559 = vpop.f32.mrb[0].mxu0
        %v4560 = vand.u32 %v3685, 4294901760
        %v4561 = vsub.f32 %v3685, %v4560
        %v4562 = vand.u32 %v4561, 4294901760
        %4563 = vmatprep.mubr.f32.mxu0 %v4562
        %v4564 = vand.u32 %v3684, 4294901760
        %v4565 = vsub.f32 %v3684, %v4564
        %v4566 = vand.u32 %v4565, 4294901760
        %4567 = vmatmul.mubr.f32.gmra.mrb[0].mxu0 %v4566
        %v4568 = vpop.f32.mrb[0].mxu0
        %v4569 = vadd.f32 %v4386, %v4568
        %v4570 = vpop.f32.mrb[0].mxu0
        %v4571 = vand.u32 %v3689, 4294901760
        %v4572 = vsub.f32 %v3689, %v4571
        %v4573 = vand.u32 %v4572, 4294901760
        %4574 = vmatprep.mubr.f32.mxu0 %v4573
        %v4575 = vand.u32 %v3688, 4294901760
        %v4576 = vsub.f32 %v3688, %v4575
        %v4577 = vand.u32 %v4576, 4294901760
        %4578 = vmatmul.mubr.f32.gmra.mrb[0].mxu0 %v4577
        %v4579 = vpop.f32.mrb[0].mxu0
        %v4580 = vadd.f32 %v4395, %v4579
        %v4581 = vpop.f32.mrb[0].mxu0
        %4582 = vdwg.mxu0
        %4583 = vmatprep.subr.mxu0 0.0
        %v4584 = vand.u32 %v346, 4294901760
        %v4585 = vsub.f32 %v346, %v4584
        %v4586 = vand.u32 %v4585, 4294901760
        %4587 = vmatpush1.msra.mxu0 %v4586
        %4588 = vmatprep.subr.mxu0 0.0
        %v4589 = vand.u32 %v347, 4294901760
        %v4590 = vsub.f32 %v347, %v4589
        %v4591 = vand.u32 %v4590, 4294901760
        %4592 = vmatpush1.msra.mxu0 %v4591
        %4593 = vmatprep.subr.mxu0 0.0
        %v4594 = vand.u32 %v348, 4294901760
        %v4595 = vsub.f32 %v348, %v4594
        %v4596 = vand.u32 %v4595, 4294901760
        %4597 = vmatpush1.msra.mxu0 %v4596
        %4598 = vmatprep.subr.mxu0 0.0
        %v4599 = vand.u32 %v349, 4294901760
        %v4600 = vsub.f32 %v349, %v4599
        %v4601 = vand.u32 %v4600, 4294901760
        %4602 = vmatpush1.msra.mxu0 %v4601
        %4603 = vmatprep.subr.mxu0 0.0
        %v4604 = vand.u32 %v350, 4294901760
        %v4605 = vsub.f32 %v350, %v4604
        %v4606 = vand.u32 %v4605, 4294901760
        %4607 = vmatpush1.msra.mxu0 %v4606
        %4608 = vmatprep.subr.mxu0 0.0
        %v4609 = vand.u32 %v351, 4294901760
        %v4610 = vsub.f32 %v351, %v4609
        %v4611 = vand.u32 %v4610, 4294901760
        %4612 = vmatpush1.msra.mxu0 %v4611
        %4613 = vmatprep.subr.mxu0 0.0
        %v4614 = vand.u32 %v352, 4294901760
        %v4615 = vsub.f32 %v352, %v4614
        %v4616 = vand.u32 %v4615, 4294901760
        %4617 = vmatpush1.msra.mxu0 %v4616
        %4618 = vmatprep.subr.mxu0 0.0
        %v4619 = vand.u32 %v353, 4294901760
        %v4620 = vsub.f32 %v353, %v4619
        %v4621 = vand.u32 %v4620, 4294901760
        %4622 = vmatpush1.msra.mxu0 %v4621
        %4623 = vmatprep.subr.mxu0 0.0
        %v4624 = vand.u32 %v354, 4294901760
        %v4625 = vsub.f32 %v354, %v4624
        %v4626 = vand.u32 %v4625, 4294901760
        %4627 = vmatpush1.msra.mxu0 %v4626
        %4628 = vmatprep.subr.mxu0 0.0
        %v4629 = vand.u32 %v355, 4294901760
        %v4630 = vsub.f32 %v355, %v4629
        %v4631 = vand.u32 %v4630, 4294901760
        %4632 = vmatpush1.msra.mxu0 %v4631
        %4633 = vmatprep.subr.mxu0 0.0
        %v4634 = vand.u32 %v356, 4294901760
        %v4635 = vsub.f32 %v356, %v4634
        %v4636 = vand.u32 %v4635, 4294901760
        %4637 = vmatpush1.msra.mxu0 %v4636
        %4638 = vmatprep.subr.mxu0 0.0
        %v4639 = vand.u32 %v357, 4294901760
        %v4640 = vsub.f32 %v357, %v4639
        %v4641 = vand.u32 %v4640, 4294901760
        %4642 = vmatpush1.msra.mxu0 %v4641
        %4643 = vmatprep.subr.mxu0 0.0
        %v4644 = vand.u32 %v358, 4294901760
        %v4645 = vsub.f32 %v358, %v4644
        %v4646 = vand.u32 %v4645, 4294901760
        %4647 = vmatpush1.msra.mxu0 %v4646
        %4648 = vmatprep.subr.mxu0 0.0
        %v4649 = vand.u32 %v359, 4294901760
        %v4650 = vsub.f32 %v359, %v4649
        %v4651 = vand.u32 %v4650, 4294901760
        %4652 = vmatpush1.msra.mxu0 %v4651
        %4653 = vmatprep.subr.mxu0 0.0
        %v4654 = vand.u32 %v360, 4294901760
        %v4655 = vsub.f32 %v360, %v4654
        %v4656 = vand.u32 %v4655, 4294901760
        %4657 = vmatpush1.msra.mxu0 %v4656
        %4658 = vmatprep.subr.mxu0 0.0
        %v4659 = vand.u32 %v361, 4294901760
        %v4660 = vsub.f32 %v361, %v4659
        %v4661 = vand.u32 %v4660, 4294901760
        %4662 = vmatpush1.msra.mxu0 %v4661
        %4663 = vmatprep.subr.mxu0 0.0
        %v4664 = vand.u32 %v362, 4294901760
        %v4665 = vsub.f32 %v362, %v4664
        %v4666 = vand.u32 %v4665, 4294901760
        %4667 = vmatpush1.msra.mxu0 %v4666
        %4668 = vmatprep.subr.mxu0 0.0
        %v4669 = vand.u32 %v363, 4294901760
        %v4670 = vsub.f32 %v363, %v4669
        %v4671 = vand.u32 %v4670, 4294901760
        %4672 = vmatpush1.msra.mxu0 %v4671
        %4673 = vmatprep.subr.mxu0 0.0
        %v4674 = vand.u32 %v364, 4294901760
        %v4675 = vsub.f32 %v364, %v4674
        %v4676 = vand.u32 %v4675, 4294901760
        %4677 = vmatpush1.msra.mxu0 %v4676
        %4678 = vmatprep.subr.mxu0 0.0
        %v4679 = vand.u32 %v365, 4294901760
        %v4680 = vsub.f32 %v365, %v4679
        %v4681 = vand.u32 %v4680, 4294901760
        %4682 = vmatpush1.msra.mxu0 %v4681
        %4683 = vmatprep.subr.mxu0 0.0
        %v4684 = vand.u32 %v366, 4294901760
        %v4685 = vsub.f32 %v366, %v4684
        %v4686 = vand.u32 %v4685, 4294901760
        %4687 = vmatpush1.msra.mxu0 %v4686
        %4688 = vmatprep.subr.mxu0 0.0
        %v4689 = vand.u32 %v367, 4294901760
        %v4690 = vsub.f32 %v367, %v4689
        %v4691 = vand.u32 %v4690, 4294901760
        %4692 = vmatpush1.msra.mxu0 %v4691
        %4693 = vmatprep.subr.mxu0 0.0
        %v4694 = vand.u32 %v368, 4294901760
        %v4695 = vsub.f32 %v368, %v4694
        %v4696 = vand.u32 %v4695, 4294901760
        %4697 = vmatpush1.msra.mxu0 %v4696
        %4698 = vmatprep.subr.mxu0 0.0
        %v4699 = vand.u32 %v369, 4294901760
        %v4700 = vsub.f32 %v369, %v4699
        %v4701 = vand.u32 %v4700, 4294901760
        %4702 = vmatpush1.msra.mxu0 %v4701
        %4703 = vmatprep.subr.mxu0 0.0
        %v4704 = vand.u32 %v370, 4294901760
        %v4705 = vsub.f32 %v370, %v4704
        %v4706 = vand.u32 %v4705, 4294901760
        %4707 = vmatpush1.msra.mxu0 %v4706
        %4708 = vmatprep.subr.mxu0 0.0
        %v4709 = vand.u32 %v371, 4294901760
        %v4710 = vsub.f32 %v371, %v4709
        %v4711 = vand.u32 %v4710, 4294901760
        %4712 = vmatpush1.msra.mxu0 %v4711
        %4713 = vmatprep.subr.mxu0 0.0
        %v4714 = vand.u32 %v372, 4294901760
        %v4715 = vsub.f32 %v372, %v4714
        %v4716 = vand.u32 %v4715, 4294901760
        %4717 = vmatpush1.msra.mxu0 %v4716
        %4718 = vmatprep.subr.mxu0 0.0
        %v4719 = vand.u32 %v373, 4294901760
        %v4720 = vsub.f32 %v373, %v4719
        %v4721 = vand.u32 %v4720, 4294901760
        %4722 = vmatpush1.msra.mxu0 %v4721
        %4723 = vmatprep.subr.mxu0 0.0
        %v4724 = vand.u32 %v374, 4294901760
        %v4725 = vsub.f32 %v374, %v4724
        %v4726 = vand.u32 %v4725, 4294901760
        %4727 = vmatpush1.msra.mxu0 %v4726
        %4728 = vmatprep.subr.mxu0 0.0
        %v4729 = vand.u32 %v375, 4294901760
        %v4730 = vsub.f32 %v375, %v4729
        %v4731 = vand.u32 %v4730, 4294901760
        %4732 = vmatpush1.msra.mxu0 %v4731
        %4733 = vmatprep.subr.mxu0 0.0
        %v4734 = vand.u32 %v376, 4294901760
        %v4735 = vsub.f32 %v376, %v4734
        %v4736 = vand.u32 %v4735, 4294901760
        %4737 = vmatpush1.msra.mxu0 %v4736
        %4738 = vmatprep.subr.mxu0 0.0
        %v4739 = vand.u32 %v377, 4294901760
        %v4740 = vsub.f32 %v377, %v4739
        %v4741 = vand.u32 %v4740, 4294901760
        %4742 = vmatpush1.msra.mxu0 %v4741
        %v4743 = vand.u32 %v3661, 4294901760
        %4744 = vmatprep.mubr.f32.mxu0 %v4743
        %v4745 = vand.u32 %v3660, 4294901760
        %4746 = vmatmul.mubr.f32.gmra.mrb[0].mxu0 %v4745
        %v4747 = vpop.f32.mrb[0].mxu0
        %v4748 = vadd.f32 %v4503, %v4747
        %v4749 = vpop.f32.mrb[0].mxu0
        %v4750 = vand.u32 %v3665, 4294901760
        %4751 = vmatprep.mubr.f32.mxu0 %v4750
        %v4752 = vand.u32 %v3664, 4294901760
        %4753 = vmatmul.mubr.f32.gmra.mrb[0].mxu0 %v4752
        %v4754 = vpop.f32.mrb[0].mxu0
        %v4755 = vadd.f32 %v4514, %v4754
        %v4756 = vpop.f32.mrb[0].mxu0
        %v4757 = vand.u32 %v3669, 4294901760
        %4758 = vmatprep.mubr.f32.mxu0 %v4757
        %v4759 = vand.u32 %v3668, 4294901760
        %4760 = vmatmul.mubr.f32.gmra.mrb[0].mxu0 %v4759
        %v4761 = vpop.f32.mrb[0].mxu0
        %v4762 = vadd.f32 %v4525, %v4761
        %v4763 = vpop.f32.mrb[0].mxu0
        %v4764 = vand.u32 %v3673, 4294901760
        %4765 = vmatprep.mubr.f32.mxu0 %v4764
        %v4766 = vand.u32 %v3672, 4294901760
        %4767 = vmatmul.mubr.f32.gmra.mrb[0].mxu0 %v4766
        %v4768 = vpop.f32.mrb[0].mxu0
        %v4769 = vadd.f32 %v4536, %v4768
        %v4770 = vpop.f32.mrb[0].mxu0
        %v4771 = vand.u32 %v3677, 4294901760
        %4772 = vmatprep.mubr.f32.mxu0 %v4771
        %v4773 = vand.u32 %v3676, 4294901760
        %4774 = vmatmul.mubr.f32.gmra.mrb[0].mxu0 %v4773
        %v4775 = vpop.f32.mrb[0].mxu0
        %v4776 = vadd.f32 %v4547, %v4775
        %v4777 = vpop.f32.mrb[0].mxu0
        %v4778 = vand.u32 %v3681, 4294901760
        %4779 = vmatprep.mubr.f32.mxu0 %v4778
        %v4780 = vand.u32 %v3680, 4294901760
        %4781 = vmatmul.mubr.f32.gmra.mrb[0].mxu0 %v4780
        %v4782 = vpop.f32.mrb[0].mxu0
        %v4783 = vadd.f32 %v4558, %v4782
        %v4784 = vpop.f32.mrb[0].mxu0
        %v4785 = vand.u32 %v3685, 4294901760
        %4786 = vmatprep.mubr.f32.mxu0 %v4785
        %v4787 = vand.u32 %v3684, 4294901760
        %4788 = vmatmul.mubr.f32.gmra.mrb[0].mxu0 %v4787
        %v4789 = vpop.f32.mrb[0].mxu0
        %v4790 = vadd.f32 %v4569, %v4789
        %v4791 = vpop.f32.mrb[0].mxu0
        %v4792 = vand.u32 %v3689, 4294901760
        %4793 = vmatprep.mubr.f32.mxu0 %v4792
        %v4794 = vand.u32 %v3688, 4294901760
        %4795 = vmatmul.mubr.f32.gmra.mrb[0].mxu0 %v4794
        %v4796 = vpop.f32.mrb[0].mxu0
        %v4797 = vadd.f32 %v4580, %v4796
        %v4798 = vpop.f32.mrb[0].mxu0
        %4799 = vdwg.mxu0
        %4800 = vmatprep.subr.mxu0 0.0
        %v4801 = vand.u32 %v346, 4294901760
        %4802 = vmatpush1.msra.mxu0 %v4801
        %4803 = vmatprep.subr.mxu0 0.0
        %v4804 = vand.u32 %v347, 4294901760
        %4805 = vmatpush1.msra.mxu0 %v4804
        %4806 = vmatprep.subr.mxu0 0.0
        %v4807 = vand.u32 %v348, 4294901760
        %4808 = vmatpush1.msra.mxu0 %v4807
        %4809 = vmatprep.subr.mxu0 0.0
        %v4810 = vand.u32 %v349, 4294901760
        %4811 = vmatpush1.msra.mxu0 %v4810
        %4812 = vmatprep.subr.mxu0 0.0
        %v4813 = vand.u32 %v350, 4294901760
        %4814 = vmatpush1.msra.mxu0 %v4813
        %4815 = vmatprep.subr.mxu0 0.0
        %v4816 = vand.u32 %v351, 4294901760
        %4817 = vmatpush1.msra.mxu0 %v4816
        %4818 = vmatprep.subr.mxu0 0.0
        %v4819 = vand.u32 %v352, 4294901760
        %4820 = vmatpush1.msra.mxu0 %v4819
        %4821 = vmatprep.subr.mxu0 0.0
        %v4822 = vand.u32 %v353, 4294901760
        %4823 = vmatpush1.msra.mxu0 %v4822
        %4824 = vmatprep.subr.mxu0 0.0
        %v4825 = vand.u32 %v354, 4294901760
        %4826 = vmatpush1.msra.mxu0 %v4825
        %4827 = vmatprep.subr.mxu0 0.0
        %v4828 = vand.u32 %v355, 4294901760
        %4829 = vmatpush1.msra.mxu0 %v4828
        %4830 = vmatprep.subr.mxu0 0.0
        %v4831 = vand.u32 %v356, 4294901760
        %4832 = vmatpush1.msra.mxu0 %v4831
        %4833 = vmatprep.subr.mxu0 0.0
        %v4834 = vand.u32 %v357, 4294901760
        %4835 = vmatpush1.msra.mxu0 %v4834
        %4836 = vmatprep.subr.mxu0 0.0
        %v4837 = vand.u32 %v358, 4294901760
        %4838 = vmatpush1.msra.mxu0 %v4837
        %4839 = vmatprep.subr.mxu0 0.0
        %v4840 = vand.u32 %v359, 4294901760
        %4841 = vmatpush1.msra.mxu0 %v4840
        %4842 = vmatprep.subr.mxu0 0.0
        %v4843 = vand.u32 %v360, 4294901760
        %4844 = vmatpush1.msra.mxu0 %v4843
        %4845 = vmatprep.subr.mxu0 0.0
        %v4846 = vand.u32 %v361, 4294901760
        %4847 = vmatpush1.msra.mxu0 %v4846
        %4848 = vmatprep.subr.mxu0 0.0
        %v4849 = vand.u32 %v362, 4294901760
        %4850 = vmatpush1.msra.mxu0 %v4849
        %4851 = vmatprep.subr.mxu0 0.0
        %v4852 = vand.u32 %v363, 4294901760
        %4853 = vmatpush1.msra.mxu0 %v4852
        %4854 = vmatprep.subr.mxu0 0.0
        %v4855 = vand.u32 %v364, 4294901760
        %4856 = vmatpush1.msra.mxu0 %v4855
        %4857 = vmatprep.subr.mxu0 0.0
        %v4858 = vand.u32 %v365, 4294901760
        %4859 = vmatpush1.msra.mxu0 %v4858
        %4860 = vmatprep.subr.mxu0 0.0
        %v4861 = vand.u32 %v366, 4294901760
        %4862 = vmatpush1.msra.mxu0 %v4861
        %4863 = vmatprep.subr.mxu0 0.0
        %v4864 = vand.u32 %v367, 4294901760
        %4865 = vmatpush1.msra.mxu0 %v4864
        %4866 = vmatprep.subr.mxu0 0.0
        %v4867 = vand.u32 %v368, 4294901760
        %4868 = vmatpush1.msra.mxu0 %v4867
        %4869 = vmatprep.subr.mxu0 0.0
        %v4870 = vand.u32 %v369, 4294901760
        %4871 = vmatpush1.msra.mxu0 %v4870
        %4872 = vmatprep.subr.mxu0 0.0
        %v4873 = vand.u32 %v370, 4294901760
        %4874 = vmatpush1.msra.mxu0 %v4873
        %4875 = vmatprep.subr.mxu0 0.0
        %v4876 = vand.u32 %v371, 4294901760
        %4877 = vmatpush1.msra.mxu0 %v4876
        %4878 = vmatprep.subr.mxu0 0.0
        %v4879 = vand.u32 %v372, 4294901760
        %4880 = vmatpush1.msra.mxu0 %v4879
        %4881 = vmatprep.subr.mxu0 0.0
        %v4882 = vand.u32 %v373, 4294901760
        %4883 = vmatpush1.msra.mxu0 %v4882
        %4884 = vmatprep.subr.mxu0 0.0
        %v4885 = vand.u32 %v374, 4294901760
        %4886 = vmatpush1.msra.mxu0 %v4885
        %4887 = vmatprep.subr.mxu0 0.0
        %v4888 = vand.u32 %v375, 4294901760
        %4889 = vmatpush1.msra.mxu0 %v4888
        %4890 = vmatprep.subr.mxu0 0.0
        %v4891 = vand.u32 %v376, 4294901760
        %4892 = vmatpush1.msra.mxu0 %v4891
        %4893 = vmatprep.subr.mxu0 0.0
        %v4894 = vand.u32 %v377, 4294901760
        %4895 = vmatpush1.msra.mxu0 %v4894
        %v4896 = vand.u32 %v3661, 4294901760
        %4897 = vmatprep.mubr.f32.mxu0 %v4896
        %v4898 = vand.u32 %v3660, 4294901760
        %4899 = vmatmul.mubr.f32.gmra.mrb[0].mxu0 %v4898
        %v4900 = vpop.f32.mrb[0].mxu0
        %v4901 = vadd.f32 %v4748, %v4900
        %v4902 = vpop.f32.mrb[0].mxu0
        %v4903 = vand.u32 %v3665, 4294901760
        %4904 = vmatprep.mubr.f32.mxu0 %v4903
        %v4905 = vand.u32 %v3664, 4294901760
        %4906 = vmatmul.mubr.f32.gmra.mrb[0].mxu0 %v4905
        %v4907 = vpop.f32.mrb[0].mxu0
        %v4908 = vadd.f32 %v4755, %v4907
        %v4909 = vpop.f32.mrb[0].mxu0
        %v4910 = vand.u32 %v3669, 4294901760
        %4911 = vmatprep.mubr.f32.mxu0 %v4910
        %v4912 = vand.u32 %v3668, 4294901760
        %4913 = vmatmul.mubr.f32.gmra.mrb[0].mxu0 %v4912
        %v4914 = vpop.f32.mrb[0].mxu0
        %v4915 = vadd.f32 %v4762, %v4914
        %v4916 = vpop.f32.mrb[0].mxu0
        %v4917 = vand.u32 %v3673, 4294901760
        %4918 = vmatprep.mubr.f32.mxu0 %v4917
        %v4919 = vand.u32 %v3672, 4294901760
        %4920 = vmatmul.mubr.f32.gmra.mrb[0].mxu0 %v4919
        %v4921 = vpop.f32.mrb[0].mxu0
        %v4922 = vadd.f32 %v4769, %v4921
        %v4923 = vpop.f32.mrb[0].mxu0
        %v4924 = vand.u32 %v3677, 4294901760
        %4925 = vmatprep.mubr.f32.mxu0 %v4924
        %v4926 = vand.u32 %v3676, 4294901760
        %4927 = vmatmul.mubr.f32.gmra.mrb[0].mxu0 %v4926
        %v4928 = vpop.f32.mrb[0].mxu0
        %v4929 = vadd.f32 %v4776, %v4928
        %v4930 = vpop.f32.mrb[0].mxu0
        %v4931 = vand.u32 %v3681, 4294901760
        %4932 = vmatprep.mubr.f32.mxu0 %v4931
        %v4933 = vand.u32 %v3680, 4294901760
        %4934 = vmatmul.mubr.f32.gmra.mrb[0].mxu0 %v4933
        %v4935 = vpop.f32.mrb[0].mxu0
        %v4936 = vadd.f32 %v4783, %v4935
        %v4937 = vpop.f32.mrb[0].mxu0
        %v4938 = vand.u32 %v3685, 4294901760
        %4939 = vmatprep.mubr.f32.mxu0 %v4938
        %v4940 = vand.u32 %v3684, 4294901760
        %4941 = vmatmul.mubr.f32.gmra.mrb[0].mxu0 %v4940
        %v4942 = vpop.f32.mrb[0].mxu0
        %v4943 = vadd.f32 %v4790, %v4942
        %v4944 = vpop.f32.mrb[0].mxu0
        %v4945 = vand.u32 %v3689, 4294901760
        %4946 = vmatprep.mubr.f32.mxu0 %v4945
        %v4947 = vand.u32 %v3688, 4294901760
        %4948 = vmatmul.mubr.f32.gmra.mrb[0].mxu0 %v4947
        %v4949 = vpop.f32.mrb[0].mxu0
        %v4950 = vadd.f32 %v4797, %v4949
        %v4951 = vpop.f32.mrb[0].mxu0
        %4952 = vdwg.mxu0
        %4953 = vmatprep.subr.mxu0 0.0
        %v4954 = vand.u32 %v378, 4294901760
        %4955 = vmatpush1.msra.mxu0 %v4954
        %4956 = vmatprep.subr.mxu0 0.0
        %v4957 = vand.u32 %v379, 4294901760
        %4958 = vmatpush1.msra.mxu0 %v4957
        %4959 = vmatprep.subr.mxu0 0.0
        %v4960 = vand.u32 %v380, 4294901760
        %4961 = vmatpush1.msra.mxu0 %v4960
        %4962 = vmatprep.subr.mxu0 0.0
        %v4963 = vand.u32 %v381, 4294901760
        %4964 = vmatpush1.msra.mxu0 %v4963
        %4965 = vmatprep.subr.mxu0 0.0
        %v4966 = vand.u32 %v382, 4294901760
        %4967 = vmatpush1.msra.mxu0 %v4966
        %4968 = vmatprep.subr.mxu0 0.0
        %v4969 = vand.u32 %v383, 4294901760
        %4970 = vmatpush1.msra.mxu0 %v4969
        %4971 = vmatprep.subr.mxu0 0.0
        %v4972 = vand.u32 %v384, 4294901760
        %4973 = vmatpush1.msra.mxu0 %v4972
        %4974 = vmatprep.subr.mxu0 0.0
        %v4975 = vand.u32 %v385, 4294901760
        %4976 = vmatpush1.msra.mxu0 %v4975
        %4977 = vmatprep.subr.mxu0 0.0
        %v4978 = vand.u32 %v386, 4294901760
        %4979 = vmatpush1.msra.mxu0 %v4978
        %4980 = vmatprep.subr.mxu0 0.0
        %v4981 = vand.u32 %v387, 4294901760
        %4982 = vmatpush1.msra.mxu0 %v4981
        %4983 = vmatprep.subr.mxu0 0.0
        %v4984 = vand.u32 %v388, 4294901760
        %4985 = vmatpush1.msra.mxu0 %v4984
        %4986 = vmatprep.subr.mxu0 0.0
        %v4987 = vand.u32 %v389, 4294901760
        %4988 = vmatpush1.msra.mxu0 %v4987
        %4989 = vmatprep.subr.mxu0 0.0
        %v4990 = vand.u32 %v390, 4294901760
        %4991 = vmatpush1.msra.mxu0 %v4990
        %4992 = vmatprep.subr.mxu0 0.0
        %v4993 = vand.u32 %v391, 4294901760
        %4994 = vmatpush1.msra.mxu0 %v4993
        %4995 = vmatprep.subr.mxu0 0.0
        %v4996 = vand.u32 %v392, 4294901760
        %4997 = vmatpush1.msra.mxu0 %v4996
        %4998 = vmatprep.subr.mxu0 0.0
        %v4999 = vand.u32 %v393, 4294901760
        %5000 = vmatpush1.msra.mxu0 %v4999
        %5001 = vmatprep.subr.mxu0 0.0
        %v5002 = vand.u32 %v394, 4294901760
        %5003 = vmatpush1.msra.mxu0 %v5002
        %5004 = vmatprep.subr.mxu0 0.0
        %v5005 = vand.u32 %v395, 4294901760
        %5006 = vmatpush1.msra.mxu0 %v5005
        %5007 = vmatprep.subr.mxu0 0.0
        %v5008 = vand.u32 %v396, 4294901760
        %5009 = vmatpush1.msra.mxu0 %v5008
        %5010 = vmatprep.subr.mxu0 0.0
        %v5011 = vand.u32 %v397, 4294901760
        %5012 = vmatpush1.msra.mxu0 %v5011
        %5013 = vmatprep.subr.mxu0 0.0
        %v5014 = vand.u32 %v398, 4294901760
        %5015 = vmatpush1.msra.mxu0 %v5014
        %5016 = vmatprep.subr.mxu0 0.0
        %v5017 = vand.u32 %v399, 4294901760
        %5018 = vmatpush1.msra.mxu0 %v5017
        %5019 = vmatprep.subr.mxu0 0.0
        %v5020 = vand.u32 %v400, 4294901760
        %5021 = vmatpush1.msra.mxu0 %v5020
        %5022 = vmatprep.subr.mxu0 0.0
        %v5023 = vand.u32 %v401, 4294901760
        %5024 = vmatpush1.msra.mxu0 %v5023
        %5025 = vmatprep.subr.mxu0 0.0
        %v5026 = vand.u32 %v402, 4294901760
        %5027 = vmatpush1.msra.mxu0 %v5026
        %5028 = vmatprep.subr.mxu0 0.0
        %v5029 = vand.u32 %v403, 4294901760
        %5030 = vmatpush1.msra.mxu0 %v5029
        %5031 = vmatprep.subr.mxu0 0.0
        %v5032 = vand.u32 %v404, 4294901760
        %5033 = vmatpush1.msra.mxu0 %v5032
        %5034 = vmatprep.subr.mxu0 0.0
        %v5035 = vand.u32 %v405, 4294901760
        %5036 = vmatpush1.msra.mxu0 %v5035
        %5037 = vmatprep.subr.mxu0 0.0
        %v5038 = vand.u32 %v406, 4294901760
        %5039 = vmatpush1.msra.mxu0 %v5038
        %5040 = vmatprep.subr.mxu0 0.0
        %v5041 = vand.u32 %v407, 4294901760
        %5042 = vmatpush1.msra.mxu0 %v5041
        %5043 = vmatprep.subr.mxu0 0.0
        %v5044 = vand.u32 %v408, 4294901760
        %5045 = vmatpush1.msra.mxu0 %v5044
        %5046 = vmatprep.subr.mxu0 0.0
        %v5047 = vand.u32 %v409, 4294901760
        %5048 = vmatpush1.msra.mxu0 %v5047
        %v5049 = vand.u32 %v3663, 4294901760
        %v5050 = vsub.f32 %v3663, %v5049
        %v5051 = vand.u32 %v5050, 4294901760
        %v5052 = vsub.f32 %v5050, %v5051
        %v5053 = vand.u32 %v5052, 4294901760
        %5054 = vmatprep.mubr.f32.mxu0 %v5053
        %v5055 = vand.u32 %v3662, 4294901760
        %v5056 = vsub.f32 %v3662, %v5055
        %v5057 = vand.u32 %v5056, 4294901760
        %v5058 = vsub.f32 %v5056, %v5057
        %v5059 = vand.u32 %v5058, 4294901760
        %5060 = vmatmul.mubr.f32.gmra.mrb[0].mxu0 %v5059
        %v5061 = vpop.f32.mrb[0].mxu0
        %v5062 = vadd.f32 %v4901, %v5061
        %v5063 = vpop.f32.mrb[0].mxu0
        %v5064 = vand.u32 %v3667, 4294901760
        %v5065 = vsub.f32 %v3667, %v5064
        %v5066 = vand.u32 %v5065, 4294901760
        %v5067 = vsub.f32 %v5065, %v5066
        %v5068 = vand.u32 %v5067, 4294901760
        %5069 = vmatprep.mubr.f32.mxu0 %v5068
        %v5070 = vand.u32 %v3666, 4294901760
        %v5071 = vsub.f32 %v3666, %v5070
        %v5072 = vand.u32 %v5071, 4294901760
        %v5073 = vsub.f32 %v5071, %v5072
        %v5074 = vand.u32 %v5073, 4294901760
        %5075 = vmatmul.mubr.f32.gmra.mrb[0].mxu0 %v5074
        %v5076 = vpop.f32.mrb[0].mxu0
        %v5077 = vadd.f32 %v4908, %v5076
        %v5078 = vpop.f32.mrb[0].mxu0
        %v5079 = vand.u32 %v3671, 4294901760
        %v5080 = vsub.f32 %v3671, %v5079
        %v5081 = vand.u32 %v5080, 4294901760
        %v5082 = vsub.f32 %v5080, %v5081
        %v5083 = vand.u32 %v5082, 4294901760
        %5084 = vmatprep.mubr.f32.mxu0 %v5083
        %v5085 = vand.u32 %v3670, 4294901760
        %v5086 = vsub.f32 %v3670, %v5085
        %v5087 = vand.u32 %v5086, 4294901760
        %v5088 = vsub.f32 %v5086, %v5087
        %v5089 = vand.u32 %v5088, 4294901760
        %5090 = vmatmul.mubr.f32.gmra.mrb[0].mxu0 %v5089
        %v5091 = vpop.f32.mrb[0].mxu0
        %v5092 = vadd.f32 %v4915, %v5091
        %v5093 = vpop.f32.mrb[0].mxu0
        %v5094 = vand.u32 %v3675, 4294901760
        %v5095 = vsub.f32 %v3675, %v5094
        %v5096 = vand.u32 %v5095, 4294901760
        %v5097 = vsub.f32 %v5095, %v5096
        %v5098 = vand.u32 %v5097, 4294901760
        %5099 = vmatprep.mubr.f32.mxu0 %v5098
        %v5100 = vand.u32 %v3674, 4294901760
        %v5101 = vsub.f32 %v3674, %v5100
        %v5102 = vand.u32 %v5101, 4294901760
        %v5103 = vsub.f32 %v5101, %v5102
        %v5104 = vand.u32 %v5103, 4294901760
        %5105 = vmatmul.mubr.f32.gmra.mrb[0].mxu0 %v5104
        %v5106 = vpop.f32.mrb[0].mxu0
        %v5107 = vadd.f32 %v4922, %v5106
        %v5108 = vpop.f32.mrb[0].mxu0
        %v5109 = vand.u32 %v3679, 4294901760
        %v5110 = vsub.f32 %v3679, %v5109
        %v5111 = vand.u32 %v5110, 4294901760
        %v5112 = vsub.f32 %v5110, %v5111
        %v5113 = vand.u32 %v5112, 4294901760
        %5114 = vmatprep.mubr.f32.mxu0 %v5113
        %v5115 = vand.u32 %v3678, 4294901760
        %v5116 = vsub.f32 %v3678, %v5115
        %v5117 = vand.u32 %v5116, 4294901760
        %v5118 = vsub.f32 %v5116, %v5117
        %v5119 = vand.u32 %v5118, 4294901760
        %5120 = vmatmul.mubr.f32.gmra.mrb[0].mxu0 %v5119
        %v5121 = vpop.f32.mrb[0].mxu0
        %v5122 = vadd.f32 %v4929, %v5121
        %v5123 = vpop.f32.mrb[0].mxu0
        %v5124 = vand.u32 %v3683, 4294901760
        %v5125 = vsub.f32 %v3683, %v5124
        %v5126 = vand.u32 %v5125, 4294901760
        %v5127 = vsub.f32 %v5125, %v5126
        %v5128 = vand.u32 %v5127, 4294901760
        %5129 = vmatprep.mubr.f32.mxu0 %v5128
        %v5130 = vand.u32 %v3682, 4294901760
        %v5131 = vsub.f32 %v3682, %v5130
        %v5132 = vand.u32 %v5131, 4294901760
        %v5133 = vsub.f32 %v5131, %v5132
        %v5134 = vand.u32 %v5133, 4294901760
        %5135 = vmatmul.mubr.f32.gmra.mrb[0].mxu0 %v5134
        %v5136 = vpop.f32.mrb[0].mxu0
        %v5137 = vadd.f32 %v4936, %v5136
        %v5138 = vpop.f32.mrb[0].mxu0
        %v5139 = vand.u32 %v3687, 4294901760
        %v5140 = vsub.f32 %v3687, %v5139
        %v5141 = vand.u32 %v5140, 4294901760
        %v5142 = vsub.f32 %v5140, %v5141
        %v5143 = vand.u32 %v5142, 4294901760
        %5144 = vmatprep.mubr.f32.mxu0 %v5143
        %v5145 = vand.u32 %v3686, 4294901760
        %v5146 = vsub.f32 %v3686, %v5145
        %v5147 = vand.u32 %v5146, 4294901760
        %v5148 = vsub.f32 %v5146, %v5147
        %v5149 = vand.u32 %v5148, 4294901760
        %5150 = vmatmul.mubr.f32.gmra.mrb[0].mxu0 %v5149
        %v5151 = vpop.f32.mrb[0].mxu0
        %v5152 = vadd.f32 %v4943, %v5151
        %v5153 = vpop.f32.mrb[0].mxu0
        %v5154 = vand.u32 %v3691, 4294901760
        %v5155 = vsub.f32 %v3691, %v5154
        %v5156 = vand.u32 %v5155, 4294901760
        %v5157 = vsub.f32 %v5155, %v5156
        %v5158 = vand.u32 %v5157, 4294901760
        %5159 = vmatprep.mubr.f32.mxu0 %v5158
        %v5160 = vand.u32 %v3690, 4294901760
        %v5161 = vsub.f32 %v3690, %v5160
        %v5162 = vand.u32 %v5161, 4294901760
        %v5163 = vsub.f32 %v5161, %v5162
        %v5164 = vand.u32 %v5163, 4294901760
        %5165 = vmatmul.mubr.f32.gmra.mrb[0].mxu0 %v5164
        %v5166 = vpop.f32.mrb[0].mxu0
        %v5167 = vadd.f32 %v4950, %v5166
        %v5168 = vpop.f32.mrb[0].mxu0
        %5169 = vdwg.mxu0
        %5170 = vmatprep.subr.mxu0 0.0
        %v5171 = vand.u32 %v378, 4294901760
        %v5172 = vsub.f32 %v378, %v5171
        %v5173 = vand.u32 %v5172, 4294901760
        %v5174 = vsub.f32 %v5172, %v5173
        %v5175 = vand.u32 %v5174, 4294901760
        %5176 = vmatpush1.msra.mxu0 %v5175
        %5177 = vmatprep.subr.mxu0 0.0
        %v5178 = vand.u32 %v379, 4294901760
        %v5179 = vsub.f32 %v379, %v5178
        %v5180 = vand.u32 %v5179, 4294901760
        %v5181 = vsub.f32 %v5179, %v5180
        %v5182 = vand.u32 %v5181, 4294901760
        %5183 = vmatpush1.msra.mxu0 %v5182
        %5184 = vmatprep.subr.mxu0 0.0
        %v5185 = vand.u32 %v380, 4294901760
        %v5186 = vsub.f32 %v380, %v5185
        %v5187 = vand.u32 %v5186, 4294901760
        %v5188 = vsub.f32 %v5186, %v5187
        %v5189 = vand.u32 %v5188, 4294901760
        %5190 = vmatpush1.msra.mxu0 %v5189
        %5191 = vmatprep.subr.mxu0 0.0
        %v5192 = vand.u32 %v381, 4294901760
        %v5193 = vsub.f32 %v381, %v5192
        %v5194 = vand.u32 %v5193, 4294901760
        %v5195 = vsub.f32 %v5193, %v5194
        %v5196 = vand.u32 %v5195, 4294901760
        %5197 = vmatpush1.msra.mxu0 %v5196
        %5198 = vmatprep.subr.mxu0 0.0
        %v5199 = vand.u32 %v382, 4294901760
        %v5200 = vsub.f32 %v382, %v5199
        %v5201 = vand.u32 %v5200, 4294901760
        %v5202 = vsub.f32 %v5200, %v5201
        %v5203 = vand.u32 %v5202, 4294901760
        %5204 = vmatpush1.msra.mxu0 %v5203
        %5205 = vmatprep.subr.mxu0 0.0
        %v5206 = vand.u32 %v383, 4294901760
        %v5207 = vsub.f32 %v383, %v5206
        %v5208 = vand.u32 %v5207, 4294901760
        %v5209 = vsub.f32 %v5207, %v5208
        %v5210 = vand.u32 %v5209, 4294901760
        %5211 = vmatpush1.msra.mxu0 %v5210
        %5212 = vmatprep.subr.mxu0 0.0
        %v5213 = vand.u32 %v384, 4294901760
        %v5214 = vsub.f32 %v384, %v5213
        %v5215 = vand.u32 %v5214, 4294901760
        %v5216 = vsub.f32 %v5214, %v5215
        %v5217 = vand.u32 %v5216, 4294901760
        %5218 = vmatpush1.msra.mxu0 %v5217
        %5219 = vmatprep.subr.mxu0 0.0
        %v5220 = vand.u32 %v385, 4294901760
        %v5221 = vsub.f32 %v385, %v5220
        %v5222 = vand.u32 %v5221, 4294901760
        %v5223 = vsub.f32 %v5221, %v5222
        %v5224 = vand.u32 %v5223, 4294901760
        %5225 = vmatpush1.msra.mxu0 %v5224
        %5226 = vmatprep.subr.mxu0 0.0
        %v5227 = vand.u32 %v386, 4294901760
        %v5228 = vsub.f32 %v386, %v5227
        %v5229 = vand.u32 %v5228, 4294901760
        %v5230 = vsub.f32 %v5228, %v5229
        %v5231 = vand.u32 %v5230, 4294901760
        %5232 = vmatpush1.msra.mxu0 %v5231
        %5233 = vmatprep.subr.mxu0 0.0
        %v5234 = vand.u32 %v387, 4294901760
        %v5235 = vsub.f32 %v387, %v5234
        %v5236 = vand.u32 %v5235, 4294901760
        %v5237 = vsub.f32 %v5235, %v5236
        %v5238 = vand.u32 %v5237, 4294901760
        %5239 = vmatpush1.msra.mxu0 %v5238
        %5240 = vmatprep.subr.mxu0 0.0
        %v5241 = vand.u32 %v388, 4294901760
        %v5242 = vsub.f32 %v388, %v5241
        %v5243 = vand.u32 %v5242, 4294901760
        %v5244 = vsub.f32 %v5242, %v5243
        %v5245 = vand.u32 %v5244, 4294901760
        %5246 = vmatpush1.msra.mxu0 %v5245
        %5247 = vmatprep.subr.mxu0 0.0
        %v5248 = vand.u32 %v389, 4294901760
        %v5249 = vsub.f32 %v389, %v5248
        %v5250 = vand.u32 %v5249, 4294901760
        %v5251 = vsub.f32 %v5249, %v5250
        %v5252 = vand.u32 %v5251, 4294901760
        %5253 = vmatpush1.msra.mxu0 %v5252
        %5254 = vmatprep.subr.mxu0 0.0
        %v5255 = vand.u32 %v390, 4294901760
        %v5256 = vsub.f32 %v390, %v5255
        %v5257 = vand.u32 %v5256, 4294901760
        %v5258 = vsub.f32 %v5256, %v5257
        %v5259 = vand.u32 %v5258, 4294901760
        %5260 = vmatpush1.msra.mxu0 %v5259
        %5261 = vmatprep.subr.mxu0 0.0
        %v5262 = vand.u32 %v391, 4294901760
        %v5263 = vsub.f32 %v391, %v5262
        %v5264 = vand.u32 %v5263, 4294901760
        %v5265 = vsub.f32 %v5263, %v5264
        %v5266 = vand.u32 %v5265, 4294901760
        %5267 = vmatpush1.msra.mxu0 %v5266
        %5268 = vmatprep.subr.mxu0 0.0
        %v5269 = vand.u32 %v392, 4294901760
        %v5270 = vsub.f32 %v392, %v5269
        %v5271 = vand.u32 %v5270, 4294901760
        %v5272 = vsub.f32 %v5270, %v5271
        %v5273 = vand.u32 %v5272, 4294901760
        %5274 = vmatpush1.msra.mxu0 %v5273
        %5275 = vmatprep.subr.mxu0 0.0
        %v5276 = vand.u32 %v393, 4294901760
        %v5277 = vsub.f32 %v393, %v5276
        %v5278 = vand.u32 %v5277, 4294901760
        %v5279 = vsub.f32 %v5277, %v5278
        %v5280 = vand.u32 %v5279, 4294901760
        %5281 = vmatpush1.msra.mxu0 %v5280
        %5282 = vmatprep.subr.mxu0 0.0
        %v5283 = vand.u32 %v394, 4294901760
        %v5284 = vsub.f32 %v394, %v5283
        %v5285 = vand.u32 %v5284, 4294901760
        %v5286 = vsub.f32 %v5284, %v5285
        %v5287 = vand.u32 %v5286, 4294901760
        %5288 = vmatpush1.msra.mxu0 %v5287
        %5289 = vmatprep.subr.mxu0 0.0
        %v5290 = vand.u32 %v395, 4294901760
        %v5291 = vsub.f32 %v395, %v5290
        %v5292 = vand.u32 %v5291, 4294901760
        %v5293 = vsub.f32 %v5291, %v5292
        %v5294 = vand.u32 %v5293, 4294901760
        %5295 = vmatpush1.msra.mxu0 %v5294
        %5296 = vmatprep.subr.mxu0 0.0
        %v5297 = vand.u32 %v396, 4294901760
        %v5298 = vsub.f32 %v396, %v5297
        %v5299 = vand.u32 %v5298, 4294901760
        %v5300 = vsub.f32 %v5298, %v5299
        %v5301 = vand.u32 %v5300, 4294901760
        %5302 = vmatpush1.msra.mxu0 %v5301
        %5303 = vmatprep.subr.mxu0 0.0
        %v5304 = vand.u32 %v397, 4294901760
        %v5305 = vsub.f32 %v397, %v5304
        %v5306 = vand.u32 %v5305, 4294901760
        %v5307 = vsub.f32 %v5305, %v5306
        %v5308 = vand.u32 %v5307, 4294901760
        %5309 = vmatpush1.msra.mxu0 %v5308
        %5310 = vmatprep.subr.mxu0 0.0
        %v5311 = vand.u32 %v398, 4294901760
        %v5312 = vsub.f32 %v398, %v5311
        %v5313 = vand.u32 %v5312, 4294901760
        %v5314 = vsub.f32 %v5312, %v5313
        %v5315 = vand.u32 %v5314, 4294901760
        %5316 = vmatpush1.msra.mxu0 %v5315
        %5317 = vmatprep.subr.mxu0 0.0
        %v5318 = vand.u32 %v399, 4294901760
        %v5319 = vsub.f32 %v399, %v5318
        %v5320 = vand.u32 %v5319, 4294901760
        %v5321 = vsub.f32 %v5319, %v5320
        %v5322 = vand.u32 %v5321, 4294901760
        %5323 = vmatpush1.msra.mxu0 %v5322
        %5324 = vmatprep.subr.mxu0 0.0
        %v5325 = vand.u32 %v400, 4294901760
        %v5326 = vsub.f32 %v400, %v5325
        %v5327 = vand.u32 %v5326, 4294901760
        %v5328 = vsub.f32 %v5326, %v5327
        %v5329 = vand.u32 %v5328, 4294901760
        %5330 = vmatpush1.msra.mxu0 %v5329
        %5331 = vmatprep.subr.mxu0 0.0
        %v5332 = vand.u32 %v401, 4294901760
        %v5333 = vsub.f32 %v401, %v5332
        %v5334 = vand.u32 %v5333, 4294901760
        %v5335 = vsub.f32 %v5333, %v5334
        %v5336 = vand.u32 %v5335, 4294901760
        %5337 = vmatpush1.msra.mxu0 %v5336
        %5338 = vmatprep.subr.mxu0 0.0
        %v5339 = vand.u32 %v402, 4294901760
        %v5340 = vsub.f32 %v402, %v5339
        %v5341 = vand.u32 %v5340, 4294901760
        %v5342 = vsub.f32 %v5340, %v5341
        %v5343 = vand.u32 %v5342, 4294901760
        %5344 = vmatpush1.msra.mxu0 %v5343
        %5345 = vmatprep.subr.mxu0 0.0
        %v5346 = vand.u32 %v403, 4294901760
        %v5347 = vsub.f32 %v403, %v5346
        %v5348 = vand.u32 %v5347, 4294901760
        %v5349 = vsub.f32 %v5347, %v5348
        %v5350 = vand.u32 %v5349, 4294901760
        %5351 = vmatpush1.msra.mxu0 %v5350
        %5352 = vmatprep.subr.mxu0 0.0
        %v5353 = vand.u32 %v404, 4294901760
        %v5354 = vsub.f32 %v404, %v5353
        %v5355 = vand.u32 %v5354, 4294901760
        %v5356 = vsub.f32 %v5354, %v5355
        %v5357 = vand.u32 %v5356, 4294901760
        %5358 = vmatpush1.msra.mxu0 %v5357
        %5359 = vmatprep.subr.mxu0 0.0
        %v5360 = vand.u32 %v405, 4294901760
        %v5361 = vsub.f32 %v405, %v5360
        %v5362 = vand.u32 %v5361, 4294901760
        %v5363 = vsub.f32 %v5361, %v5362
        %v5364 = vand.u32 %v5363, 4294901760
        %5365 = vmatpush1.msra.mxu0 %v5364
        %5366 = vmatprep.subr.mxu0 0.0
        %v5367 = vand.u32 %v406, 4294901760
        %v5368 = vsub.f32 %v406, %v5367
        %v5369 = vand.u32 %v5368, 4294901760
        %v5370 = vsub.f32 %v5368, %v5369
        %v5371 = vand.u32 %v5370, 4294901760
        %5372 = vmatpush1.msra.mxu0 %v5371
        %5373 = vmatprep.subr.mxu0 0.0
        %v5374 = vand.u32 %v407, 4294901760
        %v5375 = vsub.f32 %v407, %v5374
        %v5376 = vand.u32 %v5375, 4294901760
        %v5377 = vsub.f32 %v5375, %v5376
        %v5378 = vand.u32 %v5377, 4294901760
        %5379 = vmatpush1.msra.mxu0 %v5378
        %5380 = vmatprep.subr.mxu0 0.0
        %v5381 = vand.u32 %v408, 4294901760
        %v5382 = vsub.f32 %v408, %v5381
        %v5383 = vand.u32 %v5382, 4294901760
        %v5384 = vsub.f32 %v5382, %v5383
        %v5385 = vand.u32 %v5384, 4294901760
        %5386 = vmatpush1.msra.mxu0 %v5385
        %5387 = vmatprep.subr.mxu0 0.0
        %v5388 = vand.u32 %v409, 4294901760
        %v5389 = vsub.f32 %v409, %v5388
        %v5390 = vand.u32 %v5389, 4294901760
        %v5391 = vsub.f32 %v5389, %v5390
        %v5392 = vand.u32 %v5391, 4294901760
        %5393 = vmatpush1.msra.mxu0 %v5392
        %v5394 = vand.u32 %v3663, 4294901760
        %5395 = vmatprep.mubr.f32.mxu0 %v5394
        %v5396 = vand.u32 %v3662, 4294901760
        %5397 = vmatmul.mubr.f32.gmra.mrb[0].mxu0 %v5396
        %v5398 = vpop.f32.mrb[0].mxu0
        %v5399 = vadd.f32 %v5062, %v5398
        %v5400 = vpop.f32.mrb[0].mxu0
        %v5401 = vand.u32 %v3667, 4294901760
        %5402 = vmatprep.mubr.f32.mxu0 %v5401
        %v5403 = vand.u32 %v3666, 4294901760
        %5404 = vmatmul.mubr.f32.gmra.mrb[0].mxu0 %v5403
        %v5405 = vpop.f32.mrb[0].mxu0
        %v5406 = vadd.f32 %v5077, %v5405
        %v5407 = vpop.f32.mrb[0].mxu0
        %v5408 = vand.u32 %v3671, 4294901760
        %5409 = vmatprep.mubr.f32.mxu0 %v5408
        %v5410 = vand.u32 %v3670, 4294901760
        %5411 = vmatmul.mubr.f32.gmra.mrb[0].mxu0 %v5410
        %v5412 = vpop.f32.mrb[0].mxu0
        %v5413 = vadd.f32 %v5092, %v5412
        %v5414 = vpop.f32.mrb[0].mxu0
        %v5415 = vand.u32 %v3675, 4294901760
        %5416 = vmatprep.mubr.f32.mxu0 %v5415
        %v5417 = vand.u32 %v3674, 4294901760
        %5418 = vmatmul.mubr.f32.gmra.mrb[0].mxu0 %v5417
        %v5419 = vpop.f32.mrb[0].mxu0
        %v5420 = vadd.f32 %v5107, %v5419
        %v5421 = vpop.f32.mrb[0].mxu0
        %v5422 = vand.u32 %v3679, 4294901760
        %5423 = vmatprep.mubr.f32.mxu0 %v5422
        %v5424 = vand.u32 %v3678, 4294901760
        %5425 = vmatmul.mubr.f32.gmra.mrb[0].mxu0 %v5424
        %v5426 = vpop.f32.mrb[0].mxu0
        %v5427 = vadd.f32 %v5122, %v5426
        %v5428 = vpop.f32.mrb[0].mxu0
        %v5429 = vand.u32 %v3683, 4294901760
        %5430 = vmatprep.mubr.f32.mxu0 %v5429
        %v5431 = vand.u32 %v3682, 4294901760
        %5432 = vmatmul.mubr.f32.gmra.mrb[0].mxu0 %v5431
        %v5433 = vpop.f32.mrb[0].mxu0
        %v5434 = vadd.f32 %v5137, %v5433
        %v5435 = vpop.f32.mrb[0].mxu0
        %v5436 = vand.u32 %v3687, 4294901760
        %5437 = vmatprep.mubr.f32.mxu0 %v5436
        %v5438 = vand.u32 %v3686, 4294901760
        %5439 = vmatmul.mubr.f32.gmra.mrb[0].mxu0 %v5438
        %v5440 = vpop.f32.mrb[0].mxu0
        %v5441 = vadd.f32 %v5152, %v5440
        %v5442 = vpop.f32.mrb[0].mxu0
        %v5443 = vand.u32 %v3691, 4294901760
        %5444 = vmatprep.mubr.f32.mxu0 %v5443
        %v5445 = vand.u32 %v3690, 4294901760
        %5446 = vmatmul.mubr.f32.gmra.mrb[0].mxu0 %v5445
        %v5447 = vpop.f32.mrb[0].mxu0
        %v5448 = vadd.f32 %v5167, %v5447
        %v5449 = vpop.f32.mrb[0].mxu0
        %5450 = vdwg.mxu0
        %5451 = vmatprep.subr.mxu0 0.0
        %v5452 = vand.u32 %v378, 4294901760
        %v5453 = vsub.f32 %v378, %v5452
        %5454 = vmatpush1.msra.mxu0 %v5453
        %5455 = vmatprep.subr.mxu0 0.0
        %v5456 = vand.u32 %v379, 4294901760
        %v5457 = vsub.f32 %v379, %v5456
        %5458 = vmatpush1.msra.mxu0 %v5457
        %5459 = vmatprep.subr.mxu0 0.0
        %v5460 = vand.u32 %v380, 4294901760
        %v5461 = vsub.f32 %v380, %v5460
        %5462 = vmatpush1.msra.mxu0 %v5461
        %5463 = vmatprep.subr.mxu0 0.0
        %v5464 = vand.u32 %v381, 4294901760
        %v5465 = vsub.f32 %v381, %v5464
        %5466 = vmatpush1.msra.mxu0 %v5465
        %5467 = vmatprep.subr.mxu0 0.0
        %v5468 = vand.u32 %v382, 4294901760
        %v5469 = vsub.f32 %v382, %v5468
        %5470 = vmatpush1.msra.mxu0 %v5469
        %5471 = vmatprep.subr.mxu0 0.0
        %v5472 = vand.u32 %v383, 4294901760
        %v5473 = vsub.f32 %v383, %v5472
        %5474 = vmatpush1.msra.mxu0 %v5473
        %5475 = vmatprep.subr.mxu0 0.0
        %v5476 = vand.u32 %v384, 4294901760
        %v5477 = vsub.f32 %v384, %v5476
        %5478 = vmatpush1.msra.mxu0 %v5477
        %5479 = vmatprep.subr.mxu0 0.0
        %v5480 = vand.u32 %v385, 4294901760
        %v5481 = vsub.f32 %v385, %v5480
        %5482 = vmatpush1.msra.mxu0 %v5481
        %5483 = vmatprep.subr.mxu0 0.0
        %v5484 = vand.u32 %v386, 4294901760
        %v5485 = vsub.f32 %v386, %v5484
        %5486 = vmatpush1.msra.mxu0 %v5485
        %5487 = vmatprep.subr.mxu0 0.0
        %v5488 = vand.u32 %v387, 4294901760
        %v5489 = vsub.f32 %v387, %v5488
        %5490 = vmatpush1.msra.mxu0 %v5489
        %5491 = vmatprep.subr.mxu0 0.0
        %v5492 = vand.u32 %v388, 4294901760
        %v5493 = vsub.f32 %v388, %v5492
        %5494 = vmatpush1.msra.mxu0 %v5493
        %5495 = vmatprep.subr.mxu0 0.0
        %v5496 = vand.u32 %v389, 4294901760
        %v5497 = vsub.f32 %v389, %v5496
        %5498 = vmatpush1.msra.mxu0 %v5497
        %5499 = vmatprep.subr.mxu0 0.0
        %v5500 = vand.u32 %v390, 4294901760
        %v5501 = vsub.f32 %v390, %v5500
        %5502 = vmatpush1.msra.mxu0 %v5501
        %5503 = vmatprep.subr.mxu0 0.0
        %v5504 = vand.u32 %v391, 4294901760
        %v5505 = vsub.f32 %v391, %v5504
        %5506 = vmatpush1.msra.mxu0 %v5505
        %5507 = vmatprep.subr.mxu0 0.0
        %v5508 = vand.u32 %v392, 4294901760
        %v5509 = vsub.f32 %v392, %v5508
        %5510 = vmatpush1.msra.mxu0 %v5509
        %5511 = vmatprep.subr.mxu0 0.0
        %v5512 = vand.u32 %v393, 4294901760
        %v5513 = vsub.f32 %v393, %v5512
        %5514 = vmatpush1.msra.mxu0 %v5513
        %5515 = vmatprep.subr.mxu0 0.0
        %v5516 = vand.u32 %v394, 4294901760
        %v5517 = vsub.f32 %v394, %v5516
        %5518 = vmatpush1.msra.mxu0 %v5517
        %5519 = vmatprep.subr.mxu0 0.0
        %v5520 = vand.u32 %v395, 4294901760
        %v5521 = vsub.f32 %v395, %v5520
        %5522 = vmatpush1.msra.mxu0 %v5521
        %5523 = vmatprep.subr.mxu0 0.0
        %v5524 = vand.u32 %v396, 4294901760
        %v5525 = vsub.f32 %v396, %v5524
        %5526 = vmatpush1.msra.mxu0 %v5525
        %5527 = vmatprep.subr.mxu0 0.0
        %v5528 = vand.u32 %v397, 4294901760
        %v5529 = vsub.f32 %v397, %v5528
        %5530 = vmatpush1.msra.mxu0 %v5529
        %5531 = vmatprep.subr.mxu0 0.0
        %v5532 = vand.u32 %v398, 4294901760
        %v5533 = vsub.f32 %v398, %v5532
        %5534 = vmatpush1.msra.mxu0 %v5533
        %5535 = vmatprep.subr.mxu0 0.0
        %v5536 = vand.u32 %v399, 4294901760
        %v5537 = vsub.f32 %v399, %v5536
        %5538 = vmatpush1.msra.mxu0 %v5537
        %5539 = vmatprep.subr.mxu0 0.0
        %v5540 = vand.u32 %v400, 4294901760
        %v5541 = vsub.f32 %v400, %v5540
        %5542 = vmatpush1.msra.mxu0 %v5541
        %5543 = vmatprep.subr.mxu0 0.0
        %v5544 = vand.u32 %v401, 4294901760
        %v5545 = vsub.f32 %v401, %v5544
        %5546 = vmatpush1.msra.mxu0 %v5545
        %5547 = vmatprep.subr.mxu0 0.0
        %v5548 = vand.u32 %v402, 4294901760
        %v5549 = vsub.f32 %v402, %v5548
        %5550 = vmatpush1.msra.mxu0 %v5549
        %5551 = vmatprep.subr.mxu0 0.0
        %v5552 = vand.u32 %v403, 4294901760
        %v5553 = vsub.f32 %v403, %v5552
        %5554 = vmatpush1.msra.mxu0 %v5553
        %5555 = vmatprep.subr.mxu0 0.0
        %v5556 = vand.u32 %v404, 4294901760
        %v5557 = vsub.f32 %v404, %v5556
        %5558 = vmatpush1.msra.mxu0 %v5557
        %5559 = vmatprep.subr.mxu0 0.0
        %v5560 = vand.u32 %v405, 4294901760
        %v5561 = vsub.f32 %v405, %v5560
        %5562 = vmatpush1.msra.mxu0 %v5561
        %5563 = vmatprep.subr.mxu0 0.0
        %v5564 = vand.u32 %v406, 4294901760
        %v5565 = vsub.f32 %v406, %v5564
        %5566 = vmatpush1.msra.mxu0 %v5565
        %5567 = vmatprep.subr.mxu0 0.0
        %v5568 = vand.u32 %v407, 4294901760
        %v5569 = vsub.f32 %v407, %v5568
        %5570 = vmatpush1.msra.mxu0 %v5569
        %5571 = vmatprep.subr.mxu0 0.0
        %v5572 = vand.u32 %v408, 4294901760
        %v5573 = vsub.f32 %v408, %v5572
        %5574 = vmatpush1.msra.mxu0 %v5573
        %5575 = vmatprep.subr.mxu0 0.0
        %v5576 = vand.u32 %v409, 4294901760
        %v5577 = vsub.f32 %v409, %v5576
        %5578 = vmatpush1.msra.mxu0 %v5577
        %v5579 = vand.u32 %v3663, 4294901760
        %v5580 = vsub.f32 %v3663, %v5579
        %5581 = vmatprep.mubr.f32.mxu0 %v5580
        %v5582 = vand.u32 %v3662, 4294901760
        %v5583 = vsub.f32 %v3662, %v5582
        %5584 = vmatmul.mubr.f32.gmra.mrb[0].mxu0 %v5583
        %v5585 = vpop.f32.mrb[0].mxu0
        %v5586 = vadd.f32 %v5399, %v5585
        %v5587 = vpop.f32.mrb[0].mxu0
        %v5588 = vand.u32 %v3667, 4294901760
        %v5589 = vsub.f32 %v3667, %v5588
        %5590 = vmatprep.mubr.f32.mxu0 %v5589
        %v5591 = vand.u32 %v3666, 4294901760
        %v5592 = vsub.f32 %v3666, %v5591
        %5593 = vmatmul.mubr.f32.gmra.mrb[0].mxu0 %v5592
        %v5594 = vpop.f32.mrb[0].mxu0
        %v5595 = vadd.f32 %v5406, %v5594
        %v5596 = vpop.f32.mrb[0].mxu0
        %v5597 = vand.u32 %v3671, 4294901760
        %v5598 = vsub.f32 %v3671, %v5597
        %5599 = vmatprep.mubr.f32.mxu0 %v5598
        %v5600 = vand.u32 %v3670, 4294901760
        %v5601 = vsub.f32 %v3670, %v5600
        %5602 = vmatmul.mubr.f32.gmra.mrb[0].mxu0 %v5601
        %v5603 = vpop.f32.mrb[0].mxu0
        %v5604 = vadd.f32 %v5413, %v5603
        %v5605 = vpop.f32.mrb[0].mxu0
        %v5606 = vand.u32 %v3675, 4294901760
        %v5607 = vsub.f32 %v3675, %v5606
        %5608 = vmatprep.mubr.f32.mxu0 %v5607
        %v5609 = vand.u32 %v3674, 4294901760
        %v5610 = vsub.f32 %v3674, %v5609
        %5611 = vmatmul.mubr.f32.gmra.mrb[0].mxu0 %v5610
        %v5612 = vpop.f32.mrb[0].mxu0
        %v5613 = vadd.f32 %v5420, %v5612
        %v5614 = vpop.f32.mrb[0].mxu0
        %v5615 = vand.u32 %v3679, 4294901760
        %v5616 = vsub.f32 %v3679, %v5615
        %5617 = vmatprep.mubr.f32.mxu0 %v5616
        %v5618 = vand.u32 %v3678, 4294901760
        %v5619 = vsub.f32 %v3678, %v5618
        %5620 = vmatmul.mubr.f32.gmra.mrb[0].mxu0 %v5619
        %v5621 = vpop.f32.mrb[0].mxu0
        %v5622 = vadd.f32 %v5427, %v5621
        %v5623 = vpop.f32.mrb[0].mxu0
        %v5624 = vand.u32 %v3683, 4294901760
        %v5625 = vsub.f32 %v3683, %v5624
        %5626 = vmatprep.mubr.f32.mxu0 %v5625
        %v5627 = vand.u32 %v3682, 4294901760
        %v5628 = vsub.f32 %v3682, %v5627
        %5629 = vmatmul.mubr.f32.gmra.mrb[0].mxu0 %v5628
        %v5630 = vpop.f32.mrb[0].mxu0
        %v5631 = vadd.f32 %v5434, %v5630
        %v5632 = vpop.f32.mrb[0].mxu0
        %v5633 = vand.u32 %v3687, 4294901760
        %v5634 = vsub.f32 %v3687, %v5633
        %5635 = vmatprep.mubr.f32.mxu0 %v5634
        %v5636 = vand.u32 %v3686, 4294901760
        %v5637 = vsub.f32 %v3686, %v5636
        %5638 = vmatmul.mubr.f32.gmra.mrb[0].mxu0 %v5637
        %v5639 = vpop.f32.mrb[0].mxu0
        %v5640 = vadd.f32 %v5441, %v5639
        %v5641 = vpop.f32.mrb[0].mxu0
        %v5642 = vand.u32 %v3691, 4294901760
        %v5643 = vsub.f32 %v3691, %v5642
        %5644 = vmatprep.mubr.f32.mxu0 %v5643
        %v5645 = vand.u32 %v3690, 4294901760
        %v5646 = vsub.f32 %v3690, %v5645
        %5647 = vmatmul.mubr.f32.gmra.mrb[0].mxu0 %v5646
        %v5648 = vpop.f32.mrb[0].mxu0
        %v5649 = vadd.f32 %v5448, %v5648
        %v5650 = vpop.f32.mrb[0].mxu0
        %5651 = vdwg.mxu0
        %5652 = vmatprep.subr.mxu0 0.0
        %v5653 = vand.u32 %v378, 4294901760
        %5654 = vmatpush1.msra.mxu0 %v5653
        %5655 = vmatprep.subr.mxu0 0.0
        %v5656 = vand.u32 %v379, 4294901760
        %5657 = vmatpush1.msra.mxu0 %v5656
        %5658 = vmatprep.subr.mxu0 0.0
        %v5659 = vand.u32 %v380, 4294901760
        %5660 = vmatpush1.msra.mxu0 %v5659
        %5661 = vmatprep.subr.mxu0 0.0
        %v5662 = vand.u32 %v381, 4294901760
        %5663 = vmatpush1.msra.mxu0 %v5662
        %5664 = vmatprep.subr.mxu0 0.0
        %v5665 = vand.u32 %v382, 4294901760
        %5666 = vmatpush1.msra.mxu0 %v5665
        %5667 = vmatprep.subr.mxu0 0.0
        %v5668 = vand.u32 %v383, 4294901760
        %5669 = vmatpush1.msra.mxu0 %v5668
        %5670 = vmatprep.subr.mxu0 0.0
        %v5671 = vand.u32 %v384, 4294901760
        %5672 = vmatpush1.msra.mxu0 %v5671
        %5673 = vmatprep.subr.mxu0 0.0
        %v5674 = vand.u32 %v385, 4294901760
        %5675 = vmatpush1.msra.mxu0 %v5674
        %5676 = vmatprep.subr.mxu0 0.0
        %v5677 = vand.u32 %v386, 4294901760
        %5678 = vmatpush1.msra.mxu0 %v5677
        %5679 = vmatprep.subr.mxu0 0.0
        %v5680 = vand.u32 %v387, 4294901760
        %5681 = vmatpush1.msra.mxu0 %v5680
        %5682 = vmatprep.subr.mxu0 0.0
        %v5683 = vand.u32 %v388, 4294901760
        %5684 = vmatpush1.msra.mxu0 %v5683
        %5685 = vmatprep.subr.mxu0 0.0
        %v5686 = vand.u32 %v389, 4294901760
        %5687 = vmatpush1.msra.mxu0 %v5686
        %5688 = vmatprep.subr.mxu0 0.0
        %v5689 = vand.u32 %v390, 4294901760
        %5690 = vmatpush1.msra.mxu0 %v5689
        %5691 = vmatprep.subr.mxu0 0.0
        %v5692 = vand.u32 %v391, 4294901760
        %5693 = vmatpush1.msra.mxu0 %v5692
        %5694 = vmatprep.subr.mxu0 0.0
        %v5695 = vand.u32 %v392, 4294901760
        %5696 = vmatpush1.msra.mxu0 %v5695
        %5697 = vmatprep.subr.mxu0 0.0
        %v5698 = vand.u32 %v393, 4294901760
        %5699 = vmatpush1.msra.mxu0 %v5698
        %5700 = vmatprep.subr.mxu0 0.0
        %v5701 = vand.u32 %v394, 4294901760
        %5702 = vmatpush1.msra.mxu0 %v5701
        %5703 = vmatprep.subr.mxu0 0.0
        %v5704 = vand.u32 %v395, 4294901760
        %5705 = vmatpush1.msra.mxu0 %v5704
        %5706 = vmatprep.subr.mxu0 0.0
        %v5707 = vand.u32 %v396, 4294901760
        %5708 = vmatpush1.msra.mxu0 %v5707
        %5709 = vmatprep.subr.mxu0 0.0
        %v5710 = vand.u32 %v397, 4294901760
        %5711 = vmatpush1.msra.mxu0 %v5710
        %5712 = vmatprep.subr.mxu0 0.0
        %v5713 = vand.u32 %v398, 4294901760
        %5714 = vmatpush1.msra.mxu0 %v5713
        %5715 = vmatprep.subr.mxu0 0.0
        %v5716 = vand.u32 %v399, 4294901760
        %5717 = vmatpush1.msra.mxu0 %v5716
        %5718 = vmatprep.subr.mxu0 0.0
        %v5719 = vand.u32 %v400, 4294901760
        %5720 = vmatpush1.msra.mxu0 %v5719
        %5721 = vmatprep.subr.mxu0 0.0
        %v5722 = vand.u32 %v401, 4294901760
        %5723 = vmatpush1.msra.mxu0 %v5722
        %5724 = vmatprep.subr.mxu0 0.0
        %v5725 = vand.u32 %v402, 4294901760
        %5726 = vmatpush1.msra.mxu0 %v5725
        %5727 = vmatprep.subr.mxu0 0.0
        %v5728 = vand.u32 %v403, 4294901760
        %5729 = vmatpush1.msra.mxu0 %v5728
        %5730 = vmatprep.subr.mxu0 0.0
        %v5731 = vand.u32 %v404, 4294901760
        %5732 = vmatpush1.msra.mxu0 %v5731
        %5733 = vmatprep.subr.mxu0 0.0
        %v5734 = vand.u32 %v405, 4294901760
        %5735 = vmatpush1.msra.mxu0 %v5734
        %5736 = vmatprep.subr.mxu0 0.0
        %v5737 = vand.u32 %v406, 4294901760
        %5738 = vmatpush1.msra.mxu0 %v5737
        %5739 = vmatprep.subr.mxu0 0.0
        %v5740 = vand.u32 %v407, 4294901760
        %5741 = vmatpush1.msra.mxu0 %v5740
        %5742 = vmatprep.subr.mxu0 0.0
        %v5743 = vand.u32 %v408, 4294901760
        %5744 = vmatpush1.msra.mxu0 %v5743
        %5745 = vmatprep.subr.mxu0 0.0
        %v5746 = vand.u32 %v409, 4294901760
        %5747 = vmatpush1.msra.mxu0 %v5746
        %v5748 = vand.u32 %v3663, 4294901760
        %v5749 = vsub.f32 %v3663, %v5748
        %v5750 = vand.u32 %v5749, 4294901760
        %5751 = vmatprep.mubr.f32.mxu0 %v5750
        %v5752 = vand.u32 %v3662, 4294901760
        %v5753 = vsub.f32 %v3662, %v5752
        %v5754 = vand.u32 %v5753, 4294901760
        %5755 = vmatmul.mubr.f32.gmra.mrb[0].mxu0 %v5754
        %v5756 = vpop.f32.mrb[0].mxu0
        %v5757 = vadd.f32 %v5586, %v5756
        %v5758 = vpop.f32.mrb[0].mxu0
        %v5759 = vand.u32 %v3667, 4294901760
        %v5760 = vsub.f32 %v3667, %v5759
        %v5761 = vand.u32 %v5760, 4294901760
        %5762 = vmatprep.mubr.f32.mxu0 %v5761
        %v5763 = vand.u32 %v3666, 4294901760
        %v5764 = vsub.f32 %v3666, %v5763
        %v5765 = vand.u32 %v5764, 4294901760
        %5766 = vmatmul.mubr.f32.gmra.mrb[0].mxu0 %v5765
        %v5767 = vpop.f32.mrb[0].mxu0
        %v5768 = vadd.f32 %v5595, %v5767
        %v5769 = vpop.f32.mrb[0].mxu0
        %v5770 = vand.u32 %v3671, 4294901760
        %v5771 = vsub.f32 %v3671, %v5770
        %v5772 = vand.u32 %v5771, 4294901760
        %5773 = vmatprep.mubr.f32.mxu0 %v5772
        %v5774 = vand.u32 %v3670, 4294901760
        %v5775 = vsub.f32 %v3670, %v5774
        %v5776 = vand.u32 %v5775, 4294901760
        %5777 = vmatmul.mubr.f32.gmra.mrb[0].mxu0 %v5776
        %v5778 = vpop.f32.mrb[0].mxu0
        %v5779 = vadd.f32 %v5604, %v5778
        %v5780 = vpop.f32.mrb[0].mxu0
        %v5781 = vand.u32 %v3675, 4294901760
        %v5782 = vsub.f32 %v3675, %v5781
        %v5783 = vand.u32 %v5782, 4294901760
        %5784 = vmatprep.mubr.f32.mxu0 %v5783
        %v5785 = vand.u32 %v3674, 4294901760
        %v5786 = vsub.f32 %v3674, %v5785
        %v5787 = vand.u32 %v5786, 4294901760
        %5788 = vmatmul.mubr.f32.gmra.mrb[0].mxu0 %v5787
        %v5789 = vpop.f32.mrb[0].mxu0
        %v5790 = vadd.f32 %v5613, %v5789
        %v5791 = vpop.f32.mrb[0].mxu0
        %v5792 = vand.u32 %v3679, 4294901760
        %v5793 = vsub.f32 %v3679, %v5792
        %v5794 = vand.u32 %v5793, 4294901760
        %5795 = vmatprep.mubr.f32.mxu0 %v5794
        %v5796 = vand.u32 %v3678, 4294901760
        %v5797 = vsub.f32 %v3678, %v5796
        %v5798 = vand.u32 %v5797, 4294901760
        %5799 = vmatmul.mubr.f32.gmra.mrb[0].mxu0 %v5798
        %v5800 = vpop.f32.mrb[0].mxu0
        %v5801 = vadd.f32 %v5622, %v5800
        %v5802 = vpop.f32.mrb[0].mxu0
        %v5803 = vand.u32 %v3683, 4294901760
        %v5804 = vsub.f32 %v3683, %v5803
        %v5805 = vand.u32 %v5804, 4294901760
        %5806 = vmatprep.mubr.f32.mxu0 %v5805
        %v5807 = vand.u32 %v3682, 4294901760
        %v5808 = vsub.f32 %v3682, %v5807
        %v5809 = vand.u32 %v5808, 4294901760
        %5810 = vmatmul.mubr.f32.gmra.mrb[0].mxu0 %v5809
        %v5811 = vpop.f32.mrb[0].mxu0
        %v5812 = vadd.f32 %v5631, %v5811
        %v5813 = vpop.f32.mrb[0].mxu0
        %v5814 = vand.u32 %v3687, 4294901760
        %v5815 = vsub.f32 %v3687, %v5814
        %v5816 = vand.u32 %v5815, 4294901760
        %5817 = vmatprep.mubr.f32.mxu0 %v5816
        %v5818 = vand.u32 %v3686, 4294901760
        %v5819 = vsub.f32 %v3686, %v5818
        %v5820 = vand.u32 %v5819, 4294901760
        %5821 = vmatmul.mubr.f32.gmra.mrb[0].mxu0 %v5820
        %v5822 = vpop.f32.mrb[0].mxu0
        %v5823 = vadd.f32 %v5640, %v5822
        %v5824 = vpop.f32.mrb[0].mxu0
        %v5825 = vand.u32 %v3691, 4294901760
        %v5826 = vsub.f32 %v3691, %v5825
        %v5827 = vand.u32 %v5826, 4294901760
        %5828 = vmatprep.mubr.f32.mxu0 %v5827
        %v5829 = vand.u32 %v3690, 4294901760
        %v5830 = vsub.f32 %v3690, %v5829
        %v5831 = vand.u32 %v5830, 4294901760
        %5832 = vmatmul.mubr.f32.gmra.mrb[0].mxu0 %v5831
        %v5833 = vpop.f32.mrb[0].mxu0
        %v5834 = vadd.f32 %v5649, %v5833
        %v5835 = vpop.f32.mrb[0].mxu0
        %5836 = vdwg.mxu0
        %5837 = vmatprep.subr.mxu0 0.0
        %v5838 = vand.u32 %v378, 4294901760
        %v5839 = vsub.f32 %v378, %v5838
        %v5840 = vand.u32 %v5839, 4294901760
        %5841 = vmatpush1.msra.mxu0 %v5840
        %5842 = vmatprep.subr.mxu0 0.0
        %v5843 = vand.u32 %v379, 4294901760
        %v5844 = vsub.f32 %v379, %v5843
        %v5845 = vand.u32 %v5844, 4294901760
        %5846 = vmatpush1.msra.mxu0 %v5845
        %5847 = vmatprep.subr.mxu0 0.0
        %v5848 = vand.u32 %v380, 4294901760
        %v5849 = vsub.f32 %v380, %v5848
        %v5850 = vand.u32 %v5849, 4294901760
        %5851 = vmatpush1.msra.mxu0 %v5850
        %5852 = vmatprep.subr.mxu0 0.0
        %v5853 = vand.u32 %v381, 4294901760
        %v5854 = vsub.f32 %v381, %v5853
        %v5855 = vand.u32 %v5854, 4294901760
        %5856 = vmatpush1.msra.mxu0 %v5855
        %5857 = vmatprep.subr.mxu0 0.0
        %v5858 = vand.u32 %v382, 4294901760
        %v5859 = vsub.f32 %v382, %v5858
        %v5860 = vand.u32 %v5859, 4294901760
        %5861 = vmatpush1.msra.mxu0 %v5860
        %5862 = vmatprep.subr.mxu0 0.0
        %v5863 = vand.u32 %v383, 4294901760
        %v5864 = vsub.f32 %v383, %v5863
        %v5865 = vand.u32 %v5864, 4294901760
        %5866 = vmatpush1.msra.mxu0 %v5865
        %5867 = vmatprep.subr.mxu0 0.0
        %v5868 = vand.u32 %v384, 4294901760
        %v5869 = vsub.f32 %v384, %v5868
        %v5870 = vand.u32 %v5869, 4294901760
        %5871 = vmatpush1.msra.mxu0 %v5870
        %5872 = vmatprep.subr.mxu0 0.0
        %v5873 = vand.u32 %v385, 4294901760
        %v5874 = vsub.f32 %v385, %v5873
        %v5875 = vand.u32 %v5874, 4294901760
        %5876 = vmatpush1.msra.mxu0 %v5875
        %5877 = vmatprep.subr.mxu0 0.0
        %v5878 = vand.u32 %v386, 4294901760
        %v5879 = vsub.f32 %v386, %v5878
        %v5880 = vand.u32 %v5879, 4294901760
        %5881 = vmatpush1.msra.mxu0 %v5880
        %5882 = vmatprep.subr.mxu0 0.0
        %v5883 = vand.u32 %v387, 4294901760
        %v5884 = vsub.f32 %v387, %v5883
        %v5885 = vand.u32 %v5884, 4294901760
        %5886 = vmatpush1.msra.mxu0 %v5885
        %5887 = vmatprep.subr.mxu0 0.0
        %v5888 = vand.u32 %v388, 4294901760
        %v5889 = vsub.f32 %v388, %v5888
        %v5890 = vand.u32 %v5889, 4294901760
        %5891 = vmatpush1.msra.mxu0 %v5890
        %5892 = vmatprep.subr.mxu0 0.0
        %v5893 = vand.u32 %v389, 4294901760
        %v5894 = vsub.f32 %v389, %v5893
        %v5895 = vand.u32 %v5894, 4294901760
        %5896 = vmatpush1.msra.mxu0 %v5895
        %5897 = vmatprep.subr.mxu0 0.0
        %v5898 = vand.u32 %v390, 4294901760
        %v5899 = vsub.f32 %v390, %v5898
        %v5900 = vand.u32 %v5899, 4294901760
        %5901 = vmatpush1.msra.mxu0 %v5900
        %5902 = vmatprep.subr.mxu0 0.0
        %v5903 = vand.u32 %v391, 4294901760
        %v5904 = vsub.f32 %v391, %v5903
        %v5905 = vand.u32 %v5904, 4294901760
        %5906 = vmatpush1.msra.mxu0 %v5905
        %5907 = vmatprep.subr.mxu0 0.0
        %v5908 = vand.u32 %v392, 4294901760
        %v5909 = vsub.f32 %v392, %v5908
        %v5910 = vand.u32 %v5909, 4294901760
        %5911 = vmatpush1.msra.mxu0 %v5910
        %5912 = vmatprep.subr.mxu0 0.0
        %v5913 = vand.u32 %v393, 4294901760
        %v5914 = vsub.f32 %v393, %v5913
        %v5915 = vand.u32 %v5914, 4294901760
        %5916 = vmatpush1.msra.mxu0 %v5915
        %5917 = vmatprep.subr.mxu0 0.0
        %v5918 = vand.u32 %v394, 4294901760
        %v5919 = vsub.f32 %v394, %v5918
        %v5920 = vand.u32 %v5919, 4294901760
        %5921 = vmatpush1.msra.mxu0 %v5920
        %5922 = vmatprep.subr.mxu0 0.0
        %v5923 = vand.u32 %v395, 4294901760
        %v5924 = vsub.f32 %v395, %v5923
        %v5925 = vand.u32 %v5924, 4294901760
        %5926 = vmatpush1.msra.mxu0 %v5925
        %5927 = vmatprep.subr.mxu0 0.0
        %v5928 = vand.u32 %v396, 4294901760
        %v5929 = vsub.f32 %v396, %v5928
        %v5930 = vand.u32 %v5929, 4294901760
        %5931 = vmatpush1.msra.mxu0 %v5930
        %5932 = vmatprep.subr.mxu0 0.0
        %v5933 = vand.u32 %v397, 4294901760
        %v5934 = vsub.f32 %v397, %v5933
        %v5935 = vand.u32 %v5934, 4294901760
        %5936 = vmatpush1.msra.mxu0 %v5935
        %5937 = vmatprep.subr.mxu0 0.0
        %v5938 = vand.u32 %v398, 4294901760
        %v5939 = vsub.f32 %v398, %v5938
        %v5940 = vand.u32 %v5939, 4294901760
        %5941 = vmatpush1.msra.mxu0 %v5940
        %5942 = vmatprep.subr.mxu0 0.0
        %v5943 = vand.u32 %v399, 4294901760
        %v5944 = vsub.f32 %v399, %v5943
        %v5945 = vand.u32 %v5944, 4294901760
        %5946 = vmatpush1.msra.mxu0 %v5945
        %5947 = vmatprep.subr.mxu0 0.0
        %v5948 = vand.u32 %v400, 4294901760
        %v5949 = vsub.f32 %v400, %v5948
        %v5950 = vand.u32 %v5949, 4294901760
        %5951 = vmatpush1.msra.mxu0 %v5950
        %5952 = vmatprep.subr.mxu0 0.0
        %v5953 = vand.u32 %v401, 4294901760
        %v5954 = vsub.f32 %v401, %v5953
        %v5955 = vand.u32 %v5954, 4294901760
        %5956 = vmatpush1.msra.mxu0 %v5955
        %5957 = vmatprep.subr.mxu0 0.0
        %v5958 = vand.u32 %v402, 4294901760
        %v5959 = vsub.f32 %v402, %v5958
        %v5960 = vand.u32 %v5959, 4294901760
        %5961 = vmatpush1.msra.mxu0 %v5960
        %5962 = vmatprep.subr.mxu0 0.0
        %v5963 = vand.u32 %v403, 4294901760
        %v5964 = vsub.f32 %v403, %v5963
        %v5965 = vand.u32 %v5964, 4294901760
        %5966 = vmatpush1.msra.mxu0 %v5965
        %5967 = vmatprep.subr.mxu0 0.0
        %v5968 = vand.u32 %v404, 4294901760
        %v5969 = vsub.f32 %v404, %v5968
        %v5970 = vand.u32 %v5969, 4294901760
        %5971 = vmatpush1.msra.mxu0 %v5970
        %5972 = vmatprep.subr.mxu0 0.0
        %v5973 = vand.u32 %v405, 4294901760
        %v5974 = vsub.f32 %v405, %v5973
        %v5975 = vand.u32 %v5974, 4294901760
        %5976 = vmatpush1.msra.mxu0 %v5975
        %5977 = vmatprep.subr.mxu0 0.0
        %v5978 = vand.u32 %v406, 4294901760
        %v5979 = vsub.f32 %v406, %v5978
        %v5980 = vand.u32 %v5979, 4294901760
        %5981 = vmatpush1.msra.mxu0 %v5980
        %5982 = vmatprep.subr.mxu0 0.0
        %v5983 = vand.u32 %v407, 4294901760
        %v5984 = vsub.f32 %v407, %v5983
        %v5985 = vand.u32 %v5984, 4294901760
        %5986 = vmatpush1.msra.mxu0 %v5985
        %5987 = vmatprep.subr.mxu0 0.0
        %v5988 = vand.u32 %v408, 4294901760
        %v5989 = vsub.f32 %v408, %v5988
        %v5990 = vand.u32 %v5989, 4294901760
        %5991 = vmatpush1.msra.mxu0 %v5990
        %5992 = vmatprep.subr.mxu0 0.0
        %v5993 = vand.u32 %v409, 4294901760
        %v5994 = vsub.f32 %v409, %v5993
        %v5995 = vand.u32 %v5994, 4294901760
        %5996 = vmatpush1.msra.mxu0 %v5995
        %v5997 = vand.u32 %v3663, 4294901760
        %5998 = vmatprep.mubr.f32.mxu0 %v5997
        %v5999 = vand.u32 %v3662, 4294901760
        %6000 = vmatmul.mubr.f32.gmra.mrb[0].mxu0 %v5999
        %v6001 = vpop.f32.mrb[0].mxu0
        %v6002 = vadd.f32 %v5757, %v6001
        %v6003 = vpop.f32.mrb[0].mxu0
        %v6004 = vand.u32 %v3667, 4294901760
        %6005 = vmatprep.mubr.f32.mxu0 %v6004
        %v6006 = vand.u32 %v3666, 4294901760
        %6007 = vmatmul.mubr.f32.gmra.mrb[0].mxu0 %v6006
        %v6008 = vpop.f32.mrb[0].mxu0
        %v6009 = vadd.f32 %v5768, %v6008
        %v6010 = vpop.f32.mrb[0].mxu0
        %v6011 = vand.u32 %v3671, 4294901760
        %6012 = vmatprep.mubr.f32.mxu0 %v6011
        %v6013 = vand.u32 %v3670, 4294901760
        %6014 = vmatmul.mubr.f32.gmra.mrb[0].mxu0 %v6013
        %v6015 = vpop.f32.mrb[0].mxu0
        %v6016 = vadd.f32 %v5779, %v6015
        %v6017 = vpop.f32.mrb[0].mxu0
        %v6018 = vand.u32 %v3675, 4294901760
        %6019 = vmatprep.mubr.f32.mxu0 %v6018
        %v6020 = vand.u32 %v3674, 4294901760
        %6021 = vmatmul.mubr.f32.gmra.mrb[0].mxu0 %v6020
        %v6022 = vpop.f32.mrb[0].mxu0
        %v6023 = vadd.f32 %v5790, %v6022
        %v6024 = vpop.f32.mrb[0].mxu0
        %v6025 = vand.u32 %v3679, 4294901760
        %6026 = vmatprep.mubr.f32.mxu0 %v6025
        %v6027 = vand.u32 %v3678, 4294901760
        %6028 = vmatmul.mubr.f32.gmra.mrb[0].mxu0 %v6027
        %v6029 = vpop.f32.mrb[0].mxu0
        %v6030 = vadd.f32 %v5801, %v6029
        %v6031 = vpop.f32.mrb[0].mxu0
        %v6032 = vand.u32 %v3683, 4294901760
        %6033 = vmatprep.mubr.f32.mxu0 %v6032
        %v6034 = vand.u32 %v3682, 4294901760
        %6035 = vmatmul.mubr.f32.gmra.mrb[0].mxu0 %v6034
        %v6036 = vpop.f32.mrb[0].mxu0
        %v6037 = vadd.f32 %v5812, %v6036
        %v6038 = vpop.f32.mrb[0].mxu0
        %v6039 = vand.u32 %v3687, 4294901760
        %6040 = vmatprep.mubr.f32.mxu0 %v6039
        %v6041 = vand.u32 %v3686, 4294901760
        %6042 = vmatmul.mubr.f32.gmra.mrb[0].mxu0 %v6041
        %v6043 = vpop.f32.mrb[0].mxu0
        %v6044 = vadd.f32 %v5823, %v6043
        %v6045 = vpop.f32.mrb[0].mxu0
        %v6046 = vand.u32 %v3691, 4294901760
        %6047 = vmatprep.mubr.f32.mxu0 %v6046
        %v6048 = vand.u32 %v3690, 4294901760
        %6049 = vmatmul.mubr.f32.gmra.mrb[0].mxu0 %v6048
        %v6050 = vpop.f32.mrb[0].mxu0
        %v6051 = vadd.f32 %v5834, %v6050
        %v6052 = vpop.f32.mrb[0].mxu0
        %6053 = vdwg.mxu0
        %6054 = vmatprep.subr.mxu0 0.0
        %v6055 = vand.u32 %v378, 4294901760
        %6056 = vmatpush1.msra.mxu0 %v6055
        %6057 = vmatprep.subr.mxu0 0.0
        %v6058 = vand.u32 %v379, 4294901760
        %6059 = vmatpush1.msra.mxu0 %v6058
        %6060 = vmatprep.subr.mxu0 0.0
        %v6061 = vand.u32 %v380, 4294901760
        %6062 = vmatpush1.msra.mxu0 %v6061
        %6063 = vmatprep.subr.mxu0 0.0
        %v6064 = vand.u32 %v381, 4294901760
        %6065 = vmatpush1.msra.mxu0 %v6064
        %6066 = vmatprep.subr.mxu0 0.0
        %v6067 = vand.u32 %v382, 4294901760
        %6068 = vmatpush1.msra.mxu0 %v6067
        %6069 = vmatprep.subr.mxu0 0.0
        %v6070 = vand.u32 %v383, 4294901760
        %6071 = vmatpush1.msra.mxu0 %v6070
        %6072 = vmatprep.subr.mxu0 0.0
        %v6073 = vand.u32 %v384, 4294901760
        %6074 = vmatpush1.msra.mxu0 %v6073
        %6075 = vmatprep.subr.mxu0 0.0
        %v6076 = vand.u32 %v385, 4294901760
        %6077 = vmatpush1.msra.mxu0 %v6076
        %6078 = vmatprep.subr.mxu0 0.0
        %v6079 = vand.u32 %v386, 4294901760
        %6080 = vmatpush1.msra.mxu0 %v6079
        %6081 = vmatprep.subr.mxu0 0.0
        %v6082 = vand.u32 %v387, 4294901760
        %6083 = vmatpush1.msra.mxu0 %v6082
        %6084 = vmatprep.subr.mxu0 0.0
        %v6085 = vand.u32 %v388, 4294901760
        %6086 = vmatpush1.msra.mxu0 %v6085
        %6087 = vmatprep.subr.mxu0 0.0
        %v6088 = vand.u32 %v389, 4294901760
        %6089 = vmatpush1.msra.mxu0 %v6088
        %6090 = vmatprep.subr.mxu0 0.0
        %v6091 = vand.u32 %v390, 4294901760
        %6092 = vmatpush1.msra.mxu0 %v6091
        %6093 = vmatprep.subr.mxu0 0.0
        %v6094 = vand.u32 %v391, 4294901760
        %6095 = vmatpush1.msra.mxu0 %v6094
        %6096 = vmatprep.subr.mxu0 0.0
        %v6097 = vand.u32 %v392, 4294901760
        %6098 = vmatpush1.msra.mxu0 %v6097
        %6099 = vmatprep.subr.mxu0 0.0
        %v6100 = vand.u32 %v393, 4294901760
        %6101 = vmatpush1.msra.mxu0 %v6100
        %6102 = vmatprep.subr.mxu0 0.0
        %v6103 = vand.u32 %v394, 4294901760
        %6104 = vmatpush1.msra.mxu0 %v6103
        %6105 = vmatprep.subr.mxu0 0.0
        %v6106 = vand.u32 %v395, 4294901760
        %6107 = vmatpush1.msra.mxu0 %v6106
        %6108 = vmatprep.subr.mxu0 0.0
        %v6109 = vand.u32 %v396, 4294901760
        %6110 = vmatpush1.msra.mxu0 %v6109
        %6111 = vmatprep.subr.mxu0 0.0
        %v6112 = vand.u32 %v397, 4294901760
        %6113 = vmatpush1.msra.mxu0 %v6112
        %6114 = vmatprep.subr.mxu0 0.0
        %v6115 = vand.u32 %v398, 4294901760
        %6116 = vmatpush1.msra.mxu0 %v6115
        %6117 = vmatprep.subr.mxu0 0.0
        %v6118 = vand.u32 %v399, 4294901760
        %6119 = vmatpush1.msra.mxu0 %v6118
        %6120 = vmatprep.subr.mxu0 0.0
        %v6121 = vand.u32 %v400, 4294901760
        %6122 = vmatpush1.msra.mxu0 %v6121
        %6123 = vmatprep.subr.mxu0 0.0
        %v6124 = vand.u32 %v401, 4294901760
        %6125 = vmatpush1.msra.mxu0 %v6124
        %6126 = vmatprep.subr.mxu0 0.0
        %v6127 = vand.u32 %v402, 4294901760
        %6128 = vmatpush1.msra.mxu0 %v6127
        %6129 = vmatprep.subr.mxu0 0.0
        %v6130 = vand.u32 %v403, 4294901760
        %6131 = vmatpush1.msra.mxu0 %v6130
        %6132 = vmatprep.subr.mxu0 0.0
        %v6133 = vand.u32 %v404, 4294901760
        %6134 = vmatpush1.msra.mxu0 %v6133
        %6135 = vmatprep.subr.mxu0 0.0
        %v6136 = vand.u32 %v405, 4294901760
        %6137 = vmatpush1.msra.mxu0 %v6136
        %6138 = vmatprep.subr.mxu0 0.0
        %v6139 = vand.u32 %v406, 4294901760
        %6140 = vmatpush1.msra.mxu0 %v6139
        %6141 = vmatprep.subr.mxu0 0.0
        %v6142 = vand.u32 %v407, 4294901760
        %6143 = vmatpush1.msra.mxu0 %v6142
        %6144 = vmatprep.subr.mxu0 0.0
        %v6145 = vand.u32 %v408, 4294901760
        %6146 = vmatpush1.msra.mxu0 %v6145
        %6147 = vmatprep.subr.mxu0 0.0
        %v6148 = vand.u32 %v409, 4294901760
        %6149 = vmatpush1.msra.mxu0 %v6148
        %v6150 = vand.u32 %v3663, 4294901760
        %6151 = vmatprep.mubr.f32.mxu0 %v6150
        %v6152 = vand.u32 %v3662, 4294901760
        %6153 = vmatmul.mubr.f32.gmra.mrb[0].mxu0 %v6152
        %v6154 = vpop.f32.mrb[0].mxu0
        %v6155 = vadd.f32 %v6002, %v6154
        %v6156 = vpop.f32.mrb[0].mxu0
        %v6157 = vand.u32 %v3667, 4294901760
        %6158 = vmatprep.mubr.f32.mxu0 %v6157
        %v6159 = vand.u32 %v3666, 4294901760
        %6160 = vmatmul.mubr.f32.gmra.mrb[0].mxu0 %v6159
        %v6161 = vpop.f32.mrb[0].mxu0
        %v6162 = vadd.f32 %v6009, %v6161
        %v6163 = vpop.f32.mrb[0].mxu0
        %v6164 = vand.u32 %v3671, 4294901760
        %6165 = vmatprep.mubr.f32.mxu0 %v6164
        %v6166 = vand.u32 %v3670, 4294901760
        %6167 = vmatmul.mubr.f32.gmra.mrb[0].mxu0 %v6166
        %v6168 = vpop.f32.mrb[0].mxu0
        %v6169 = vadd.f32 %v6016, %v6168
        %v6170 = vpop.f32.mrb[0].mxu0
        %v6171 = vand.u32 %v3675, 4294901760
        %6172 = vmatprep.mubr.f32.mxu0 %v6171
        %v6173 = vand.u32 %v3674, 4294901760
        %6174 = vmatmul.mubr.f32.gmra.mrb[0].mxu0 %v6173
        %v6175 = vpop.f32.mrb[0].mxu0
        %v6176 = vadd.f32 %v6023, %v6175
        %v6177 = vpop.f32.mrb[0].mxu0
        %v6178 = vand.u32 %v3679, 4294901760
        %6179 = vmatprep.mubr.f32.mxu0 %v6178
        %v6180 = vand.u32 %v3678, 4294901760
        %6181 = vmatmul.mubr.f32.gmra.mrb[0].mxu0 %v6180
        %v6182 = vpop.f32.mrb[0].mxu0
        %v6183 = vadd.f32 %v6030, %v6182
        %v6184 = vpop.f32.mrb[0].mxu0
        %v6185 = vand.u32 %v3683, 4294901760
        %6186 = vmatprep.mubr.f32.mxu0 %v6185
        %v6187 = vand.u32 %v3682, 4294901760
        %6188 = vmatmul.mubr.f32.gmra.mrb[0].mxu0 %v6187
        %v6189 = vpop.f32.mrb[0].mxu0
        %v6190 = vadd.f32 %v6037, %v6189
        %v6191 = vpop.f32.mrb[0].mxu0
        %v6192 = vand.u32 %v3687, 4294901760
        %6193 = vmatprep.mubr.f32.mxu0 %v6192
        %v6194 = vand.u32 %v3686, 4294901760
        %6195 = vmatmul.mubr.f32.gmra.mrb[0].mxu0 %v6194
        %v6196 = vpop.f32.mrb[0].mxu0
        %v6197 = vadd.f32 %v6044, %v6196
        %v6198 = vpop.f32.mrb[0].mxu0
        %v6199 = vand.u32 %v3691, 4294901760
        %6200 = vmatprep.mubr.f32.mxu0 %v6199
        %v6201 = vand.u32 %v3690, 4294901760
        %6202 = vmatmul.mubr.f32.gmra.mrb[0].mxu0 %v6201
        %v6203 = vpop.f32.mrb[0].mxu0
        %v6204 = vadd.f32 %v6051, %v6203
        %v6205 = vpop.f32.mrb[0].mxu0
        %6206 = vdwg.mxu0
        %6207 = vst [vmem:[%s271] sm:$0xff] %v6155
        %6208 = vst [vmem:[%s271 + $0x8] sm:$0xff] %v6162
        %6209 = vst [vmem:[%s271 + $0x10] sm:$0xff] %v6169
        %6210 = vst [vmem:[%s271 + $0x18] sm:$0xff] %v6176
        %6211 = vst [vmem:[%s271 + $0x20] sm:$0xff] %v6183
        %6212 = vst [vmem:[%s271 + $0x28] sm:$0xff] %v6190
        %6213 = vst [vmem:[%s271 + $0x30] sm:$0xff] %v6197
        %6214 = vst [vmem:[%s271 + $0x38] sm:$0xff] %v6204
        %s6215 = sand.u32 %s141, 1
        %s6216 = scalar_lea.sflag [#allocation4], %s6215
        %s6217 = sand.u32 %s141, 1
        %s6218 = smul.addr %s6217, 64
        %s6219 = scalar_lea.vmem [#allocation8], %s6218
        // Predicated region
        $region53: #{tpu_custom_call.1} parent=39 // pred_check
          %p6220 = pneg %p151
        $region54: #{tpu_custom_call.1} parent=39 // pred_check_branch
          %6222 = sbr.rel (%p6220) target = $region56
        $region55: #{tpu_custom_call.1} parent=39 // pred_region
          %s6223 = smul.u32 8, %s23
          %s6225 = ssub.s32 1024, 1024
          %6226 = vsyncadd %s6216, %s6225
          %s6227 = smul.addr %s6223, 128
          %s6228 = scalar_lea.hbm %s5, %s6227
          %s6229 = sshll.u32 %s6219, 4
          %s6230 = int_to_ptr.vmem [resolvable:$true] %s6229
          %6235 = dma.vmem_to_hbm [thread:$0]  %s6230, 1024, %s6228, %s6216, 128, 128, 8
        $region56: #{tpu_custom_call.1} parent=39 // pred_fallthru
          _
      $region40: #{tpu_custom_call.1} parent=5 // pred_fallthru
        _
      %p6236 = scmp.le.s32.totalorder 2, %s18
      // Predicated region
      $region57: #{tpu_custom_call.1} parent=5 // pred_check
        %p6237 = pneg %p6236
      $region58: #{tpu_custom_call.1} parent=5 // pred_check_branch
        %6239 = sbr.rel (%p6237) target = $region60
      $region59: #{tpu_custom_call.1} parent=5 // pred_region
        %s6240 = ssub.s32 %s18, 2
        // Predicated region
        $region61: #{tpu_custom_call.1} parent=59 // pred_check
          %p6241 = pneg %p157
        $region62: #{tpu_custom_call.1} parent=59 // pred_check_branch
          %6243 = sbr.rel (%p6241) target = $region64
        $region63: #{tpu_custom_call.1} parent=59 // pred_region
          %s6244 = sand.u32 %s142, 1
          %s6245 = scalar_lea.sflag [#allocation4], %s6244
          %s6246 = sand.u32 %s142, 1
          %s6247 = smul.addr %s6246, 64
          %s6248 = scalar_lea.vmem [#allocation8], %s6247
          %6249 = dma.done %s6245, 1024
        $region64: #{tpu_custom_call.1} parent=59 // pred_fallthru
          _
      $region60: #{tpu_custom_call.1} parent=5 // pred_fallthru
        _
    $region6: #{tpu_custom_call.1} parent=1 // loop_footer
      %s22 = sadd.s32 1, %s18
    $region7: #{tpu_custom_call.1} parent=1 // loop_footer_branch
      %17 = sbr.rel target = $region3
    $region8: #{tpu_custom_call.1} parent=1 // loop_exit
      _
    %6250 = vsyncpa [#allocation3], 1
    %s6251 = scalar_lea.sflag [#allocation3], 1
    %6252 = vsyncpa %s6251, 1
    %6253 = vsyncpa [#allocation6], 1
    %6254 = vsyncpa [#allocation4], 1
    %s6255 = scalar_lea.sflag [#allocation4], 1
    %6256 = vsyncpa %s6255, 1

</llo_original>
